<compile_context>
chip_gen: v5e
topology: v5e:2x2
jax: 0.10.0
libtpu: 0.0.40
codegen_flags: <defaults>
</compile_context>

<pallas_src>
import functools

import jax
import jax.numpy as jnp
from jax.experimental import pallas as pl
from jax.experimental.pallas import tpu as pltpu


# ----------------------------------------------------------------------------
# Kernel 1: fused bidirectional LSTM layer -> lane-dense feature slab
# ----------------------------------------------------------------------------
def _bilstm_layer_kernel(x_ref, emb_ref, wih_ref, whh_f_ref, whh_b_ref, b_ref,
                         out_ref, *, T, H, din, E, concat_embed, c_pad):
    B = x_ref.shape[0]
    x = x_ref[...][:, :, :din]                                   # (B, T, din)

    # Input projection for every timestep and BOTH directions in one matmul,
    # with the fused bias (b_ih + b_hh) folded in.  Only h @ Whh remains on
    # the latency-critical serial path.
    pre = (jnp.dot(x.reshape(B * T, din), wih_ref[...],
                   preferred_element_type=jnp.float32)
           + b_ref[...]).reshape(B, T, 8 * H)                    # [fwd 4H | bwd 4H]

    whh_f = whh_f_ref[...]
    whh_b = whh_b_ref[...]

    def cell(pre_g, h, c, whh):
        g = pre_g + jnp.dot(h, whh, preferred_element_type=jnp.float32)
        i = jax.nn.sigmoid(g[:, 0:H])            # PyTorch gate order: i, f, g, o
        f = jax.nn.sigmoid(g[:, H:2 * H])
        gg = jnp.tanh(g[:, 2 * H:3 * H])
        o = jax.nn.sigmoid(g[:, 3 * H:4 * H])
        c = f * c + i * gg
        h = o * jnp.tanh(c)
        return h, c

    zeros = jnp.zeros((B, H), jnp.float32)
    h_f, c_f, h_b, c_b = zeros, zeros, zeros, zeros
    hs_f, hs_b = [], []
    # Fully unrolled recurrence (static trip count); fwd/bwd interleaved so
    # their matmuls / elementwise work can co-issue in the same bundles.
    for t in range(T):
        h_f, c_f = cell(pre[:, t, 0:4 * H], h_f, c_f, whh_f)
        h_b, c_b = cell(pre[:, T - 1 - t, 4 * H:8 * H], h_b, c_b, whh_b)
        hs_f.append(h_f)
        hs_b.append(h_b)

    hf_all = jnp.stack(hs_f, axis=1)                 # (B, T, H)
    hb_all = jnp.stack(hs_b[::-1], axis=1)           # (B, T, H), original time order
    pieces = [hf_all, hb_all]
    used = 2 * H
    if concat_embed:                                 # x_feature = cat(lstm_out, embed)
        pieces.append(emb_ref[...])
        used += E
    if c_pad > used:
        pieces.append(jnp.zeros((B, T, c_pad - used), jnp.float32))
    # Single lane-dense (B, T, c_pad) store (c_pad is a multiple of 128).
    out_ref[...] = jnp.concatenate(pieces, axis=-1)


def bilstm_feature(embed_x, lstm_layers, H, E, c_pad):
    """embed_x: (B, T, E) -> lane-dense x_feature slab (B, T, c_pad)."""
    B, T, _ = embed_x.shape
    x = embed_x
    n_layers = len(lstm_layers)
    for li, p in enumerate(lstm_layers):
        din = E if li == 0 else 2 * H
        kern = functools.partial(
            _bilstm_layer_kernel, T=T, H=H, din=din, E=E,
            concat_embed=(li == n_layers - 1), c_pad=c_pad)
        x = pl.pallas_call(
            kern,
            out_shape=jax.ShapeDtypeStruct((B, T, c_pad), jnp.float32),
            in_specs=[pl.BlockSpec(memory_space=pltpu.MemorySpace.VMEM)] * 6,
            out_specs=pl.BlockSpec(memory_space=pltpu.MemorySpace.VMEM),
        )(x, embed_x, p["wih"], p["whh_f"], p["whh_b"], p["b"])
        # TODO(synk): inter-layer LSTM dropout skipped (inference semantics).
    return x


# ----------------------------------------------------------------------------
# Kernel 2: fused head = convs (+ReLU +MaxPool) + doc2vec MLP + fc1 + fc2
# ----------------------------------------------------------------------------
def _head_kernel(feat_ref, d2v_ref, *refs, T, ksizes, feature_size, c_pad):
    nk = len(ksizes)
    F_ = feature_size
    conv_refs = refs[:2 * nk]                                   # (w, b) interleaved
    (wd1, bd1, wd2, bd2, wfc1, bfc1, wfc2, bfc2) = refs[2 * nk:2 * nk + 8]
    out_ref = refs[2 * nk + 8]

    B = feat_ref.shape[0]
    feat2d = feat_ref[...].reshape(B * T, c_pad)                # layout-trivial

    # fc1 is accumulated branch by branch (rows of w_fc1 split per branch),
    # so no concatenation of conv / doc2vec features is ever materialized.
    acc1 = bfc1[...]                                            # (1, total_out)
    row = 0
    for idx, ksz in enumerate(ksizes):
        w_ref = conv_refs[2 * idx]                              # (ksz, c_pad, F)
        b_k = conv_refs[2 * idx + 1][...]                       # (1, F)
        Tout = T - ksz + 1
        acc = None
        for k in range(ksz):
            yk = jnp.dot(feat2d, w_ref[k],
                         preferred_element_type=jnp.float32).reshape(B, T, F_)
            win = yk[:, k:k + Tout, :]                          # conv tap window
            acc = win if acc is None else acc + win
        acc = jnp.maximum(acc + b_k.reshape(1, 1, F_), 0.0)     # bias + ReLU
        pooled = jnp.max(acc, axis=1)                           # MaxPool1d -> (B, F)
        acc1 = acc1 + jnp.dot(pooled, wfc1[row:row + F_, :],
                              preferred_element_type=jnp.float32)
        row += F_

    # doc2vec branch: two Linear + ReLU
    d = jnp.maximum(jnp.dot(d2v_ref[...], wd1[...],
                            preferred_element_type=jnp.float32) + bd1[...], 0.0)
    d = jnp.maximum(jnp.dot(d, wd2[...],
                            preferred_element_type=jnp.float32) + bd2[...], 0.0)
    acc1 = acc1 + jnp.dot(d, wfc1[row:, :], preferred_element_type=jnp.float32)

    z = jnp.maximum(acc1, 0.0)                                  # fc1 ReLU
    out_ref[...] = jnp.dot(z, wfc2[...],
                           preferred_element_type=jnp.float32) + bfc2[...]


def head_forward(feat, doc2vec, params, cfg):
    B, T, c_pad = feat.shape
    conv_args = []
    for (w, b) in params["convs"]:
        conv_args += [w, b]
    args = [feat, doc2vec] + conv_args + [
        params["d2v_fc1_w"], params["d2v_fc1_b"],
        params["d2v_fc2_w"], params["d2v_fc2_b"],
        params["fc1_w"], params["fc1_b"],
        params["fc2_w"], params["fc2_b"],
    ]
    kern = functools.partial(_head_kernel, T=T, ksizes=tuple(cfg.kernel_sizes),
                             feature_size=cfg.feature_size, c_pad=c_pad)
    return pl.pallas_call(
        kern,
        out_shape=jax.ShapeDtypeStruct((B, cfg.num_class), jnp.float32),
        in_specs=[pl.BlockSpec(memory_space=pltpu.MemorySpace.VMEM)] * len(args),
        out_specs=pl.BlockSpec(memory_space=pltpu.MemorySpace.VMEM),
    )(*args)


# ----------------------------------------------------------------------------
# Full model
# ----------------------------------------------------------------------------
class Config:
    vocab_size = 50
    embedding_size = 16
    hidden_size = 32
    num_layers = 1
    dropout_rate = 0.0
    max_text_len = 12
    kernel_sizes = (2, 3)
    feature_size = 8
    doc2vec_size = 16
    doc2vec_out_size = 8
    total_out_size = 16
    num_class = 5


def init_params(cfg, key):
    ks = iter(jax.random.split(key, 64))

    def rnd(shape, scale=0.1):
        return (scale * jax.random.normal(next(ks), shape)).astype(jnp.float32)

    H = cfg.hidden_size
    E = cfg.embedding_size
    c_real = 2 * H + E                       # conv in_channels
    c_pad = max(128, ((c_real + 127) // 128) * 128)   # lane-dense feature slab

    p = {"c_pad": c_pad}
    p["embedding"] = rnd((cfg.vocab_size, E), 1.0)

    # LSTM layers: PyTorch weight shapes, stored pre-transposed & direction-fused.
    p["lstm"] = []
    for layer in range(cfg.num_layers):
        din = E if layer == 0 else 2 * H
        wih_f = rnd((4 * H, din)); whh_f = rnd((4 * H, H))
        bih_f = rnd((4 * H,));     bhh_f = rnd((4 * H,))
        wih_b = rnd((4 * H, din)); whh_b = rnd((4 * H, H))
        bih_b = rnd((4 * H,));     bhh_b = rnd((4 * H,))
        p["lstm"].append({
            "wih": jnp.concatenate([wih_f.T, wih_b.T], axis=1),       # (din, 8H)
            "whh_f": whh_f.T,                                          # (H, 4H)
            "whh_b": whh_b.T,                                          # (H, 4H)
            "b": jnp.concatenate([bih_f + bhh_f,
                                  bih_b + bhh_b]).reshape(1, 8 * H),   # (1, 8H)
        })

    # Conv1d weights: PyTorch (F, C, h) -> stored (h, C, F), channel-padded to c_pad.
    p["convs"] = []
    for h in cfg.kernel_sizes:
        w = rnd((cfg.feature_size, c_real, h))
        w_hcf = jnp.transpose(w, (2, 1, 0))                            # (h, C, F)
        w_hcf = jnp.pad(w_hcf, ((0, 0), (0, c_pad - c_real), (0, 0)))
        p["convs"].append((w_hcf, rnd((cfg.feature_size,)).reshape(1, -1)))

    # Linear weights: PyTorch (out, in) -> stored transposed (in, out).
    p["d2v_fc1_w"] = rnd((cfg.doc2vec_size, 2 * cfg.doc2vec_size)).T
    p["d2v_fc1_b"] = rnd((cfg.doc2vec_size,)).reshape(1, -1)
    p["d2v_fc2_w"] = rnd((cfg.doc2vec_out_size, cfg.doc2vec_size)).T
    p["d2v_fc2_b"] = rnd((cfg.doc2vec_out_size,)).reshape(1, -1)
    fc1_in = cfg.doc2vec_out_size + cfg.feature_size * len(cfg.kernel_sizes)
    p["fc1_w"] = rnd((cfg.total_out_size, fc1_in)).T
    p["fc1_b"] = rnd((cfg.total_out_size,)).reshape(1, -1)
    p["fc2_w"] = rnd((cfg.num_class, cfg.total_out_size)).T
    p["fc2_b"] = rnd((cfg.num_class,)).reshape(1, -1)
    return p


def rcnn_with_doc2vec_forward(params, x_ids, doc2vec, cfg):
    # Embedding lookup (glue, plain JAX gather)
    embed_x = jnp.take(params["embedding"], x_ids, axis=0)      # (B, T, E)

    # Fused BiLSTM -> lane-dense x_feature slab (B, T, c_pad)
    feat = bilstm_feature(embed_x, params["lstm"], cfg.hidden_size,
                          cfg.embedding_size, params["c_pad"])

    # Fused convs + doc2vec MLP + fc1 + fc2 -> logits (B, num_class)
    return head_forward(feat, doc2vec, params, cfg)


if __name__ == "__main__":
    cfg = Config()
    B = 2

    key = jax.random.PRNGKey(0)
    k_ids, k_doc, k_params = jax.random.split(key, 3)

    x_ids = jax.random.randint(k_ids, (B, cfg.max_text_len), 0, cfg.vocab_size,
                               dtype=jnp.int32)
    doc2vec = jax.random.normal(k_doc, (B, 2 * cfg.doc2vec_size),
                                dtype=jnp.float32)
    params = init_params(cfg, k_params)

    out = rcnn_with_doc2vec_forward(params, x_ids, doc2vec, cfg)
    out = jax.block_until_ready(out)
    assert out.shape == (B, cfg.num_class), out.shape
    print("KERNEL_OK")
</pallas_src>

<mosaic_0001>
module attributes {stable_mosaic.version = 11 : i64} {
  func.func @_bilstm_layer_kernel(%arg0: memref<2x12x16xf32, #tpu.memory_space<vmem>>, %arg1: memref<2x12x16xf32, #tpu.memory_space<vmem>>, %arg2: memref<16x256xf32, #tpu.memory_space<vmem>>, %arg3: memref<32x128xf32, #tpu.memory_space<vmem>>, %arg4: memref<32x128xf32, #tpu.memory_space<vmem>>, %arg5: memref<1x256xf32, #tpu.memory_space<vmem>>, %arg6: memref<2x12x128xf32, #tpu.memory_space<vmem>>) attributes {dimension_semantics = [], scalar_prefetch = 0 : i64, scratch_operands = 0 : i64, tpu.core_type = #tpu.core_type<tc>} {
    %c0 = arith.constant 0 : index
    %c0_0 = arith.constant 0 : index
    %c0_1 = arith.constant 0 : index
    %0 = vector.load %arg0[%c0, %c0_0, %c0_1] : memref<2x12x16xf32, #tpu.memory_space<vmem>>, vector<2x12x16xf32>
    %1 = vector.shape_cast %0 : vector<2x12x16xf32> to vector<24x16xf32>
    %c0_2 = arith.constant 0 : index
    %c0_3 = arith.constant 0 : index
    %2 = vector.load %arg2[%c0_2, %c0_3] : memref<16x256xf32, #tpu.memory_space<vmem>>, vector<16x256xf32>
    %cst = arith.constant dense<0.000000e+00> : vector<24x256xf32>
    %3 = tpu.matmul %1, %2, %cst {dimension_numbers = #tpu.dot_dimension_numbers<[1], [0], [0], [1], [0, 0, 1, 1], [], []>} : vector<24x16xf32>, vector<16x256xf32>, vector<24x256xf32> -> vector<24x256xf32>
    %c0_4 = arith.constant 0 : index
    %c0_5 = arith.constant 0 : index
    %4 = vector.load %arg5[%c0_4, %c0_5] : memref<1x256xf32, #tpu.memory_space<vmem>>, vector<1x256xf32>
    %5 = vector.broadcast %4 : vector<1x256xf32> to vector<24x256xf32>
    %6 = arith.addf %3, %5 : vector<24x256xf32>
    %7 = vector.shape_cast %6 : vector<24x256xf32> to vector<2x12x256xf32>
    %c0_6 = arith.constant 0 : index
    %c0_7 = arith.constant 0 : index
    %8 = vector.load %arg3[%c0_6, %c0_7] : memref<32x128xf32, #tpu.memory_space<vmem>>, vector<32x128xf32>
    %c0_8 = arith.constant 0 : index
    %c0_9 = arith.constant 0 : index
    %9 = vector.load %arg4[%c0_8, %c0_9] : memref<32x128xf32, #tpu.memory_space<vmem>>, vector<32x128xf32>
    %cst_10 = arith.constant 0.000000e+00 : f32
    %10 = vector.broadcast %cst_10 : f32 to vector<2x32xf32>
    %11 = vector.extract_strided_slice %7 {offsets = [0, 0, 0], sizes = [2, 1, 128], strides = [1, 1, 1]} : vector<2x12x256xf32> to vector<2x1x128xf32>
    %12 = vector.shape_cast %11 : vector<2x1x128xf32> to vector<2x128xf32>
    %cst_11 = arith.constant dense<0.000000e+00> : vector<2x128xf32>
    %13 = tpu.matmul %10, %8, %cst_11 {dimension_numbers = #tpu.dot_dimension_numbers<[1], [0], [0], [1], [0, 0, 1, 1], [], []>} : vector<2x32xf32>, vector<32x128xf32>, vector<2x128xf32> -> vector<2x128xf32>
    %14 = arith.addf %12, %13 : vector<2x128xf32>
    %15 = vector.extract_strided_slice %14 {offsets = [0, 0], sizes = [2, 32], strides = [1, 1]} : vector<2x128xf32> to vector<2x32xf32>
    %16 = arith.negf %15 : vector<2x32xf32>
    %17 = math.exp %16 : vector<2x32xf32>
    %cst_12 = arith.constant 1.000000e+00 : f32
    %18 = vector.broadcast %cst_12 : f32 to vector<2x32xf32>
    %19 = arith.addf %18, %17 : vector<2x32xf32>
    %20 = arith.divf %18, %19 : vector<2x32xf32>
    %21 = vector.extract_strided_slice %14 {offsets = [0, 32], sizes = [2, 32], strides = [1, 1]} : vector<2x128xf32> to vector<2x32xf32>
    %22 = arith.negf %21 : vector<2x32xf32>
    %23 = math.exp %22 : vector<2x32xf32>
    %cst_13 = arith.constant 1.000000e+00 : f32
    %24 = vector.broadcast %cst_13 : f32 to vector<2x32xf32>
    %25 = arith.addf %24, %23 : vector<2x32xf32>
    %26 = arith.divf %24, %25 : vector<2x32xf32>
    %27 = vector.extract_strided_slice %14 {offsets = [0, 64], sizes = [2, 32], strides = [1, 1]} : vector<2x128xf32> to vector<2x32xf32>
    %28 = math.tanh %27 : vector<2x32xf32>
    %29 = vector.extract_strided_slice %14 {offsets = [0, 96], sizes = [2, 32], strides = [1, 1]} : vector<2x128xf32> to vector<2x32xf32>
    %30 = arith.negf %29 : vector<2x32xf32>
    %31 = math.exp %30 : vector<2x32xf32>
    %cst_14 = arith.constant 1.000000e+00 : f32
    %32 = vector.broadcast %cst_14 : f32 to vector<2x32xf32>
    %33 = arith.addf %32, %31 : vector<2x32xf32>
    %34 = arith.divf %32, %33 : vector<2x32xf32>
    %35 = arith.mulf %26, %10 : vector<2x32xf32>
    %36 = arith.mulf %20, %28 : vector<2x32xf32>
    %37 = arith.addf %35, %36 : vector<2x32xf32>
    %38 = math.tanh %37 : vector<2x32xf32>
    %39 = arith.mulf %34, %38 : vector<2x32xf32>
    %40 = vector.extract_strided_slice %7 {offsets = [0, 11, 128], sizes = [2, 1, 128], strides = [1, 1, 1]} : vector<2x12x256xf32> to vector<2x1x128xf32>
    %41 = vector.shape_cast %40 : vector<2x1x128xf32> to vector<2x128xf32>
    %cst_15 = arith.constant dense<0.000000e+00> : vector<2x128xf32>
    %42 = tpu.matmul %10, %9, %cst_15 {dimension_numbers = #tpu.dot_dimension_numbers<[1], [0], [0], [1], [0, 0, 1, 1], [], []>} : vector<2x32xf32>, vector<32x128xf32>, vector<2x128xf32> -> vector<2x128xf32>
    %43 = arith.addf %41, %42 : vector<2x128xf32>
    %44 = vector.extract_strided_slice %43 {offsets = [0, 0], sizes = [2, 32], strides = [1, 1]} : vector<2x128xf32> to vector<2x32xf32>
    %45 = arith.negf %44 : vector<2x32xf32>
    %46 = math.exp %45 : vector<2x32xf32>
    %cst_16 = arith.constant 1.000000e+00 : f32
    %47 = vector.broadcast %cst_16 : f32 to vector<2x32xf32>
    %48 = arith.addf %47, %46 : vector<2x32xf32>
    %49 = arith.divf %47, %48 : vector<2x32xf32>
    %50 = vector.extract_strided_slice %43 {offsets = [0, 32], sizes = [2, 32], strides = [1, 1]} : vector<2x128xf32> to vector<2x32xf32>
    %51 = arith.negf %50 : vector<2x32xf32>
    %52 = math.exp %51 : vector<2x32xf32>
    %cst_17 = arith.constant 1.000000e+00 : f32
    %53 = vector.broadcast %cst_17 : f32 to vector<2x32xf32>
    %54 = arith.addf %53, %52 : vector<2x32xf32>
    %55 = arith.divf %53, %54 : vector<2x32xf32>
    %56 = vector.extract_strided_slice %43 {offsets = [0, 64], sizes = [2, 32], strides = [1, 1]} : vector<2x128xf32> to vector<2x32xf32>
    %57 = math.tanh %56 : vector<2x32xf32>
    %58 = vector.extract_strided_slice %43 {offsets = [0, 96], sizes = [2, 32], strides = [1, 1]} : vector<2x128xf32> to vector<2x32xf32>
    %59 = arith.negf %58 : vector<2x32xf32>
    %60 = math.exp %59 : vector<2x32xf32>
    %cst_18 = arith.constant 1.000000e+00 : f32
    %61 = vector.broadcast %cst_18 : f32 to vector<2x32xf32>
    %62 = arith.addf %61, %60 : vector<2x32xf32>
    %63 = arith.divf %61, %62 : vector<2x32xf32>
    %64 = arith.mulf %55, %10 : vector<2x32xf32>
    %65 = arith.mulf %49, %57 : vector<2x32xf32>
    %66 = arith.addf %64, %65 : vector<2x32xf32>
    %67 = math.tanh %66 : vector<2x32xf32>
    %68 = arith.mulf %63, %67 : vector<2x32xf32>
    %69 = vector.extract_strided_slice %7 {offsets = [0, 1, 0], sizes = [2, 1, 128], strides = [1, 1, 1]} : vector<2x12x256xf32> to vector<2x1x128xf32>
    %70 = vector.shape_cast %69 : vector<2x1x128xf32> to vector<2x128xf32>
    %cst_19 = arith.constant dense<0.000000e+00> : vector<2x128xf32>
    %71 = tpu.matmul %39, %8, %cst_19 {dimension_numbers = #tpu.dot_dimension_numbers<[1], [0], [0], [1], [0, 0, 1, 1], [], []>} : vector<2x32xf32>, vector<32x128xf32>, vector<2x128xf32> -> vector<2x128xf32>
    %72 = arith.addf %70, %71 : vector<2x128xf32>
    %73 = vector.extract_strided_slice %72 {offsets = [0, 0], sizes = [2, 32], strides = [1, 1]} : vector<2x128xf32> to vector<2x32xf32>
    %74 = arith.negf %73 : vector<2x32xf32>
    %75 = math.exp %74 : vector<2x32xf32>
    %cst_20 = arith.constant 1.000000e+00 : f32
    %76 = vector.broadcast %cst_20 : f32 to vector<2x32xf32>
    %77 = arith.addf %76, %75 : vector<2x32xf32>
    %78 = arith.divf %76, %77 : vector<2x32xf32>
    %79 = vector.extract_strided_slice %72 {offsets = [0, 32], sizes = [2, 32], strides = [1, 1]} : vector<2x128xf32> to vector<2x32xf32>
    %80 = arith.negf %79 : vector<2x32xf32>
    %81 = math.exp %80 : vector<2x32xf32>
    %cst_21 = arith.constant 1.000000e+00 : f32
    %82 = vector.broadcast %cst_21 : f32 to vector<2x32xf32>
    %83 = arith.addf %82, %81 : vector<2x32xf32>
    %84 = arith.divf %82, %83 : vector<2x32xf32>
    %85 = vector.extract_strided_slice %72 {offsets = [0, 64], sizes = [2, 32], strides = [1, 1]} : vector<2x128xf32> to vector<2x32xf32>
    %86 = math.tanh %85 : vector<2x32xf32>
    %87 = vector.extract_strided_slice %72 {offsets = [0, 96], sizes = [2, 32], strides = [1, 1]} : vector<2x128xf32> to vector<2x32xf32>
    %88 = arith.negf %87 : vector<2x32xf32>
    %89 = math.exp %88 : vector<2x32xf32>
    %cst_22 = arith.constant 1.000000e+00 : f32
    %90 = vector.broadcast %cst_22 : f32 to vector<2x32xf32>
    %91 = arith.addf %90, %89 : vector<2x32xf32>
    %92 = arith.divf %90, %91 : vector<2x32xf32>
    %93 = arith.mulf %84, %37 : vector<2x32xf32>
    %94 = arith.mulf %78, %86 : vector<2x32xf32>
    %95 = arith.addf %93, %94 : vector<2x32xf32>
    %96 = math.tanh %95 : vector<2x32xf32>
    %97 = arith.mulf %92, %96 : vector<2x32xf32>
    %98 = vector.extract_strided_slice %7 {offsets = [0, 10, 128], sizes = [2, 1, 128], strides = [1, 1, 1]} : vector<2x12x256xf32> to vector<2x1x128xf32>
    %99 = vector.shape_cast %98 : vector<2x1x128xf32> to vector<2x128xf32>
    %cst_23 = arith.constant dense<0.000000e+00> : vector<2x128xf32>
    %100 = tpu.matmul %68, %9, %cst_23 {dimension_numbers = #tpu.dot_dimension_numbers<[1], [0], [0], [1], [0, 0, 1, 1], [], []>} : vector<2x32xf32>, vector<32x128xf32>, vector<2x128xf32> -> vector<2x128xf32>
    %101 = arith.addf %99, %100 : vector<2x128xf32>
    %102 = vector.extract_strided_slice %101 {offsets = [0, 0], sizes = [2, 32], strides = [1, 1]} : vector<2x128xf32> to vector<2x32xf32>
    %103 = arith.negf %102 : vector<2x32xf32>
    %104 = math.exp %103 : vector<2x32xf32>
    %cst_24 = arith.constant 1.000000e+00 : f32
    %105 = vector.broadcast %cst_24 : f32 to vector<2x32xf32>
    %106 = arith.addf %105, %104 : vector<2x32xf32>
    %107 = arith.divf %105, %106 : vector<2x32xf32>
    %108 = vector.extract_strided_slice %101 {offsets = [0, 32], sizes = [2, 32], strides = [1, 1]} : vector<2x128xf32> to vector<2x32xf32>
    %109 = arith.negf %108 : vector<2x32xf32>
    %110 = math.exp %109 : vector<2x32xf32>
    %cst_25 = arith.constant 1.000000e+00 : f32
    %111 = vector.broadcast %cst_25 : f32 to vector<2x32xf32>
    %112 = arith.addf %111, %110 : vector<2x32xf32>
    %113 = arith.divf %111, %112 : vector<2x32xf32>
    %114 = vector.extract_strided_slice %101 {offsets = [0, 64], sizes = [2, 32], strides = [1, 1]} : vector<2x128xf32> to vector<2x32xf32>
    %115 = math.tanh %114 : vector<2x32xf32>
    %116 = vector.extract_strided_slice %101 {offsets = [0, 96], sizes = [2, 32], strides = [1, 1]} : vector<2x128xf32> to vector<2x32xf32>
    %117 = arith.negf %116 : vector<2x32xf32>
    %118 = math.exp %117 : vector<2x32xf32>
    %cst_26 = arith.constant 1.000000e+00 : f32
    %119 = vector.broadcast %cst_26 : f32 to vector<2x32xf32>
    %120 = arith.addf %119, %118 : vector<2x32xf32>
    %121 = arith.divf %119, %120 : vector<2x32xf32>
    %122 = arith.mulf %113, %66 : vector<2x32xf32>
    %123 = arith.mulf %107, %115 : vector<2x32xf32>
    %124 = arith.addf %122, %123 : vector<2x32xf32>
    %125 = math.tanh %124 : vector<2x32xf32>
    %126 = arith.mulf %121, %125 : vector<2x32xf32>
    %127 = vector.extract_strided_slice %7 {offsets = [0, 2, 0], sizes = [2, 1, 128], strides = [1, 1, 1]} : vector<2x12x256xf32> to vector<2x1x128xf32>
    %128 = vector.shape_cast %127 : vector<2x1x128xf32> to vector<2x128xf32>
    %cst_27 = arith.constant dense<0.000000e+00> : vector<2x128xf32>
    %129 = tpu.matmul %97, %8, %cst_27 {dimension_numbers = #tpu.dot_dimension_numbers<[1], [0], [0], [1], [0, 0, 1, 1], [], []>} : vector<2x32xf32>, vector<32x128xf32>, vector<2x128xf32> -> vector<2x128xf32>
    %130 = arith.addf %128, %129 : vector<2x128xf32>
    %131 = vector.extract_strided_slice %130 {offsets = [0, 0], sizes = [2, 32], strides = [1, 1]} : vector<2x128xf32> to vector<2x32xf32>
    %132 = arith.negf %131 : vector<2x32xf32>
    %133 = math.exp %132 : vector<2x32xf32>
    %cst_28 = arith.constant 1.000000e+00 : f32
    %134 = vector.broadcast %cst_28 : f32 to vector<2x32xf32>
    %135 = arith.addf %134, %133 : vector<2x32xf32>
    %136 = arith.divf %134, %135 : vector<2x32xf32>
    %137 = vector.extract_strided_slice %130 {offsets = [0, 32], sizes = [2, 32], strides = [1, 1]} : vector<2x128xf32> to vector<2x32xf32>
    %138 = arith.negf %137 : vector<2x32xf32>
    %139 = math.exp %138 : vector<2x32xf32>
    %cst_29 = arith.constant 1.000000e+00 : f32
    %140 = vector.broadcast %cst_29 : f32 to vector<2x32xf32>
    %141 = arith.addf %140, %139 : vector<2x32xf32>
    %142 = arith.divf %140, %141 : vector<2x32xf32>
    %143 = vector.extract_strided_slice %130 {offsets = [0, 64], sizes = [2, 32], strides = [1, 1]} : vector<2x128xf32> to vector<2x32xf32>
    %144 = math.tanh %143 : vector<2x32xf32>
    %145 = vector.extract_strided_slice %130 {offsets = [0, 96], sizes = [2, 32], strides = [1, 1]} : vector<2x128xf32> to vector<2x32xf32>
    %146 = arith.negf %145 : vector<2x32xf32>
    %147 = math.exp %146 : vector<2x32xf32>
    %cst_30 = arith.constant 1.000000e+00 : f32
    %148 = vector.broadcast %cst_30 : f32 to vector<2x32xf32>
    %149 = arith.addf %148, %147 : vector<2x32xf32>
    %150 = arith.divf %148, %149 : vector<2x32xf32>
    %151 = arith.mulf %142, %95 : vector<2x32xf32>
    %152 = arith.mulf %136, %144 : vector<2x32xf32>
    %153 = arith.addf %151, %152 : vector<2x32xf32>
    %154 = math.tanh %153 : vector<2x32xf32>
    %155 = arith.mulf %150, %154 : vector<2x32xf32>
    %156 = vector.extract_strided_slice %7 {offsets = [0, 9, 128], sizes = [2, 1, 128], strides = [1, 1, 1]} : vector<2x12x256xf32> to vector<2x1x128xf32>
    %157 = vector.shape_cast %156 : vector<2x1x128xf32> to vector<2x128xf32>
    %cst_31 = arith.constant dense<0.000000e+00> : vector<2x128xf32>
    %158 = tpu.matmul %126, %9, %cst_31 {dimension_numbers = #tpu.dot_dimension_numbers<[1], [0], [0], [1], [0, 0, 1, 1], [], []>} : vector<2x32xf32>, vector<32x128xf32>, vector<2x128xf32> -> vector<2x128xf32>
    %159 = arith.addf %157, %158 : vector<2x128xf32>
    %160 = vector.extract_strided_slice %159 {offsets = [0, 0], sizes = [2, 32], strides = [1, 1]} : vector<2x128xf32> to vector<2x32xf32>
    %161 = arith.negf %160 : vector<2x32xf32>
    %162 = math.exp %161 : vector<2x32xf32>
    %cst_32 = arith.constant 1.000000e+00 : f32
    %163 = vector.broadcast %cst_32 : f32 to vector<2x32xf32>
    %164 = arith.addf %163, %162 : vector<2x32xf32>
    %165 = arith.divf %163, %164 : vector<2x32xf32>
    %166 = vector.extract_strided_slice %159 {offsets = [0, 32], sizes = [2, 32], strides = [1, 1]} : vector<2x128xf32> to vector<2x32xf32>
    %167 = arith.negf %166 : vector<2x32xf32>
    %168 = math.exp %167 : vector<2x32xf32>
    %cst_33 = arith.constant 1.000000e+00 : f32
    %169 = vector.broadcast %cst_33 : f32 to vector<2x32xf32>
    %170 = arith.addf %169, %168 : vector<2x32xf32>
    %171 = arith.divf %169, %170 : vector<2x32xf32>
    %172 = vector.extract_strided_slice %159 {offsets = [0, 64], sizes = [2, 32], strides = [1, 1]} : vector<2x128xf32> to vector<2x32xf32>
    %173 = math.tanh %172 : vector<2x32xf32>
    %174 = vector.extract_strided_slice %159 {offsets = [0, 96], sizes = [2, 32], strides = [1, 1]} : vector<2x128xf32> to vector<2x32xf32>
    %175 = arith.negf %174 : vector<2x32xf32>
    %176 = math.exp %175 : vector<2x32xf32>
    %cst_34 = arith.constant 1.000000e+00 : f32
    %177 = vector.broadcast %cst_34 : f32 to vector<2x32xf32>
    %178 = arith.addf %177, %176 : vector<2x32xf32>
    %179 = arith.divf %177, %178 : vector<2x32xf32>
    %180 = arith.mulf %171, %124 : vector<2x32xf32>
    %181 = arith.mulf %165, %173 : vector<2x32xf32>
    %182 = arith.addf %180, %181 : vector<2x32xf32>
    %183 = math.tanh %182 : vector<2x32xf32>
    %184 = arith.mulf %179, %183 : vector<2x32xf32>
    %185 = vector.extract_strided_slice %7 {offsets = [0, 3, 0], sizes = [2, 1, 128], strides = [1, 1, 1]} : vector<2x12x256xf32> to vector<2x1x128xf32>
    %186 = vector.shape_cast %185 : vector<2x1x128xf32> to vector<2x128xf32>
    %cst_35 = arith.constant dense<0.000000e+00> : vector<2x128xf32>
    %187 = tpu.matmul %155, %8, %cst_35 {dimension_numbers = #tpu.dot_dimension_numbers<[1], [0], [0], [1], [0, 0, 1, 1], [], []>} : vector<2x32xf32>, vector<32x128xf32>, vector<2x128xf32> -> vector<2x128xf32>
    %188 = arith.addf %186, %187 : vector<2x128xf32>
    %189 = vector.extract_strided_slice %188 {offsets = [0, 0], sizes = [2, 32], strides = [1, 1]} : vector<2x128xf32> to vector<2x32xf32>
    %190 = arith.negf %189 : vector<2x32xf32>
    %191 = math.exp %190 : vector<2x32xf32>
    %cst_36 = arith.constant 1.000000e+00 : f32
    %192 = vector.broadcast %cst_36 : f32 to vector<2x32xf32>
    %193 = arith.addf %192, %191 : vector<2x32xf32>
    %194 = arith.divf %192, %193 : vector<2x32xf32>
    %195 = vector.extract_strided_slice %188 {offsets = [0, 32], sizes = [2, 32], strides = [1, 1]} : vector<2x128xf32> to vector<2x32xf32>
    %196 = arith.negf %195 : vector<2x32xf32>
    %197 = math.exp %196 : vector<2x32xf32>
    %cst_37 = arith.constant 1.000000e+00 : f32
    %198 = vector.broadcast %cst_37 : f32 to vector<2x32xf32>
    %199 = arith.addf %198, %197 : vector<2x32xf32>
    %200 = arith.divf %198, %199 : vector<2x32xf32>
    %201 = vector.extract_strided_slice %188 {offsets = [0, 64], sizes = [2, 32], strides = [1, 1]} : vector<2x128xf32> to vector<2x32xf32>
    %202 = math.tanh %201 : vector<2x32xf32>
    %203 = vector.extract_strided_slice %188 {offsets = [0, 96], sizes = [2, 32], strides = [1, 1]} : vector<2x128xf32> to vector<2x32xf32>
    %204 = arith.negf %203 : vector<2x32xf32>
    %205 = math.exp %204 : vector<2x32xf32>
    %cst_38 = arith.constant 1.000000e+00 : f32
    %206 = vector.broadcast %cst_38 : f32 to vector<2x32xf32>
    %207 = arith.addf %206, %205 : vector<2x32xf32>
    %208 = arith.divf %206, %207 : vector<2x32xf32>
    %209 = arith.mulf %200, %153 : vector<2x32xf32>
    %210 = arith.mulf %194, %202 : vector<2x32xf32>
    %211 = arith.addf %209, %210 : vector<2x32xf32>
    %212 = math.tanh %211 : vector<2x32xf32>
    %213 = arith.mulf %208, %212 : vector<2x32xf32>
    %214 = vector.extract_strided_slice %7 {offsets = [0, 8, 128], sizes = [2, 1, 128], strides = [1, 1, 1]} : vector<2x12x256xf32> to vector<2x1x128xf32>
    %215 = vector.shape_cast %214 : vector<2x1x128xf32> to vector<2x128xf32>
    %cst_39 = arith.constant dense<0.000000e+00> : vector<2x128xf32>
    %216 = tpu.matmul %184, %9, %cst_39 {dimension_numbers = #tpu.dot_dimension_numbers<[1], [0], [0], [1], [0, 0, 1, 1], [], []>} : vector<2x32xf32>, vector<32x128xf32>, vector<2x128xf32> -> vector<2x128xf32>
    %217 = arith.addf %215, %216 : vector<2x128xf32>
    %218 = vector.extract_strided_slice %217 {offsets = [0, 0], sizes = [2, 32], strides = [1, 1]} : vector<2x128xf32> to vector<2x32xf32>
    %219 = arith.negf %218 : vector<2x32xf32>
    %220 = math.exp %219 : vector<2x32xf32>
    %cst_40 = arith.constant 1.000000e+00 : f32
    %221 = vector.broadcast %cst_40 : f32 to vector<2x32xf32>
    %222 = arith.addf %221, %220 : vector<2x32xf32>
    %223 = arith.divf %221, %222 : vector<2x32xf32>
    %224 = vector.extract_strided_slice %217 {offsets = [0, 32], sizes = [2, 32], strides = [1, 1]} : vector<2x128xf32> to vector<2x32xf32>
    %225 = arith.negf %224 : vector<2x32xf32>
    %226 = math.exp %225 : vector<2x32xf32>
    %cst_41 = arith.constant 1.000000e+00 : f32
    %227 = vector.broadcast %cst_41 : f32 to vector<2x32xf32>
    %228 = arith.addf %227, %226 : vector<2x32xf32>
    %229 = arith.divf %227, %228 : vector<2x32xf32>
    %230 = vector.extract_strided_slice %217 {offsets = [0, 64], sizes = [2, 32], strides = [1, 1]} : vector<2x128xf32> to vector<2x32xf32>
    %231 = math.tanh %230 : vector<2x32xf32>
    %232 = vector.extract_strided_slice %217 {offsets = [0, 96], sizes = [2, 32], strides = [1, 1]} : vector<2x128xf32> to vector<2x32xf32>
    %233 = arith.negf %232 : vector<2x32xf32>
    %234 = math.exp %233 : vector<2x32xf32>
    %cst_42 = arith.constant 1.000000e+00 : f32
    %235 = vector.broadcast %cst_42 : f32 to vector<2x32xf32>
    %236 = arith.addf %235, %234 : vector<2x32xf32>
    %237 = arith.divf %235, %236 : vector<2x32xf32>
    %238 = arith.mulf %229, %182 : vector<2x32xf32>
    %239 = arith.mulf %223, %231 : vector<2x32xf32>
    %240 = arith.addf %238, %239 : vector<2x32xf32>
    %241 = math.tanh %240 : vector<2x32xf32>
    %242 = arith.mulf %237, %241 : vector<2x32xf32>
    %243 = vector.extract_strided_slice %7 {offsets = [0, 4, 0], sizes = [2, 1, 128], strides = [1, 1, 1]} : vector<2x12x256xf32> to vector<2x1x128xf32>
    %244 = vector.shape_cast %243 : vector<2x1x128xf32> to vector<2x128xf32>
    %cst_43 = arith.constant dense<0.000000e+00> : vector<2x128xf32>
    %245 = tpu.matmul %213, %8, %cst_43 {dimension_numbers = #tpu.dot_dimension_numbers<[1], [0], [0], [1], [0, 0, 1, 1], [], []>} : vector<2x32xf32>, vector<32x128xf32>, vector<2x128xf32> -> vector<2x128xf32>
    %246 = arith.addf %244, %245 : vector<2x128xf32>
    %247 = vector.extract_strided_slice %246 {offsets = [0, 0], sizes = [2, 32], strides = [1, 1]} : vector<2x128xf32> to vector<2x32xf32>
    %248 = arith.negf %247 : vector<2x32xf32>
    %249 = math.exp %248 : vector<2x32xf32>
    %cst_44 = arith.constant 1.000000e+00 : f32
    %250 = vector.broadcast %cst_44 : f32 to vector<2x32xf32>
    %251 = arith.addf %250, %249 : vector<2x32xf32>
    %252 = arith.divf %250, %251 : vector<2x32xf32>
    %253 = vector.extract_strided_slice %246 {offsets = [0, 32], sizes = [2, 32], strides = [1, 1]} : vector<2x128xf32> to vector<2x32xf32>
    %254 = arith.negf %253 : vector<2x32xf32>
    %255 = math.exp %254 : vector<2x32xf32>
    %cst_45 = arith.constant 1.000000e+00 : f32
    %256 = vector.broadcast %cst_45 : f32 to vector<2x32xf32>
    %257 = arith.addf %256, %255 : vector<2x32xf32>
    %258 = arith.divf %256, %257 : vector<2x32xf32>
    %259 = vector.extract_strided_slice %246 {offsets = [0, 64], sizes = [2, 32], strides = [1, 1]} : vector<2x128xf32> to vector<2x32xf32>
    %260 = math.tanh %259 : vector<2x32xf32>
    %261 = vector.extract_strided_slice %246 {offsets = [0, 96], sizes = [2, 32], strides = [1, 1]} : vector<2x128xf32> to vector<2x32xf32>
    %262 = arith.negf %261 : vector<2x32xf32>
    %263 = math.exp %262 : vector<2x32xf32>
    %cst_46 = arith.constant 1.000000e+00 : f32
    %264 = vector.broadcast %cst_46 : f32 to vector<2x32xf32>
    %265 = arith.addf %264, %263 : vector<2x32xf32>
    %266 = arith.divf %264, %265 : vector<2x32xf32>
    %267 = arith.mulf %258, %211 : vector<2x32xf32>
    %268 = arith.mulf %252, %260 : vector<2x32xf32>
    %269 = arith.addf %267, %268 : vector<2x32xf32>
    %270 = math.tanh %269 : vector<2x32xf32>
    %271 = arith.mulf %266, %270 : vector<2x32xf32>
    %272 = vector.extract_strided_slice %7 {offsets = [0, 7, 128], sizes = [2, 1, 128], strides = [1, 1, 1]} : vector<2x12x256xf32> to vector<2x1x128xf32>
    %273 = vector.shape_cast %272 : vector<2x1x128xf32> to vector<2x128xf32>
    %cst_47 = arith.constant dense<0.000000e+00> : vector<2x128xf32>
    %274 = tpu.matmul %242, %9, %cst_47 {dimension_numbers = #tpu.dot_dimension_numbers<[1], [0], [0], [1], [0, 0, 1, 1], [], []>} : vector<2x32xf32>, vector<32x128xf32>, vector<2x128xf32> -> vector<2x128xf32>
    %275 = arith.addf %273, %274 : vector<2x128xf32>
    %276 = vector.extract_strided_slice %275 {offsets = [0, 0], sizes = [2, 32], strides = [1, 1]} : vector<2x128xf32> to vector<2x32xf32>
    %277 = arith.negf %276 : vector<2x32xf32>
    %278 = math.exp %277 : vector<2x32xf32>
    %cst_48 = arith.constant 1.000000e+00 : f32
    %279 = vector.broadcast %cst_48 : f32 to vector<2x32xf32>
    %280 = arith.addf %279, %278 : vector<2x32xf32>
    %281 = arith.divf %279, %280 : vector<2x32xf32>
    %282 = vector.extract_strided_slice %275 {offsets = [0, 32], sizes = [2, 32], strides = [1, 1]} : vector<2x128xf32> to vector<2x32xf32>
    %283 = arith.negf %282 : vector<2x32xf32>
    %284 = math.exp %283 : vector<2x32xf32>
    %cst_49 = arith.constant 1.000000e+00 : f32
    %285 = vector.broadcast %cst_49 : f32 to vector<2x32xf32>
    %286 = arith.addf %285, %284 : vector<2x32xf32>
    %287 = arith.divf %285, %286 : vector<2x32xf32>
    %288 = vector.extract_strided_slice %275 {offsets = [0, 64], sizes = [2, 32], strides = [1, 1]} : vector<2x128xf32> to vector<2x32xf32>
    %289 = math.tanh %288 : vector<2x32xf32>
    %290 = vector.extract_strided_slice %275 {offsets = [0, 96], sizes = [2, 32], strides = [1, 1]} : vector<2x128xf32> to vector<2x32xf32>
    %291 = arith.negf %290 : vector<2x32xf32>
    %292 = math.exp %291 : vector<2x32xf32>
    %cst_50 = arith.constant 1.000000e+00 : f32
    %293 = vector.broadcast %cst_50 : f32 to vector<2x32xf32>
    %294 = arith.addf %293, %292 : vector<2x32xf32>
    %295 = arith.divf %293, %294 : vector<2x32xf32>
    %296 = arith.mulf %287, %240 : vector<2x32xf32>
    %297 = arith.mulf %281, %289 : vector<2x32xf32>
    %298 = arith.addf %296, %297 : vector<2x32xf32>
    %299 = math.tanh %298 : vector<2x32xf32>
    %300 = arith.mulf %295, %299 : vector<2x32xf32>
    %301 = vector.extract_strided_slice %7 {offsets = [0, 5, 0], sizes = [2, 1, 128], strides = [1, 1, 1]} : vector<2x12x256xf32> to vector<2x1x128xf32>
    %302 = vector.shape_cast %301 : vector<2x1x128xf32> to vector<2x128xf32>
    %cst_51 = arith.constant dense<0.000000e+00> : vector<2x128xf32>
    %303 = tpu.matmul %271, %8, %cst_51 {dimension_numbers = #tpu.dot_dimension_numbers<[1], [0], [0], [1], [0, 0, 1, 1], [], []>} : vector<2x32xf32>, vector<32x128xf32>, vector<2x128xf32> -> vector<2x128xf32>
    %304 = arith.addf %302, %303 : vector<2x128xf32>
    %305 = vector.extract_strided_slice %304 {offsets = [0, 0], sizes = [2, 32], strides = [1, 1]} : vector<2x128xf32> to vector<2x32xf32>
    %306 = arith.negf %305 : vector<2x32xf32>
    %307 = math.exp %306 : vector<2x32xf32>
    %cst_52 = arith.constant 1.000000e+00 : f32
    %308 = vector.broadcast %cst_52 : f32 to vector<2x32xf32>
    %309 = arith.addf %308, %307 : vector<2x32xf32>
    %310 = arith.divf %308, %309 : vector<2x32xf32>
    %311 = vector.extract_strided_slice %304 {offsets = [0, 32], sizes = [2, 32], strides = [1, 1]} : vector<2x128xf32> to vector<2x32xf32>
    %312 = arith.negf %311 : vector<2x32xf32>
    %313 = math.exp %312 : vector<2x32xf32>
    %cst_53 = arith.constant 1.000000e+00 : f32
    %314 = vector.broadcast %cst_53 : f32 to vector<2x32xf32>
    %315 = arith.addf %314, %313 : vector<2x32xf32>
    %316 = arith.divf %314, %315 : vector<2x32xf32>
    %317 = vector.extract_strided_slice %304 {offsets = [0, 64], sizes = [2, 32], strides = [1, 1]} : vector<2x128xf32> to vector<2x32xf32>
    %318 = math.tanh %317 : vector<2x32xf32>
    %319 = vector.extract_strided_slice %304 {offsets = [0, 96], sizes = [2, 32], strides = [1, 1]} : vector<2x128xf32> to vector<2x32xf32>
    %320 = arith.negf %319 : vector<2x32xf32>
    %321 = math.exp %320 : vector<2x32xf32>
    %cst_54 = arith.constant 1.000000e+00 : f32
    %322 = vector.broadcast %cst_54 : f32 to vector<2x32xf32>
    %323 = arith.addf %322, %321 : vector<2x32xf32>
    %324 = arith.divf %322, %323 : vector<2x32xf32>
    %325 = arith.mulf %316, %269 : vector<2x32xf32>
    %326 = arith.mulf %310, %318 : vector<2x32xf32>
    %327 = arith.addf %325, %326 : vector<2x32xf32>
    %328 = math.tanh %327 : vector<2x32xf32>
    %329 = arith.mulf %324, %328 : vector<2x32xf32>
    %330 = vector.extract_strided_slice %7 {offsets = [0, 6, 128], sizes = [2, 1, 128], strides = [1, 1, 1]} : vector<2x12x256xf32> to vector<2x1x128xf32>
    %331 = vector.shape_cast %330 : vector<2x1x128xf32> to vector<2x128xf32>
    %cst_55 = arith.constant dense<0.000000e+00> : vector<2x128xf32>
    %332 = tpu.matmul %300, %9, %cst_55 {dimension_numbers = #tpu.dot_dimension_numbers<[1], [0], [0], [1], [0, 0, 1, 1], [], []>} : vector<2x32xf32>, vector<32x128xf32>, vector<2x128xf32> -> vector<2x128xf32>
    %333 = arith.addf %331, %332 : vector<2x128xf32>
    %334 = vector.extract_strided_slice %333 {offsets = [0, 0], sizes = [2, 32], strides = [1, 1]} : vector<2x128xf32> to vector<2x32xf32>
    %335 = arith.negf %334 : vector<2x32xf32>
    %336 = math.exp %335 : vector<2x32xf32>
    %cst_56 = arith.constant 1.000000e+00 : f32
    %337 = vector.broadcast %cst_56 : f32 to vector<2x32xf32>
    %338 = arith.addf %337, %336 : vector<2x32xf32>
    %339 = arith.divf %337, %338 : vector<2x32xf32>
    %340 = vector.extract_strided_slice %333 {offsets = [0, 32], sizes = [2, 32], strides = [1, 1]} : vector<2x128xf32> to vector<2x32xf32>
    %341 = arith.negf %340 : vector<2x32xf32>
    %342 = math.exp %341 : vector<2x32xf32>
    %cst_57 = arith.constant 1.000000e+00 : f32
    %343 = vector.broadcast %cst_57 : f32 to vector<2x32xf32>
    %344 = arith.addf %343, %342 : vector<2x32xf32>
    %345 = arith.divf %343, %344 : vector<2x32xf32>
    %346 = vector.extract_strided_slice %333 {offsets = [0, 64], sizes = [2, 32], strides = [1, 1]} : vector<2x128xf32> to vector<2x32xf32>
    %347 = math.tanh %346 : vector<2x32xf32>
    %348 = vector.extract_strided_slice %333 {offsets = [0, 96], sizes = [2, 32], strides = [1, 1]} : vector<2x128xf32> to vector<2x32xf32>
    %349 = arith.negf %348 : vector<2x32xf32>
    %350 = math.exp %349 : vector<2x32xf32>
    %cst_58 = arith.constant 1.000000e+00 : f32
    %351 = vector.broadcast %cst_58 : f32 to vector<2x32xf32>
    %352 = arith.addf %351, %350 : vector<2x32xf32>
    %353 = arith.divf %351, %352 : vector<2x32xf32>
    %354 = arith.mulf %345, %298 : vector<2x32xf32>
    %355 = arith.mulf %339, %347 : vector<2x32xf32>
    %356 = arith.addf %354, %355 : vector<2x32xf32>
    %357 = math.tanh %356 : vector<2x32xf32>
    %358 = arith.mulf %353, %357 : vector<2x32xf32>
    %359 = vector.extract_strided_slice %7 {offsets = [0, 6, 0], sizes = [2, 1, 128], strides = [1, 1, 1]} : vector<2x12x256xf32> to vector<2x1x128xf32>
    %360 = vector.shape_cast %359 : vector<2x1x128xf32> to vector<2x128xf32>
    %cst_59 = arith.constant dense<0.000000e+00> : vector<2x128xf32>
    %361 = tpu.matmul %329, %8, %cst_59 {dimension_numbers = #tpu.dot_dimension_numbers<[1], [0], [0], [1], [0, 0, 1, 1], [], []>} : vector<2x32xf32>, vector<32x128xf32>, vector<2x128xf32> -> vector<2x128xf32>
    %362 = arith.addf %360, %361 : vector<2x128xf32>
    %363 = vector.extract_strided_slice %362 {offsets = [0, 0], sizes = [2, 32], strides = [1, 1]} : vector<2x128xf32> to vector<2x32xf32>
    %364 = arith.negf %363 : vector<2x32xf32>
    %365 = math.exp %364 : vector<2x32xf32>
    %cst_60 = arith.constant 1.000000e+00 : f32
    %366 = vector.broadcast %cst_60 : f32 to vector<2x32xf32>
    %367 = arith.addf %366, %365 : vector<2x32xf32>
    %368 = arith.divf %366, %367 : vector<2x32xf32>
    %369 = vector.extract_strided_slice %362 {offsets = [0, 32], sizes = [2, 32], strides = [1, 1]} : vector<2x128xf32> to vector<2x32xf32>
    %370 = arith.negf %369 : vector<2x32xf32>
    %371 = math.exp %370 : vector<2x32xf32>
    %cst_61 = arith.constant 1.000000e+00 : f32
    %372 = vector.broadcast %cst_61 : f32 to vector<2x32xf32>
    %373 = arith.addf %372, %371 : vector<2x32xf32>
    %374 = arith.divf %372, %373 : vector<2x32xf32>
    %375 = vector.extract_strided_slice %362 {offsets = [0, 64], sizes = [2, 32], strides = [1, 1]} : vector<2x128xf32> to vector<2x32xf32>
    %376 = math.tanh %375 : vector<2x32xf32>
    %377 = vector.extract_strided_slice %362 {offsets = [0, 96], sizes = [2, 32], strides = [1, 1]} : vector<2x128xf32> to vector<2x32xf32>
    %378 = arith.negf %377 : vector<2x32xf32>
    %379 = math.exp %378 : vector<2x32xf32>
    %cst_62 = arith.constant 1.000000e+00 : f32
    %380 = vector.broadcast %cst_62 : f32 to vector<2x32xf32>
    %381 = arith.addf %380, %379 : vector<2x32xf32>
    %382 = arith.divf %380, %381 : vector<2x32xf32>
    %383 = arith.mulf %374, %327 : vector<2x32xf32>
    %384 = arith.mulf %368, %376 : vector<2x32xf32>
    %385 = arith.addf %383, %384 : vector<2x32xf32>
    %386 = math.tanh %385 : vector<2x32xf32>
    %387 = arith.mulf %382, %386 : vector<2x32xf32>
    %388 = vector.extract_strided_slice %7 {offsets = [0, 5, 128], sizes = [2, 1, 128], strides = [1, 1, 1]} : vector<2x12x256xf32> to vector<2x1x128xf32>
    %389 = vector.shape_cast %388 : vector<2x1x128xf32> to vector<2x128xf32>
    %cst_63 = arith.constant dense<0.000000e+00> : vector<2x128xf32>
    %390 = tpu.matmul %358, %9, %cst_63 {dimension_numbers = #tpu.dot_dimension_numbers<[1], [0], [0], [1], [0, 0, 1, 1], [], []>} : vector<2x32xf32>, vector<32x128xf32>, vector<2x128xf32> -> vector<2x128xf32>
    %391 = arith.addf %389, %390 : vector<2x128xf32>
    %392 = vector.extract_strided_slice %391 {offsets = [0, 0], sizes = [2, 32], strides = [1, 1]} : vector<2x128xf32> to vector<2x32xf32>
    %393 = arith.negf %392 : vector<2x32xf32>
    %394 = math.exp %393 : vector<2x32xf32>
    %cst_64 = arith.constant 1.000000e+00 : f32
    %395 = vector.broadcast %cst_64 : f32 to vector<2x32xf32>
    %396 = arith.addf %395, %394 : vector<2x32xf32>
    %397 = arith.divf %395, %396 : vector<2x32xf32>
    %398 = vector.extract_strided_slice %391 {offsets = [0, 32], sizes = [2, 32], strides = [1, 1]} : vector<2x128xf32> to vector<2x32xf32>
    %399 = arith.negf %398 : vector<2x32xf32>
    %400 = math.exp %399 : vector<2x32xf32>
    %cst_65 = arith.constant 1.000000e+00 : f32
    %401 = vector.broadcast %cst_65 : f32 to vector<2x32xf32>
    %402 = arith.addf %401, %400 : vector<2x32xf32>
    %403 = arith.divf %401, %402 : vector<2x32xf32>
    %404 = vector.extract_strided_slice %391 {offsets = [0, 64], sizes = [2, 32], strides = [1, 1]} : vector<2x128xf32> to vector<2x32xf32>
    %405 = math.tanh %404 : vector<2x32xf32>
    %406 = vector.extract_strided_slice %391 {offsets = [0, 96], sizes = [2, 32], strides = [1, 1]} : vector<2x128xf32> to vector<2x32xf32>
    %407 = arith.negf %406 : vector<2x32xf32>
    %408 = math.exp %407 : vector<2x32xf32>
    %cst_66 = arith.constant 1.000000e+00 : f32
    %409 = vector.broadcast %cst_66 : f32 to vector<2x32xf32>
    %410 = arith.addf %409, %408 : vector<2x32xf32>
    %411 = arith.divf %409, %410 : vector<2x32xf32>
    %412 = arith.mulf %403, %356 : vector<2x32xf32>
    %413 = arith.mulf %397, %405 : vector<2x32xf32>
    %414 = arith.addf %412, %413 : vector<2x32xf32>
    %415 = math.tanh %414 : vector<2x32xf32>
    %416 = arith.mulf %411, %415 : vector<2x32xf32>
    %417 = vector.extract_strided_slice %7 {offsets = [0, 7, 0], sizes = [2, 1, 128], strides = [1, 1, 1]} : vector<2x12x256xf32> to vector<2x1x128xf32>
    %418 = vector.shape_cast %417 : vector<2x1x128xf32> to vector<2x128xf32>
    %cst_67 = arith.constant dense<0.000000e+00> : vector<2x128xf32>
    %419 = tpu.matmul %387, %8, %cst_67 {dimension_numbers = #tpu.dot_dimension_numbers<[1], [0], [0], [1], [0, 0, 1, 1], [], []>} : vector<2x32xf32>, vector<32x128xf32>, vector<2x128xf32> -> vector<2x128xf32>
    %420 = arith.addf %418, %419 : vector<2x128xf32>
    %421 = vector.extract_strided_slice %420 {offsets = [0, 0], sizes = [2, 32], strides = [1, 1]} : vector<2x128xf32> to vector<2x32xf32>
    %422 = arith.negf %421 : vector<2x32xf32>
    %423 = math.exp %422 : vector<2x32xf32>
    %cst_68 = arith.constant 1.000000e+00 : f32
    %424 = vector.broadcast %cst_68 : f32 to vector<2x32xf32>
    %425 = arith.addf %424, %423 : vector<2x32xf32>
    %426 = arith.divf %424, %425 : vector<2x32xf32>
    %427 = vector.extract_strided_slice %420 {offsets = [0, 32], sizes = [2, 32], strides = [1, 1]} : vector<2x128xf32> to vector<2x32xf32>
    %428 = arith.negf %427 : vector<2x32xf32>
    %429 = math.exp %428 : vector<2x32xf32>
    %cst_69 = arith.constant 1.000000e+00 : f32
    %430 = vector.broadcast %cst_69 : f32 to vector<2x32xf32>
    %431 = arith.addf %430, %429 : vector<2x32xf32>
    %432 = arith.divf %430, %431 : vector<2x32xf32>
    %433 = vector.extract_strided_slice %420 {offsets = [0, 64], sizes = [2, 32], strides = [1, 1]} : vector<2x128xf32> to vector<2x32xf32>
    %434 = math.tanh %433 : vector<2x32xf32>
    %435 = vector.extract_strided_slice %420 {offsets = [0, 96], sizes = [2, 32], strides = [1, 1]} : vector<2x128xf32> to vector<2x32xf32>
    %436 = arith.negf %435 : vector<2x32xf32>
    %437 = math.exp %436 : vector<2x32xf32>
    %cst_70 = arith.constant 1.000000e+00 : f32
    %438 = vector.broadcast %cst_70 : f32 to vector<2x32xf32>
    %439 = arith.addf %438, %437 : vector<2x32xf32>
    %440 = arith.divf %438, %439 : vector<2x32xf32>
    %441 = arith.mulf %432, %385 : vector<2x32xf32>
    %442 = arith.mulf %426, %434 : vector<2x32xf32>
    %443 = arith.addf %441, %442 : vector<2x32xf32>
    %444 = math.tanh %443 : vector<2x32xf32>
    %445 = arith.mulf %440, %444 : vector<2x32xf32>
    %446 = vector.extract_strided_slice %7 {offsets = [0, 4, 128], sizes = [2, 1, 128], strides = [1, 1, 1]} : vector<2x12x256xf32> to vector<2x1x128xf32>
    %447 = vector.shape_cast %446 : vector<2x1x128xf32> to vector<2x128xf32>
    %cst_71 = arith.constant dense<0.000000e+00> : vector<2x128xf32>
    %448 = tpu.matmul %416, %9, %cst_71 {dimension_numbers = #tpu.dot_dimension_numbers<[1], [0], [0], [1], [0, 0, 1, 1], [], []>} : vector<2x32xf32>, vector<32x128xf32>, vector<2x128xf32> -> vector<2x128xf32>
    %449 = arith.addf %447, %448 : vector<2x128xf32>
    %450 = vector.extract_strided_slice %449 {offsets = [0, 0], sizes = [2, 32], strides = [1, 1]} : vector<2x128xf32> to vector<2x32xf32>
    %451 = arith.negf %450 : vector<2x32xf32>
    %452 = math.exp %451 : vector<2x32xf32>
    %cst_72 = arith.constant 1.000000e+00 : f32
    %453 = vector.broadcast %cst_72 : f32 to vector<2x32xf32>
    %454 = arith.addf %453, %452 : vector<2x32xf32>
    %455 = arith.divf %453, %454 : vector<2x32xf32>
    %456 = vector.extract_strided_slice %449 {offsets = [0, 32], sizes = [2, 32], strides = [1, 1]} : vector<2x128xf32> to vector<2x32xf32>
    %457 = arith.negf %456 : vector<2x32xf32>
    %458 = math.exp %457 : vector<2x32xf32>
    %cst_73 = arith.constant 1.000000e+00 : f32
    %459 = vector.broadcast %cst_73 : f32 to vector<2x32xf32>
    %460 = arith.addf %459, %458 : vector<2x32xf32>
    %461 = arith.divf %459, %460 : vector<2x32xf32>
    %462 = vector.extract_strided_slice %449 {offsets = [0, 64], sizes = [2, 32], strides = [1, 1]} : vector<2x128xf32> to vector<2x32xf32>
    %463 = math.tanh %462 : vector<2x32xf32>
    %464 = vector.extract_strided_slice %449 {offsets = [0, 96], sizes = [2, 32], strides = [1, 1]} : vector<2x128xf32> to vector<2x32xf32>
    %465 = arith.negf %464 : vector<2x32xf32>
    %466 = math.exp %465 : vector<2x32xf32>
    %cst_74 = arith.constant 1.000000e+00 : f32
    %467 = vector.broadcast %cst_74 : f32 to vector<2x32xf32>
    %468 = arith.addf %467, %466 : vector<2x32xf32>
    %469 = arith.divf %467, %468 : vector<2x32xf32>
    %470 = arith.mulf %461, %414 : vector<2x32xf32>
    %471 = arith.mulf %455, %463 : vector<2x32xf32>
    %472 = arith.addf %470, %471 : vector<2x32xf32>
    %473 = math.tanh %472 : vector<2x32xf32>
    %474 = arith.mulf %469, %473 : vector<2x32xf32>
    %475 = vector.extract_strided_slice %7 {offsets = [0, 8, 0], sizes = [2, 1, 128], strides = [1, 1, 1]} : vector<2x12x256xf32> to vector<2x1x128xf32>
    %476 = vector.shape_cast %475 : vector<2x1x128xf32> to vector<2x128xf32>
    %cst_75 = arith.constant dense<0.000000e+00> : vector<2x128xf32>
    %477 = tpu.matmul %445, %8, %cst_75 {dimension_numbers = #tpu.dot_dimension_numbers<[1], [0], [0], [1], [0, 0, 1, 1], [], []>} : vector<2x32xf32>, vector<32x128xf32>, vector<2x128xf32> -> vector<2x128xf32>
    %478 = arith.addf %476, %477 : vector<2x128xf32>
    %479 = vector.extract_strided_slice %478 {offsets = [0, 0], sizes = [2, 32], strides = [1, 1]} : vector<2x128xf32> to vector<2x32xf32>
    %480 = arith.negf %479 : vector<2x32xf32>
    %481 = math.exp %480 : vector<2x32xf32>
    %cst_76 = arith.constant 1.000000e+00 : f32
    %482 = vector.broadcast %cst_76 : f32 to vector<2x32xf32>
    %483 = arith.addf %482, %481 : vector<2x32xf32>
    %484 = arith.divf %482, %483 : vector<2x32xf32>
    %485 = vector.extract_strided_slice %478 {offsets = [0, 32], sizes = [2, 32], strides = [1, 1]} : vector<2x128xf32> to vector<2x32xf32>
    %486 = arith.negf %485 : vector<2x32xf32>
    %487 = math.exp %486 : vector<2x32xf32>
    %cst_77 = arith.constant 1.000000e+00 : f32
    %488 = vector.broadcast %cst_77 : f32 to vector<2x32xf32>
    %489 = arith.addf %488, %487 : vector<2x32xf32>
    %490 = arith.divf %488, %489 : vector<2x32xf32>
    %491 = vector.extract_strided_slice %478 {offsets = [0, 64], sizes = [2, 32], strides = [1, 1]} : vector<2x128xf32> to vector<2x32xf32>
    %492 = math.tanh %491 : vector<2x32xf32>
    %493 = vector.extract_strided_slice %478 {offsets = [0, 96], sizes = [2, 32], strides = [1, 1]} : vector<2x128xf32> to vector<2x32xf32>
    %494 = arith.negf %493 : vector<2x32xf32>
    %495 = math.exp %494 : vector<2x32xf32>
    %cst_78 = arith.constant 1.000000e+00 : f32
    %496 = vector.broadcast %cst_78 : f32 to vector<2x32xf32>
    %497 = arith.addf %496, %495 : vector<2x32xf32>
    %498 = arith.divf %496, %497 : vector<2x32xf32>
    %499 = arith.mulf %490, %443 : vector<2x32xf32>
    %500 = arith.mulf %484, %492 : vector<2x32xf32>
    %501 = arith.addf %499, %500 : vector<2x32xf32>
    %502 = math.tanh %501 : vector<2x32xf32>
    %503 = arith.mulf %498, %502 : vector<2x32xf32>
    %504 = vector.extract_strided_slice %7 {offsets = [0, 3, 128], sizes = [2, 1, 128], strides = [1, 1, 1]} : vector<2x12x256xf32> to vector<2x1x128xf32>
    %505 = vector.shape_cast %504 : vector<2x1x128xf32> to vector<2x128xf32>
    %cst_79 = arith.constant dense<0.000000e+00> : vector<2x128xf32>
    %506 = tpu.matmul %474, %9, %cst_79 {dimension_numbers = #tpu.dot_dimension_numbers<[1], [0], [0], [1], [0, 0, 1, 1], [], []>} : vector<2x32xf32>, vector<32x128xf32>, vector<2x128xf32> -> vector<2x128xf32>
    %507 = arith.addf %505, %506 : vector<2x128xf32>
    %508 = vector.extract_strided_slice %507 {offsets = [0, 0], sizes = [2, 32], strides = [1, 1]} : vector<2x128xf32> to vector<2x32xf32>
    %509 = arith.negf %508 : vector<2x32xf32>
    %510 = math.exp %509 : vector<2x32xf32>
    %cst_80 = arith.constant 1.000000e+00 : f32
    %511 = vector.broadcast %cst_80 : f32 to vector<2x32xf32>
    %512 = arith.addf %511, %510 : vector<2x32xf32>
    %513 = arith.divf %511, %512 : vector<2x32xf32>
    %514 = vector.extract_strided_slice %507 {offsets = [0, 32], sizes = [2, 32], strides = [1, 1]} : vector<2x128xf32> to vector<2x32xf32>
    %515 = arith.negf %514 : vector<2x32xf32>
    %516 = math.exp %515 : vector<2x32xf32>
    %cst_81 = arith.constant 1.000000e+00 : f32
    %517 = vector.broadcast %cst_81 : f32 to vector<2x32xf32>
    %518 = arith.addf %517, %516 : vector<2x32xf32>
    %519 = arith.divf %517, %518 : vector<2x32xf32>
    %520 = vector.extract_strided_slice %507 {offsets = [0, 64], sizes = [2, 32], strides = [1, 1]} : vector<2x128xf32> to vector<2x32xf32>
    %521 = math.tanh %520 : vector<2x32xf32>
    %522 = vector.extract_strided_slice %507 {offsets = [0, 96], sizes = [2, 32], strides = [1, 1]} : vector<2x128xf32> to vector<2x32xf32>
    %523 = arith.negf %522 : vector<2x32xf32>
    %524 = math.exp %523 : vector<2x32xf32>
    %cst_82 = arith.constant 1.000000e+00 : f32
    %525 = vector.broadcast %cst_82 : f32 to vector<2x32xf32>
    %526 = arith.addf %525, %524 : vector<2x32xf32>
    %527 = arith.divf %525, %526 : vector<2x32xf32>
    %528 = arith.mulf %519, %472 : vector<2x32xf32>
    %529 = arith.mulf %513, %521 : vector<2x32xf32>
    %530 = arith.addf %528, %529 : vector<2x32xf32>
    %531 = math.tanh %530 : vector<2x32xf32>
    %532 = arith.mulf %527, %531 : vector<2x32xf32>
    %533 = vector.extract_strided_slice %7 {offsets = [0, 9, 0], sizes = [2, 1, 128], strides = [1, 1, 1]} : vector<2x12x256xf32> to vector<2x1x128xf32>
    %534 = vector.shape_cast %533 : vector<2x1x128xf32> to vector<2x128xf32>
    %cst_83 = arith.constant dense<0.000000e+00> : vector<2x128xf32>
    %535 = tpu.matmul %503, %8, %cst_83 {dimension_numbers = #tpu.dot_dimension_numbers<[1], [0], [0], [1], [0, 0, 1, 1], [], []>} : vector<2x32xf32>, vector<32x128xf32>, vector<2x128xf32> -> vector<2x128xf32>
    %536 = arith.addf %534, %535 : vector<2x128xf32>
    %537 = vector.extract_strided_slice %536 {offsets = [0, 0], sizes = [2, 32], strides = [1, 1]} : vector<2x128xf32> to vector<2x32xf32>
    %538 = arith.negf %537 : vector<2x32xf32>
    %539 = math.exp %538 : vector<2x32xf32>
    %cst_84 = arith.constant 1.000000e+00 : f32
    %540 = vector.broadcast %cst_84 : f32 to vector<2x32xf32>
    %541 = arith.addf %540, %539 : vector<2x32xf32>
    %542 = arith.divf %540, %541 : vector<2x32xf32>
    %543 = vector.extract_strided_slice %536 {offsets = [0, 32], sizes = [2, 32], strides = [1, 1]} : vector<2x128xf32> to vector<2x32xf32>
    %544 = arith.negf %543 : vector<2x32xf32>
    %545 = math.exp %544 : vector<2x32xf32>
    %cst_85 = arith.constant 1.000000e+00 : f32
    %546 = vector.broadcast %cst_85 : f32 to vector<2x32xf32>
    %547 = arith.addf %546, %545 : vector<2x32xf32>
    %548 = arith.divf %546, %547 : vector<2x32xf32>
    %549 = vector.extract_strided_slice %536 {offsets = [0, 64], sizes = [2, 32], strides = [1, 1]} : vector<2x128xf32> to vector<2x32xf32>
    %550 = math.tanh %549 : vector<2x32xf32>
    %551 = vector.extract_strided_slice %536 {offsets = [0, 96], sizes = [2, 32], strides = [1, 1]} : vector<2x128xf32> to vector<2x32xf32>
    %552 = arith.negf %551 : vector<2x32xf32>
    %553 = math.exp %552 : vector<2x32xf32>
    %cst_86 = arith.constant 1.000000e+00 : f32
    %554 = vector.broadcast %cst_86 : f32 to vector<2x32xf32>
    %555 = arith.addf %554, %553 : vector<2x32xf32>
    %556 = arith.divf %554, %555 : vector<2x32xf32>
    %557 = arith.mulf %548, %501 : vector<2x32xf32>
    %558 = arith.mulf %542, %550 : vector<2x32xf32>
    %559 = arith.addf %557, %558 : vector<2x32xf32>
    %560 = math.tanh %559 : vector<2x32xf32>
    %561 = arith.mulf %556, %560 : vector<2x32xf32>
    %562 = vector.extract_strided_slice %7 {offsets = [0, 2, 128], sizes = [2, 1, 128], strides = [1, 1, 1]} : vector<2x12x256xf32> to vector<2x1x128xf32>
    %563 = vector.shape_cast %562 : vector<2x1x128xf32> to vector<2x128xf32>
    %cst_87 = arith.constant dense<0.000000e+00> : vector<2x128xf32>
    %564 = tpu.matmul %532, %9, %cst_87 {dimension_numbers = #tpu.dot_dimension_numbers<[1], [0], [0], [1], [0, 0, 1, 1], [], []>} : vector<2x32xf32>, vector<32x128xf32>, vector<2x128xf32> -> vector<2x128xf32>
    %565 = arith.addf %563, %564 : vector<2x128xf32>
    %566 = vector.extract_strided_slice %565 {offsets = [0, 0], sizes = [2, 32], strides = [1, 1]} : vector<2x128xf32> to vector<2x32xf32>
    %567 = arith.negf %566 : vector<2x32xf32>
    %568 = math.exp %567 : vector<2x32xf32>
    %cst_88 = arith.constant 1.000000e+00 : f32
    %569 = vector.broadcast %cst_88 : f32 to vector<2x32xf32>
    %570 = arith.addf %569, %568 : vector<2x32xf32>
    %571 = arith.divf %569, %570 : vector<2x32xf32>
    %572 = vector.extract_strided_slice %565 {offsets = [0, 32], sizes = [2, 32], strides = [1, 1]} : vector<2x128xf32> to vector<2x32xf32>
    %573 = arith.negf %572 : vector<2x32xf32>
    %574 = math.exp %573 : vector<2x32xf32>
    %cst_89 = arith.constant 1.000000e+00 : f32
    %575 = vector.broadcast %cst_89 : f32 to vector<2x32xf32>
    %576 = arith.addf %575, %574 : vector<2x32xf32>
    %577 = arith.divf %575, %576 : vector<2x32xf32>
    %578 = vector.extract_strided_slice %565 {offsets = [0, 64], sizes = [2, 32], strides = [1, 1]} : vector<2x128xf32> to vector<2x32xf32>
    %579 = math.tanh %578 : vector<2x32xf32>
    %580 = vector.extract_strided_slice %565 {offsets = [0, 96], sizes = [2, 32], strides = [1, 1]} : vector<2x128xf32> to vector<2x32xf32>
    %581 = arith.negf %580 : vector<2x32xf32>
    %582 = math.exp %581 : vector<2x32xf32>
    %cst_90 = arith.constant 1.000000e+00 : f32
    %583 = vector.broadcast %cst_90 : f32 to vector<2x32xf32>
    %584 = arith.addf %583, %582 : vector<2x32xf32>
    %585 = arith.divf %583, %584 : vector<2x32xf32>
    %586 = arith.mulf %577, %530 : vector<2x32xf32>
    %587 = arith.mulf %571, %579 : vector<2x32xf32>
    %588 = arith.addf %586, %587 : vector<2x32xf32>
    %589 = math.tanh %588 : vector<2x32xf32>
    %590 = arith.mulf %585, %589 : vector<2x32xf32>
    %591 = vector.extract_strided_slice %7 {offsets = [0, 10, 0], sizes = [2, 1, 128], strides = [1, 1, 1]} : vector<2x12x256xf32> to vector<2x1x128xf32>
    %592 = vector.shape_cast %591 : vector<2x1x128xf32> to vector<2x128xf32>
    %cst_91 = arith.constant dense<0.000000e+00> : vector<2x128xf32>
    %593 = tpu.matmul %561, %8, %cst_91 {dimension_numbers = #tpu.dot_dimension_numbers<[1], [0], [0], [1], [0, 0, 1, 1], [], []>} : vector<2x32xf32>, vector<32x128xf32>, vector<2x128xf32> -> vector<2x128xf32>
    %594 = arith.addf %592, %593 : vector<2x128xf32>
    %595 = vector.extract_strided_slice %594 {offsets = [0, 0], sizes = [2, 32], strides = [1, 1]} : vector<2x128xf32> to vector<2x32xf32>
    %596 = arith.negf %595 : vector<2x32xf32>
    %597 = math.exp %596 : vector<2x32xf32>
    %cst_92 = arith.constant 1.000000e+00 : f32
    %598 = vector.broadcast %cst_92 : f32 to vector<2x32xf32>
    %599 = arith.addf %598, %597 : vector<2x32xf32>
    %600 = arith.divf %598, %599 : vector<2x32xf32>
    %601 = vector.extract_strided_slice %594 {offsets = [0, 32], sizes = [2, 32], strides = [1, 1]} : vector<2x128xf32> to vector<2x32xf32>
    %602 = arith.negf %601 : vector<2x32xf32>
    %603 = math.exp %602 : vector<2x32xf32>
    %cst_93 = arith.constant 1.000000e+00 : f32
    %604 = vector.broadcast %cst_93 : f32 to vector<2x32xf32>
    %605 = arith.addf %604, %603 : vector<2x32xf32>
    %606 = arith.divf %604, %605 : vector<2x32xf32>
    %607 = vector.extract_strided_slice %594 {offsets = [0, 64], sizes = [2, 32], strides = [1, 1]} : vector<2x128xf32> to vector<2x32xf32>
    %608 = math.tanh %607 : vector<2x32xf32>
    %609 = vector.extract_strided_slice %594 {offsets = [0, 96], sizes = [2, 32], strides = [1, 1]} : vector<2x128xf32> to vector<2x32xf32>
    %610 = arith.negf %609 : vector<2x32xf32>
    %611 = math.exp %610 : vector<2x32xf32>
    %cst_94 = arith.constant 1.000000e+00 : f32
    %612 = vector.broadcast %cst_94 : f32 to vector<2x32xf32>
    %613 = arith.addf %612, %611 : vector<2x32xf32>
    %614 = arith.divf %612, %613 : vector<2x32xf32>
    %615 = arith.mulf %606, %559 : vector<2x32xf32>
    %616 = arith.mulf %600, %608 : vector<2x32xf32>
    %617 = arith.addf %615, %616 : vector<2x32xf32>
    %618 = math.tanh %617 : vector<2x32xf32>
    %619 = arith.mulf %614, %618 : vector<2x32xf32>
    %620 = vector.extract_strided_slice %7 {offsets = [0, 1, 128], sizes = [2, 1, 128], strides = [1, 1, 1]} : vector<2x12x256xf32> to vector<2x1x128xf32>
    %621 = vector.shape_cast %620 : vector<2x1x128xf32> to vector<2x128xf32>
    %cst_95 = arith.constant dense<0.000000e+00> : vector<2x128xf32>
    %622 = tpu.matmul %590, %9, %cst_95 {dimension_numbers = #tpu.dot_dimension_numbers<[1], [0], [0], [1], [0, 0, 1, 1], [], []>} : vector<2x32xf32>, vector<32x128xf32>, vector<2x128xf32> -> vector<2x128xf32>
    %623 = arith.addf %621, %622 : vector<2x128xf32>
    %624 = vector.extract_strided_slice %623 {offsets = [0, 0], sizes = [2, 32], strides = [1, 1]} : vector<2x128xf32> to vector<2x32xf32>
    %625 = arith.negf %624 : vector<2x32xf32>
    %626 = math.exp %625 : vector<2x32xf32>
    %cst_96 = arith.constant 1.000000e+00 : f32
    %627 = vector.broadcast %cst_96 : f32 to vector<2x32xf32>
    %628 = arith.addf %627, %626 : vector<2x32xf32>
    %629 = arith.divf %627, %628 : vector<2x32xf32>
    %630 = vector.extract_strided_slice %623 {offsets = [0, 32], sizes = [2, 32], strides = [1, 1]} : vector<2x128xf32> to vector<2x32xf32>
    %631 = arith.negf %630 : vector<2x32xf32>
    %632 = math.exp %631 : vector<2x32xf32>
    %cst_97 = arith.constant 1.000000e+00 : f32
    %633 = vector.broadcast %cst_97 : f32 to vector<2x32xf32>
    %634 = arith.addf %633, %632 : vector<2x32xf32>
    %635 = arith.divf %633, %634 : vector<2x32xf32>
    %636 = vector.extract_strided_slice %623 {offsets = [0, 64], sizes = [2, 32], strides = [1, 1]} : vector<2x128xf32> to vector<2x32xf32>
    %637 = math.tanh %636 : vector<2x32xf32>
    %638 = vector.extract_strided_slice %623 {offsets = [0, 96], sizes = [2, 32], strides = [1, 1]} : vector<2x128xf32> to vector<2x32xf32>
    %639 = arith.negf %638 : vector<2x32xf32>
    %640 = math.exp %639 : vector<2x32xf32>
    %cst_98 = arith.constant 1.000000e+00 : f32
    %641 = vector.broadcast %cst_98 : f32 to vector<2x32xf32>
    %642 = arith.addf %641, %640 : vector<2x32xf32>
    %643 = arith.divf %641, %642 : vector<2x32xf32>
    %644 = arith.mulf %635, %588 : vector<2x32xf32>
    %645 = arith.mulf %629, %637 : vector<2x32xf32>
    %646 = arith.addf %644, %645 : vector<2x32xf32>
    %647 = math.tanh %646 : vector<2x32xf32>
    %648 = arith.mulf %643, %647 : vector<2x32xf32>
    %649 = vector.extract_strided_slice %7 {offsets = [0, 11, 0], sizes = [2, 1, 128], strides = [1, 1, 1]} : vector<2x12x256xf32> to vector<2x1x128xf32>
    %650 = vector.shape_cast %649 : vector<2x1x128xf32> to vector<2x128xf32>
    %cst_99 = arith.constant dense<0.000000e+00> : vector<2x128xf32>
    %651 = tpu.matmul %619, %8, %cst_99 {dimension_numbers = #tpu.dot_dimension_numbers<[1], [0], [0], [1], [0, 0, 1, 1], [], []>} : vector<2x32xf32>, vector<32x128xf32>, vector<2x128xf32> -> vector<2x128xf32>
    %652 = arith.addf %650, %651 : vector<2x128xf32>
    %653 = vector.extract_strided_slice %652 {offsets = [0, 0], sizes = [2, 32], strides = [1, 1]} : vector<2x128xf32> to vector<2x32xf32>
    %654 = arith.negf %653 : vector<2x32xf32>
    %655 = math.exp %654 : vector<2x32xf32>
    %cst_100 = arith.constant 1.000000e+00 : f32
    %656 = vector.broadcast %cst_100 : f32 to vector<2x32xf32>
    %657 = arith.addf %656, %655 : vector<2x32xf32>
    %658 = arith.divf %656, %657 : vector<2x32xf32>
    %659 = vector.extract_strided_slice %652 {offsets = [0, 32], sizes = [2, 32], strides = [1, 1]} : vector<2x128xf32> to vector<2x32xf32>
    %660 = arith.negf %659 : vector<2x32xf32>
    %661 = math.exp %660 : vector<2x32xf32>
    %cst_101 = arith.constant 1.000000e+00 : f32
    %662 = vector.broadcast %cst_101 : f32 to vector<2x32xf32>
    %663 = arith.addf %662, %661 : vector<2x32xf32>
    %664 = arith.divf %662, %663 : vector<2x32xf32>
    %665 = vector.extract_strided_slice %652 {offsets = [0, 64], sizes = [2, 32], strides = [1, 1]} : vector<2x128xf32> to vector<2x32xf32>
    %666 = math.tanh %665 : vector<2x32xf32>
    %667 = vector.extract_strided_slice %652 {offsets = [0, 96], sizes = [2, 32], strides = [1, 1]} : vector<2x128xf32> to vector<2x32xf32>
    %668 = arith.negf %667 : vector<2x32xf32>
    %669 = math.exp %668 : vector<2x32xf32>
    %cst_102 = arith.constant 1.000000e+00 : f32
    %670 = vector.broadcast %cst_102 : f32 to vector<2x32xf32>
    %671 = arith.addf %670, %669 : vector<2x32xf32>
    %672 = arith.divf %670, %671 : vector<2x32xf32>
    %673 = arith.mulf %664, %617 : vector<2x32xf32>
    %674 = arith.mulf %658, %666 : vector<2x32xf32>
    %675 = arith.addf %673, %674 : vector<2x32xf32>
    %676 = math.tanh %675 : vector<2x32xf32>
    %677 = arith.mulf %672, %676 : vector<2x32xf32>
    %678 = vector.extract_strided_slice %7 {offsets = [0, 0, 128], sizes = [2, 1, 128], strides = [1, 1, 1]} : vector<2x12x256xf32> to vector<2x1x128xf32>
    %679 = vector.shape_cast %678 : vector<2x1x128xf32> to vector<2x128xf32>
    %cst_103 = arith.constant dense<0.000000e+00> : vector<2x128xf32>
    %680 = tpu.matmul %648, %9, %cst_103 {dimension_numbers = #tpu.dot_dimension_numbers<[1], [0], [0], [1], [0, 0, 1, 1], [], []>} : vector<2x32xf32>, vector<32x128xf32>, vector<2x128xf32> -> vector<2x128xf32>
    %681 = arith.addf %679, %680 : vector<2x128xf32>
    %682 = vector.extract_strided_slice %681 {offsets = [0, 0], sizes = [2, 32], strides = [1, 1]} : vector<2x128xf32> to vector<2x32xf32>
    %683 = arith.negf %682 : vector<2x32xf32>
    %684 = math.exp %683 : vector<2x32xf32>
    %cst_104 = arith.constant 1.000000e+00 : f32
    %685 = vector.broadcast %cst_104 : f32 to vector<2x32xf32>
    %686 = arith.addf %685, %684 : vector<2x32xf32>
    %687 = arith.divf %685, %686 : vector<2x32xf32>
    %688 = vector.extract_strided_slice %681 {offsets = [0, 32], sizes = [2, 32], strides = [1, 1]} : vector<2x128xf32> to vector<2x32xf32>
    %689 = arith.negf %688 : vector<2x32xf32>
    %690 = math.exp %689 : vector<2x32xf32>
    %cst_105 = arith.constant 1.000000e+00 : f32
    %691 = vector.broadcast %cst_105 : f32 to vector<2x32xf32>
    %692 = arith.addf %691, %690 : vector<2x32xf32>
    %693 = arith.divf %691, %692 : vector<2x32xf32>
    %694 = vector.extract_strided_slice %681 {offsets = [0, 64], sizes = [2, 32], strides = [1, 1]} : vector<2x128xf32> to vector<2x32xf32>
    %695 = math.tanh %694 : vector<2x32xf32>
    %696 = vector.extract_strided_slice %681 {offsets = [0, 96], sizes = [2, 32], strides = [1, 1]} : vector<2x128xf32> to vector<2x32xf32>
    %697 = arith.negf %696 : vector<2x32xf32>
    %698 = math.exp %697 : vector<2x32xf32>
    %cst_106 = arith.constant 1.000000e+00 : f32
    %699 = vector.broadcast %cst_106 : f32 to vector<2x32xf32>
    %700 = arith.addf %699, %698 : vector<2x32xf32>
    %701 = arith.divf %699, %700 : vector<2x32xf32>
    %702 = arith.mulf %693, %646 : vector<2x32xf32>
    %703 = arith.mulf %687, %695 : vector<2x32xf32>
    %704 = arith.addf %702, %703 : vector<2x32xf32>
    %705 = math.tanh %704 : vector<2x32xf32>
    %706 = arith.mulf %701, %705 : vector<2x32xf32>
    %707 = vector.shape_cast %39 : vector<2x32xf32> to vector<2x1x32xf32>
    %708 = vector.shape_cast %97 : vector<2x32xf32> to vector<2x1x32xf32>
    %709 = vector.shape_cast %155 : vector<2x32xf32> to vector<2x1x32xf32>
    %710 = vector.shape_cast %213 : vector<2x32xf32> to vector<2x1x32xf32>
    %711 = vector.shape_cast %271 : vector<2x32xf32> to vector<2x1x32xf32>
    %712 = vector.shape_cast %329 : vector<2x32xf32> to vector<2x1x32xf32>
    %713 = vector.shape_cast %387 : vector<2x32xf32> to vector<2x1x32xf32>
    %714 = vector.shape_cast %445 : vector<2x32xf32> to vector<2x1x32xf32>
    %715 = vector.shape_cast %503 : vector<2x32xf32> to vector<2x1x32xf32>
    %716 = vector.shape_cast %561 : vector<2x32xf32> to vector<2x1x32xf32>
    %717 = vector.shape_cast %619 : vector<2x32xf32> to vector<2x1x32xf32>
    %718 = vector.shape_cast %677 : vector<2x32xf32> to vector<2x1x32xf32>
    %719 = tpu.concatenate %707, %708, %709, %710, %711, %712, %713, %714, %715, %716, %717, %718 in 1 : vector<2x1x32xf32>, vector<2x1x32xf32>, vector<2x1x32xf32>, vector<2x1x32xf32>, vector<2x1x32xf32>, vector<2x1x32xf32>, vector<2x1x32xf32>, vector<2x1x32xf32>, vector<2x1x32xf32>, vector<2x1x32xf32>, vector<2x1x32xf32>, vector<2x1x32xf32> -> vector<2x12x32xf32>
    %720 = vector.shape_cast %706 : vector<2x32xf32> to vector<2x1x32xf32>
    %721 = vector.shape_cast %648 : vector<2x32xf32> to vector<2x1x32xf32>
    %722 = vector.shape_cast %590 : vector<2x32xf32> to vector<2x1x32xf32>
    %723 = vector.shape_cast %532 : vector<2x32xf32> to vector<2x1x32xf32>
    %724 = vector.shape_cast %474 : vector<2x32xf32> to vector<2x1x32xf32>
    %725 = vector.shape_cast %416 : vector<2x32xf32> to vector<2x1x32xf32>
    %726 = vector.shape_cast %358 : vector<2x32xf32> to vector<2x1x32xf32>
    %727 = vector.shape_cast %300 : vector<2x32xf32> to vector<2x1x32xf32>
    %728 = vector.shape_cast %242 : vector<2x32xf32> to vector<2x1x32xf32>
    %729 = vector.shape_cast %184 : vector<2x32xf32> to vector<2x1x32xf32>
    %730 = vector.shape_cast %126 : vector<2x32xf32> to vector<2x1x32xf32>
    %731 = vector.shape_cast %68 : vector<2x32xf32> to vector<2x1x32xf32>
    %732 = tpu.concatenate %720, %721, %722, %723, %724, %725, %726, %727, %728, %729, %730, %731 in 1 : vector<2x1x32xf32>, vector<2x1x32xf32>, vector<2x1x32xf32>, vector<2x1x32xf32>, vector<2x1x32xf32>, vector<2x1x32xf32>, vector<2x1x32xf32>, vector<2x1x32xf32>, vector<2x1x32xf32>, vector<2x1x32xf32>, vector<2x1x32xf32>, vector<2x1x32xf32> -> vector<2x12x32xf32>
    %c0_107 = arith.constant 0 : index
    %c0_108 = arith.constant 0 : index
    %c0_109 = arith.constant 0 : index
    %733 = vector.load %arg1[%c0_107, %c0_108, %c0_109] : memref<2x12x16xf32, #tpu.memory_space<vmem>>, vector<2x12x16xf32>
    %cst_110 = arith.constant 0.000000e+00 : f32
    %734 = vector.broadcast %cst_110 : f32 to vector<2x12x48xf32>
    %735 = tpu.concatenate %719, %732, %733, %734 in 2 : vector<2x12x32xf32>, vector<2x12x32xf32>, vector<2x12x16xf32>, vector<2x12x48xf32> -> vector<2x12x128xf32>
    %c0_111 = arith.constant 0 : index
    %c0_112 = arith.constant 0 : index
    %c0_113 = arith.constant 0 : index
    %736 = vector.load %arg6[%c0_111, %c0_112, %c0_113] : memref<2x12x128xf32, #tpu.memory_space<vmem>>, vector<2x12x128xf32>
    tpu.vector_store %arg6[%c0_111, %c0_112, %c0_113], %735 {strides = array<i32>} : memref<2x12x128xf32, #tpu.memory_space<vmem>>, vector<2x12x128xf32>,
    return
  }
}

</mosaic_0001>

<llo_original>
// kernel: tpu_custom_call.1
$region0: #{tpu_custom_call.1}
  #allocation0 [shape = 'u32[]', space=smem, size = 0x4, offset = 0x4, fixed_abs, tag = 'smem constant byte address 0x4 - core index']
  #allocation1 [shape = 'u32[72,128]{1,0:T(1,128)}', space=vmem, size = 0x9000, scoped, tag = 'internal scratch']
  %s0 = inlined_call_operand.vmem [shape: f32[2,12,16], index: 0, kind: input, shape index: {}]
  %s1 = inlined_call_operand.vmem [shape: f32[2,12,16], index: 1, kind: input, shape index: {}]
  %s2 = inlined_call_operand.vmem [shape: f32[16,256], index: 2, kind: input, shape index: {}]
  %s3 = inlined_call_operand.vmem [shape: f32[32,128], index: 3, kind: input, shape index: {}]
  %s4 = inlined_call_operand.hbm [shape: f32[32,128], index: 4, kind: input, shape index: {}]
  %s5 = inlined_call_operand.vmem [shape: f32[1,256], index: 5, kind: input, shape index: {}]
  %s6 = inlined_call_operand.vmem [shape: f32[2,12,128], index: 6, kind: output, shape index: {}]
  %s7 = sld [smem:[#allocation0]]
  $region38: #{tpu_custom_call.1} parent=0
    _
  %s9 = ssub.s32 1, %s7
  %s10 = scalar_select 0, %s9, %s7
  $region1: #{tpu_custom_call.1} parent=0
    #allocation2 [shape = 'u8[16384]{0}', space=vmem, size = 0x4000, scoped, tag = 'input window, operand 4, single buffered']
    #allocation3 [shape = 's32[1]{0}', space=sflag, size = 0x4, scoped, tag = 'scoped memory for tpu_custom_call.1']
    %11 = vsyncpa [#allocation3], 0
    // Predicated region
    $region2: #{tpu_custom_call.1} parent=1 // pred_check
      _
    $region3: #{tpu_custom_call.1} parent=1 // pred_check_branch
      %13 = sbr.rel (0) target = $region5
    $region4: #{tpu_custom_call.1} parent=1 // pred_region
      _
    $region5: #{tpu_custom_call.1} parent=1 // pred_fallthru
      _
    // Predicated region
    $region6: #{tpu_custom_call.1} parent=1 // pred_check
      _
    $region7: #{tpu_custom_call.1} parent=1 // pred_check_branch
      %15 = sbr.rel (0) target = $region9
    $region8: #{tpu_custom_call.1} parent=1 // pred_region
      _
    $region9: #{tpu_custom_call.1} parent=1 // pred_fallthru
      _
    // Predicated region
    $region10: #{tpu_custom_call.1} parent=1 // pred_check
      _
    $region11: #{tpu_custom_call.1} parent=1 // pred_check_branch
      %17 = sbr.rel (0) target = $region13
    $region12: #{tpu_custom_call.1} parent=1 // pred_region
      _
    $region13: #{tpu_custom_call.1} parent=1 // pred_fallthru
      _
    // Predicated region
    $region14: #{tpu_custom_call.1} parent=1 // pred_check
      _
    $region15: #{tpu_custom_call.1} parent=1 // pred_check_branch
      %19 = sbr.rel (0) target = $region17
    $region16: #{tpu_custom_call.1} parent=1 // pred_region
      _
    $region17: #{tpu_custom_call.1} parent=1 // pred_fallthru
      _
    // Predicated region
    $region18: #{tpu_custom_call.1} parent=1 // pred_check
      _
    $region19: #{tpu_custom_call.1} parent=1 // pred_check_branch
      %21 = sbr.rel (0) target = $region21
    $region20: #{tpu_custom_call.1} parent=1 // pred_region
      %23 = vsyncadd [#allocation3], 0
      %s24 = sshll.u32 %s4, 4
      %s25 = int_to_ptr.hbm [resolvable:$true] %s24
      %s26 = sshll.u32 [#allocation2], 4
      %s27 = int_to_ptr.vmem [resolvable:$true] %s26
      %32 = dma.hbm_to_vmem [thread:$0]  %s25, 512, %s27, [#allocation3], 128, 128, 8
    $region21: #{tpu_custom_call.1} parent=1 // pred_fallthru
      _
    // Predicated region
    $region22: #{tpu_custom_call.1} parent=1 // pred_check
      _
    $region23: #{tpu_custom_call.1} parent=1 // pred_check_branch
      %34 = sbr.rel (0) target = $region25
    $region24: #{tpu_custom_call.1} parent=1 // pred_region
      _
    $region25: #{tpu_custom_call.1} parent=1 // pred_fallthru
      _
    // Predicated region
    $region26: #{tpu_custom_call.1} parent=1 // pred_check
      _
    $region27: #{tpu_custom_call.1} parent=1 // pred_check_branch
      %36 = sbr.rel (0) target = $region29
    $region28: #{tpu_custom_call.1} parent=1 // pred_region
      %38 = dma.done [#allocation3], 512
    $region29: #{tpu_custom_call.1} parent=1 // pred_fallthru
      _
    %v39 = vld [vmem:[%s0] sm:$0xff]
    %v40 = vld [vmem:[%s0 + $0x8] sm:$0xf]
    %v41 = vld [vmem:[%s0 + $0x10] sm:$0xff]
    %v42 = vld [vmem:[%s0 + $0x18] sm:$0xf]
    %v47 = vrot.slane %v39, 4
    %v48 = vrot.slane %v41, 4
    %v49 = vld [vmem:[%s2] sm:$0xff]
    %v50 = vld [vmem:[%s2 + $0x8] sm:$0xff]
    %v51 = vld [vmem:[%s2 + $0x10] sm:$0xff]
    %v52 = vld [vmem:[%s2 + $0x18] sm:$0xff]
    %v53 = vld [vmem:[%s5] sm:$0x3]
    %v55 = vperm.slane %v53, 0
    %v56 = vperm.slane %v53, 1
    %59 = vst [vmem:[#allocation1] ss:$2 sm:$0xff] %v39
    %s60 = scalar_lea.vmem [#allocation1], 1
    %61 = vst [vmem:[%s60] ss:$2 sm:$0xff] %v47
    %s62 = scalar_lea.vmem [#allocation1], 16
    %63 = vst [vmem:[%s62] ss:$2 sm:$0xff] %v40
    %s64 = scalar_lea.vmem [#allocation1], 17
    %65 = vst [vmem:[%s64] ss:$2 sm:$0xff] %v41
    %s66 = scalar_lea.vmem [#allocation1], 32
    %67 = vst [vmem:[%s66] ss:$2 sm:$0xff] %v48
    %s68 = scalar_lea.vmem [#allocation1], 33
    %69 = vst [vmem:[%s68] ss:$2 sm:$0xff] %v42
    %v70 = vld.sshfl [vmem:[#allocation1] sm:$0xff pattern:$0x75316420]
    %v71 = vld.sshfl [vmem:[#allocation1 + $0x10] sm:$0xff pattern:$0x75316420]
    %v72 = vld.sshfl [vmem:[#allocation1 + $0x20] sm:$0xff pattern:$0x75316420]
    %vm73 = vcmask 130048
    %v74 = vsel %vm73, %v70, 0
    %v76 = vsel %vm73, %v71, 0
    %v78 = vsel %vm73, %v72, 0
    %80 = vmatpush.msra.mxu0 0.0
    %81 = vmatpush.msra.mxu0 0.0
    %82 = vmatpush.msra.mxu0 0.0
    %83 = vmatpush.msra.mxu0 0.0
    %84 = vmatpush.msra.mxu0 0.0
    %85 = vmatpush.msra.mxu0 0.0
    %86 = vmatpush.msra.mxu0 0.0
    %87 = vmatpush.msra.mxu0 0.0
    %88 = vmatpush.msra.mxu0 0.0
    %89 = vmatpush.msra.mxu0 0.0
    %90 = vmatpush.msra.mxu0 0.0
    %91 = vmatpush.msra.mxu0 0.0
    %92 = vmatpush.msra.mxu0 0.0
    %93 = vmatpush.msra.mxu0 0.0
    %94 = vmatpush.msra.mxu0 %v51
    %95 = vmatpush.msra.mxu0 %v49
    %96 = vmatmul.f32.gmra.mxu0 %v74
    %v97 = vpop.f32.mrf.mxu0
    %v98 = vadd.f32 %v55, %v97
    %99 = vmatmul.f32.gmra.mxu0 %v76
    %v100 = vpop.f32.mrf.mxu0
    %v101 = vadd.f32 %v55, %v100
    %102 = vmatmul.f32.gmra.mxu0 %v78
    %v103 = vpop.f32.mrf.mxu0
    %v104 = vadd.f32 %v55, %v103
    %105 = vdwg.mxu0
    %106 = vmatpush.msra.mxu0 0.0
    %107 = vmatpush.msra.mxu0 0.0
    %108 = vmatpush.msra.mxu0 0.0
    %109 = vmatpush.msra.mxu0 0.0
    %110 = vmatpush.msra.mxu0 0.0
    %111 = vmatpush.msra.mxu0 0.0
    %112 = vmatpush.msra.mxu0 0.0
    %113 = vmatpush.msra.mxu0 0.0
    %114 = vmatpush.msra.mxu0 0.0
    %115 = vmatpush.msra.mxu0 0.0
    %116 = vmatpush.msra.mxu0 0.0
    %117 = vmatpush.msra.mxu0 0.0
    %118 = vmatpush.msra.mxu0 0.0
    %119 = vmatpush.msra.mxu0 0.0
    %120 = vmatpush.msra.mxu0 %v52
    %121 = vmatpush.msra.mxu0 %v50
    %122 = vmatmul.f32.gmra.mxu0 %v74
    %v123 = vpop.f32.mrf.mxu0
    %v124 = vadd.f32 %v56, %v123
    %125 = vmatmul.f32.gmra.mxu0 %v76
    %v126 = vpop.f32.mrf.mxu0
    %v127 = vadd.f32 %v56, %v126
    %128 = vmatmul.f32.gmra.mxu0 %v78
    %v129 = vpop.f32.mrf.mxu0
    %v130 = vadd.f32 %v56, %v129
    %131 = vdwg.mxu0
    %v138 = vrot.slane %v124, 4
    %v139 = vrot.slane %v127, 4
    %v140 = vrot.slane %v130, 4
    %vm141 = vcmask 1043456
    %v142 = vsel %vm141, %v98, %v138
    %v143 = vsel %vm141, %v138, %v98
    %v144 = vrot.slane %v143, 4
    %v145 = vsel %vm141, %v101, %v139
    %v146 = vsel %vm141, %v139, %v101
    %v147 = vrot.slane %v146, 4
    %v148 = vsel %vm141, %v104, %v140
    %v149 = vsel %vm141, %v140, %v104
    %v150 = vrot.slane %v149, 4
    %v157 = vld [vmem:[%s3] sm:$0xff]
    %v158 = vld [vmem:[%s3 + $0x8] sm:$0xff]
    %v159 = vld [vmem:[%s3 + $0x10] sm:$0xff]
    %v160 = vld [vmem:[%s3 + $0x18] sm:$0xff]
    %v161 = vld [vmem:[#allocation2] sm:$0xff]
    %v162 = vld [vmem:[#allocation2 + $0x8] sm:$0xff]
    %v163 = vld [vmem:[#allocation2 + $0x10] sm:$0xff]
    %v164 = vld [vmem:[#allocation2 + $0x18] sm:$0xff]
    %vm165 = vcmask 261120
    %v167 = vsel %vm165, 0.0, 0
    %169 = vmatpush.msra.mxu0 0.0
    %170 = vmatpush.msra.mxu0 0.0
    %171 = vmatpush.msra.mxu0 0.0
    %172 = vmatpush.msra.mxu0 0.0
    %173 = vmatpush.msra.mxu0 0.0
    %174 = vmatpush.msra.mxu0 0.0
    %175 = vmatpush.msra.mxu0 0.0
    %176 = vmatpush.msra.mxu0 0.0
    %177 = vmatpush.msra.mxu0 0.0
    %178 = vmatpush.msra.mxu0 0.0
    %179 = vmatpush.msra.mxu0 0.0
    %180 = vmatpush.msra.mxu0 0.0
    %181 = vmatpush.msra.mxu0 %v160
    %182 = vmatpush.msra.mxu0 %v159
    %183 = vmatpush.msra.mxu0 %v158
    %184 = vmatpush.msra.mxu0 %v157
    %185 = vmatmul.f32.gmra.mxu0 %v167
    %v186 = vpop.f32.mrf.mxu0
    %v187 = vadd.f32 0.0, %v186
    %188 = vdwg.mxu0
    %v190 = vrot.slane %v187, 1
    %v193 = vadd.f32 %v142, %v187
    %v194 = vadd.f32 %v147, %v190
    %v195 = vxor.u32 %v193, 2147483648
    %v196 = vxor.u32 %v194, 2147483648
    %v197 = vmul.f32 %v195, 1.442695
    %v198 = vpow.pop %v197
    %v199 = vmul.f32 %v196, 1.442695
    %v200 = vpow.pop %v199
    %v201 = vadd.f32 %v198, 1.0
    %v202 = vadd.f32 %v200, 1.0
    %v203 = vrcp.pop %v201
    %v204 = vmul.f32 %v201, %v203
    %v205 = vsub.f32 1.0, %v204
    %v206 = vmul.f32 %v203, %v205
    %v207 = vadd.f32 %v203, %v206
    %vm208 = vweird.f32 %v201
    %vm209 = vweird.f32 %v203
    %vm210 = vmor %vm208, %vm209
    %v211 = vsel %vm210, %v203, %v207
    %v212 = vand.u32 2147483647, %v201
    %vm213 = vcmp.eq.f32.partialorder %v212, 8.507059e+37
    %v214 = vand.u32 %v201, 2147483648
    %v215 = vor.u32 1.1754944e-38, %v214
    %v216 = vsel %vm213, %v215, %v211
    %v217 = vmul.f32 1.0, %v216
    %v218 = vrcp.pop %v202
    %v219 = vmul.f32 %v202, %v218
    %v220 = vsub.f32 1.0, %v219
    %v221 = vmul.f32 %v218, %v220
    %v222 = vadd.f32 %v218, %v221
    %vm223 = vweird.f32 %v202
    %vm224 = vweird.f32 %v218
    %vm225 = vmor %vm223, %vm224
    %v226 = vsel %vm225, %v218, %v222
    %v227 = vand.u32 2147483647, %v202
    %vm228 = vcmp.eq.f32.partialorder %v227, 8.507059e+37
    %v229 = vand.u32 %v202, 2147483648
    %v230 = vor.u32 1.1754944e-38, %v229
    %v231 = vsel %vm228, %v230, %v226
    %v232 = vmul.f32 1.0, %v231
    %v233 = vtanh.pop %v193
    %v234 = vtanh.pop %v194
    %v235 = vmul.f32 %v217, 0.0
    %v236 = vmul.f32 %v232, 0.0
    %239 = vrot.lane.b32.xlu0 %v233, 64
    %v240 = vpop.permute.xlu0 %239
    %241 = vrot.lane.b32.xlu0 %v234, 64
    %v242 = vpop.permute.xlu0 %241
    %v245 = vmul.f32 %v217, %v240
    %v246 = vmul.f32 %v232, %v242
    %249 = vrot.lane.b32.xlu0 %v245, 32
    %v250 = vpop.permute.xlu0 %249
    %251 = vrot.lane.b32.xlu0 %v246, 32
    %v252 = vpop.permute.xlu0 %251
    %v255 = vadd.f32 %v235, %v250
    %v256 = vadd.f32 %v236, %v252
    %v257 = vtanh.pop %v255
    %v258 = vtanh.pop %v256
    %261 = vrot.lane.b32.xlu0 %v257, 64
    %v262 = vpop.permute.xlu0 %261
    %263 = vrot.lane.b32.xlu0 %v258, 64
    %v264 = vpop.permute.xlu0 %263
    %v267 = vmul.f32 %v217, %v262
    %v268 = vmul.f32 %v232, %v264
    %v269 = vrot.slane %v145, 4
    %v270 = vrot.slane %v150, 4
    %273 = vmatpush.msra.mxu0 0.0
    %274 = vmatpush.msra.mxu0 0.0
    %275 = vmatpush.msra.mxu0 0.0
    %276 = vmatpush.msra.mxu0 0.0
    %277 = vmatpush.msra.mxu0 0.0
    %278 = vmatpush.msra.mxu0 0.0
    %279 = vmatpush.msra.mxu0 0.0
    %280 = vmatpush.msra.mxu0 0.0
    %281 = vmatpush.msra.mxu0 0.0
    %282 = vmatpush.msra.mxu0 0.0
    %283 = vmatpush.msra.mxu0 0.0
    %284 = vmatpush.msra.mxu0 0.0
    %285 = vmatpush.msra.mxu0 %v164
    %286 = vmatpush.msra.mxu0 %v163
    %287 = vmatpush.msra.mxu0 %v162
    %288 = vmatpush.msra.mxu0 %v161
    %289 = vmatmul.f32.gmra.mxu0 %v167
    %v290 = vpop.f32.mrf.mxu0
    %v291 = vadd.f32 0.0, %v290
    %292 = vdwg.mxu0
    %v294 = vrot.slane %v291, 5
    %v295 = vrot.slane %v291, 6
    %v298 = vadd.f32 %v269, %v294
    %v299 = vadd.f32 %v270, %v295
    %v300 = vxor.u32 %v298, 2147483648
    %v301 = vxor.u32 %v299, 2147483648
    %v302 = vmul.f32 %v300, 1.442695
    %v303 = vpow.pop %v302
    %v304 = vmul.f32 %v301, 1.442695
    %v305 = vpow.pop %v304
    %v306 = vadd.f32 %v303, 1.0
    %v307 = vadd.f32 %v305, 1.0
    %v308 = vrcp.pop %v306
    %v309 = vmul.f32 %v306, %v308
    %v310 = vsub.f32 1.0, %v309
    %v311 = vmul.f32 %v308, %v310
    %v312 = vadd.f32 %v308, %v311
    %vm313 = vweird.f32 %v306
    %vm314 = vweird.f32 %v308
    %vm315 = vmor %vm313, %vm314
    %v316 = vsel %vm315, %v308, %v312
    %v317 = vand.u32 2147483647, %v306
    %vm318 = vcmp.eq.f32.partialorder %v317, 8.507059e+37
    %v319 = vand.u32 %v306, 2147483648
    %v320 = vor.u32 1.1754944e-38, %v319
    %v321 = vsel %vm318, %v320, %v316
    %v322 = vmul.f32 1.0, %v321
    %v323 = vrcp.pop %v307
    %v324 = vmul.f32 %v307, %v323
    %v325 = vsub.f32 1.0, %v324
    %v326 = vmul.f32 %v323, %v325
    %v327 = vadd.f32 %v323, %v326
    %vm328 = vweird.f32 %v307
    %vm329 = vweird.f32 %v323
    %vm330 = vmor %vm328, %vm329
    %v331 = vsel %vm330, %v323, %v327
    %v332 = vand.u32 2147483647, %v307
    %vm333 = vcmp.eq.f32.partialorder %v332, 8.507059e+37
    %v334 = vand.u32 %v307, 2147483648
    %v335 = vor.u32 1.1754944e-38, %v334
    %v336 = vsel %vm333, %v335, %v331
    %v337 = vmul.f32 1.0, %v336
    %v338 = vtanh.pop %v298
    %v339 = vtanh.pop %v299
    %v340 = vmul.f32 %v322, 0.0
    %v341 = vmul.f32 %v337, 0.0
    %344 = vrot.lane.b32.xlu0 %v338, 64
    %v345 = vpop.permute.xlu0 %344
    %346 = vrot.lane.b32.xlu0 %v339, 64
    %v347 = vpop.permute.xlu0 %346
    %v350 = vmul.f32 %v322, %v345
    %v351 = vmul.f32 %v337, %v347
    %354 = vrot.lane.b32.xlu0 %v350, 32
    %v355 = vpop.permute.xlu0 %354
    %356 = vrot.lane.b32.xlu0 %v351, 32
    %v357 = vpop.permute.xlu0 %356
    %v360 = vadd.f32 %v340, %v355
    %v361 = vadd.f32 %v341, %v357
    %v362 = vtanh.pop %v360
    %v363 = vtanh.pop %v361
    %366 = vrot.lane.b32.xlu0 %v362, 64
    %v367 = vpop.permute.xlu0 %366
    %368 = vrot.lane.b32.xlu0 %v363, 64
    %v369 = vpop.permute.xlu0 %368
    %v372 = vmul.f32 %v322, %v367
    %v373 = vmul.f32 %v337, %v369
    %v376 = vperm.slane %v267, 0
    %v377 = vperm.slane %v268, 0
    %vm378 = vcmask 1041409
    %v379 = vsel %vm378, %v377, %v376
    %380 = vrot.lane.b32.xlu0 %v379, 32
    %v381 = vpop.permute.xlu0 %380
    %v382 = vsel %vm165, %v381, 0
    %384 = vmatpush.msra.mxu0 0.0
    %385 = vmatpush.msra.mxu0 0.0
    %386 = vmatpush.msra.mxu0 0.0
    %387 = vmatpush.msra.mxu0 0.0
    %388 = vmatpush.msra.mxu0 0.0
    %389 = vmatpush.msra.mxu0 0.0
    %390 = vmatpush.msra.mxu0 0.0
    %391 = vmatpush.msra.mxu0 0.0
    %392 = vmatpush.msra.mxu0 0.0
    %393 = vmatpush.msra.mxu0 0.0
    %394 = vmatpush.msra.mxu0 0.0
    %395 = vmatpush.msra.mxu0 0.0
    %396 = vmatpush.msra.mxu0 %v160
    %397 = vmatpush.msra.mxu0 %v159
    %398 = vmatpush.msra.mxu0 %v158
    %399 = vmatpush.msra.mxu0 %v157
    %400 = vmatmul.f32.gmra.mxu0 %v382
    %v401 = vpop.f32.mrf.mxu0
    %v402 = vadd.f32 0.0, %v401
    %403 = vdwg.mxu0
    %v405 = vrot.slane %v402, 7
    %v408 = vadd.f32 %v142, %v405
    %v409 = vadd.f32 %v147, %v402
    %v410 = vxor.u32 %v408, 2147483648
    %v411 = vxor.u32 %v409, 2147483648
    %v412 = vmul.f32 %v410, 1.442695
    %v413 = vpow.pop %v412
    %v414 = vmul.f32 %v411, 1.442695
    %v415 = vpow.pop %v414
    %v416 = vadd.f32 %v413, 1.0
    %v417 = vadd.f32 %v415, 1.0
    %v418 = vrcp.pop %v416
    %v419 = vmul.f32 %v416, %v418
    %v420 = vsub.f32 1.0, %v419
    %v421 = vmul.f32 %v418, %v420
    %v422 = vadd.f32 %v418, %v421
    %vm423 = vweird.f32 %v416
    %vm424 = vweird.f32 %v418
    %vm425 = vmor %vm423, %vm424
    %v426 = vsel %vm425, %v418, %v422
    %v427 = vand.u32 2147483647, %v416
    %vm428 = vcmp.eq.f32.partialorder %v427, 8.507059e+37
    %v429 = vand.u32 %v416, 2147483648
    %v430 = vor.u32 1.1754944e-38, %v429
    %v431 = vsel %vm428, %v430, %v426
    %v432 = vmul.f32 1.0, %v431
    %v433 = vrcp.pop %v417
    %v434 = vmul.f32 %v417, %v433
    %v435 = vsub.f32 1.0, %v434
    %v436 = vmul.f32 %v433, %v435
    %v437 = vadd.f32 %v433, %v436
    %vm438 = vweird.f32 %v417
    %vm439 = vweird.f32 %v433
    %vm440 = vmor %vm438, %vm439
    %v441 = vsel %vm440, %v433, %v437
    %v442 = vand.u32 2147483647, %v417
    %vm443 = vcmp.eq.f32.partialorder %v442, 8.507059e+37
    %v444 = vand.u32 %v417, 2147483648
    %v445 = vor.u32 1.1754944e-38, %v444
    %v446 = vsel %vm443, %v445, %v441
    %v447 = vmul.f32 1.0, %v446
    %v448 = vtanh.pop %v408
    %v449 = vtanh.pop %v409
    %v452 = vrot.slane %v255, 7
    %v453 = vrot.slane %v256, 7
    %v456 = vmul.f32 %v432, %v452
    %v457 = vmul.f32 %v447, %v453
    %460 = vrot.lane.b32.xlu0 %v448, 64
    %v461 = vpop.permute.xlu0 %460
    %462 = vrot.lane.b32.xlu0 %v449, 64
    %v463 = vpop.permute.xlu0 %462
    %v466 = vmul.f32 %v432, %v461
    %v467 = vmul.f32 %v447, %v463
    %470 = vrot.lane.b32.xlu0 %v466, 32
    %v471 = vpop.permute.xlu0 %470
    %472 = vrot.lane.b32.xlu0 %v467, 32
    %v473 = vpop.permute.xlu0 %472
    %v476 = vadd.f32 %v456, %v471
    %v477 = vadd.f32 %v457, %v473
    %v478 = vtanh.pop %v476
    %v479 = vtanh.pop %v477
    %482 = vrot.lane.b32.xlu0 %v478, 64
    %v483 = vpop.permute.xlu0 %482
    %484 = vrot.lane.b32.xlu0 %v479, 64
    %v485 = vpop.permute.xlu0 %484
    %v488 = vmul.f32 %v432, %v483
    %v489 = vmul.f32 %v447, %v485
    %v492 = vperm.slane %v372, 3
    %v493 = vperm.slane %v373, 3
    %v494 = vsel %vm378, %v493, %v492
    %495 = vrot.lane.b32.xlu0 %v494, 32
    %v496 = vpop.permute.xlu0 %495
    %v497 = vsel %vm165, %v496, 0
    %499 = vmatpush.msra.mxu0 0.0
    %500 = vmatpush.msra.mxu0 0.0
    %501 = vmatpush.msra.mxu0 0.0
    %502 = vmatpush.msra.mxu0 0.0
    %503 = vmatpush.msra.mxu0 0.0
    %504 = vmatpush.msra.mxu0 0.0
    %505 = vmatpush.msra.mxu0 0.0
    %506 = vmatpush.msra.mxu0 0.0
    %507 = vmatpush.msra.mxu0 0.0
    %508 = vmatpush.msra.mxu0 0.0
    %509 = vmatpush.msra.mxu0 0.0
    %510 = vmatpush.msra.mxu0 0.0
    %511 = vmatpush.msra.mxu0 %v164
    %512 = vmatpush.msra.mxu0 %v163
    %513 = vmatpush.msra.mxu0 %v162
    %514 = vmatpush.msra.mxu0 %v161
    %515 = vmatmul.f32.gmra.mxu0 %v497
    %v516 = vpop.f32.mrf.mxu0
    %v517 = vadd.f32 0.0, %v516
    %518 = vdwg.mxu0
    %v520 = vrot.slane %v517, 6
    %v521 = vrot.slane %v517, 7
    %v524 = vadd.f32 %v269, %v520
    %v525 = vadd.f32 %v270, %v521
    %v526 = vxor.u32 %v524, 2147483648
    %v527 = vxor.u32 %v525, 2147483648
    %v528 = vmul.f32 %v526, 1.442695
    %v529 = vpow.pop %v528
    %v530 = vmul.f32 %v527, 1.442695
    %v531 = vpow.pop %v530
    %v532 = vadd.f32 %v529, 1.0
    %v533 = vadd.f32 %v531, 1.0
    %v534 = vrcp.pop %v532
    %v535 = vmul.f32 %v532, %v534
    %v536 = vsub.f32 1.0, %v535
    %v537 = vmul.f32 %v534, %v536
    %v538 = vadd.f32 %v534, %v537
    %vm539 = vweird.f32 %v532
    %vm540 = vweird.f32 %v534
    %vm541 = vmor %vm539, %vm540
    %v542 = vsel %vm541, %v534, %v538
    %v543 = vand.u32 2147483647, %v532
    %vm544 = vcmp.eq.f32.partialorder %v543, 8.507059e+37
    %v545 = vand.u32 %v532, 2147483648
    %v546 = vor.u32 1.1754944e-38, %v545
    %v547 = vsel %vm544, %v546, %v542
    %v548 = vmul.f32 1.0, %v547
    %v549 = vrcp.pop %v533
    %v550 = vmul.f32 %v533, %v549
    %v551 = vsub.f32 1.0, %v550
    %v552 = vmul.f32 %v549, %v551
    %v553 = vadd.f32 %v549, %v552
    %vm554 = vweird.f32 %v533
    %vm555 = vweird.f32 %v549
    %vm556 = vmor %vm554, %vm555
    %v557 = vsel %vm556, %v549, %v553
    %v558 = vand.u32 2147483647, %v533
    %vm559 = vcmp.eq.f32.partialorder %v558, 8.507059e+37
    %v560 = vand.u32 %v533, 2147483648
    %v561 = vor.u32 1.1754944e-38, %v560
    %v562 = vsel %vm559, %v561, %v557
    %v563 = vmul.f32 1.0, %v562
    %v564 = vtanh.pop %v524
    %v565 = vtanh.pop %v525
    %v568 = vrot.slane %v360, 5
    %v569 = vrot.slane %v568, 4
    %v570 = vrot.slane %v361, 5
    %v571 = vrot.slane %v570, 4
    %v574 = vmul.f32 %v548, %v569
    %v575 = vmul.f32 %v563, %v571
    %578 = vrot.lane.b32.xlu0 %v564, 64
    %v579 = vpop.permute.xlu0 %578
    %580 = vrot.lane.b32.xlu0 %v565, 64
    %v581 = vpop.permute.xlu0 %580
    %v584 = vmul.f32 %v548, %v579
    %v585 = vmul.f32 %v563, %v581
    %588 = vrot.lane.b32.xlu0 %v584, 32
    %v589 = vpop.permute.xlu0 %588
    %590 = vrot.lane.b32.xlu0 %v585, 32
    %v591 = vpop.permute.xlu0 %590
    %v594 = vadd.f32 %v574, %v589
    %v595 = vadd.f32 %v575, %v591
    %v596 = vtanh.pop %v594
    %v597 = vtanh.pop %v595
    %600 = vrot.lane.b32.xlu0 %v596, 64
    %v601 = vpop.permute.xlu0 %600
    %602 = vrot.lane.b32.xlu0 %v597, 64
    %v603 = vpop.permute.xlu0 %602
    %v606 = vmul.f32 %v548, %v601
    %v607 = vmul.f32 %v563, %v603
    %v610 = vperm.slane %v488, 1
    %v611 = vperm.slane %v489, 1
    %v612 = vsel %vm378, %v611, %v610
    %613 = vrot.lane.b32.xlu0 %v612, 32
    %v614 = vpop.permute.xlu0 %613
    %v615 = vsel %vm165, %v614, 0
    %617 = vmatpush.msra.mxu0 0.0
    %618 = vmatpush.msra.mxu0 0.0
    %619 = vmatpush.msra.mxu0 0.0
    %620 = vmatpush.msra.mxu0 0.0
    %621 = vmatpush.msra.mxu0 0.0
    %622 = vmatpush.msra.mxu0 0.0
    %623 = vmatpush.msra.mxu0 0.0
    %624 = vmatpush.msra.mxu0 0.0
    %625 = vmatpush.msra.mxu0 0.0
    %626 = vmatpush.msra.mxu0 0.0
    %627 = vmatpush.msra.mxu0 0.0
    %628 = vmatpush.msra.mxu0 0.0
    %629 = vmatpush.msra.mxu0 %v160
    %630 = vmatpush.msra.mxu0 %v159
    %631 = vmatpush.msra.mxu0 %v158
    %632 = vmatpush.msra.mxu0 %v157
    %633 = vmatmul.f32.gmra.mxu0 %v615
    %v634 = vpop.f32.mrf.mxu0
    %v635 = vadd.f32 0.0, %v634
    %636 = vdwg.mxu0
    %v638 = vrot.slane %v635, 6
    %v639 = vrot.slane %v635, 7
    %v642 = vadd.f32 %v142, %v638
    %v643 = vadd.f32 %v147, %v639
    %v644 = vxor.u32 %v642, 2147483648
    %v645 = vxor.u32 %v643, 2147483648
    %v646 = vmul.f32 %v644, 1.442695
    %v647 = vpow.pop %v646
    %v648 = vmul.f32 %v645, 1.442695
    %v649 = vpow.pop %v648
    %v650 = vadd.f32 %v647, 1.0
    %v651 = vadd.f32 %v649, 1.0
    %v652 = vrcp.pop %v650
    %v653 = vmul.f32 %v650, %v652
    %v654 = vsub.f32 1.0, %v653
    %v655 = vmul.f32 %v652, %v654
    %v656 = vadd.f32 %v652, %v655
    %vm657 = vweird.f32 %v650
    %vm658 = vweird.f32 %v652
    %vm659 = vmor %vm657, %vm658
    %v660 = vsel %vm659, %v652, %v656
    %v661 = vand.u32 2147483647, %v650
    %vm662 = vcmp.eq.f32.partialorder %v661, 8.507059e+37
    %v663 = vand.u32 %v650, 2147483648
    %v664 = vor.u32 1.1754944e-38, %v663
    %v665 = vsel %vm662, %v664, %v660
    %v666 = vmul.f32 1.0, %v665
    %v667 = vrcp.pop %v651
    %v668 = vmul.f32 %v651, %v667
    %v669 = vsub.f32 1.0, %v668
    %v670 = vmul.f32 %v667, %v669
    %v671 = vadd.f32 %v667, %v670
    %vm672 = vweird.f32 %v651
    %vm673 = vweird.f32 %v667
    %vm674 = vmor %vm672, %vm673
    %v675 = vsel %vm674, %v667, %v671
    %v676 = vand.u32 2147483647, %v651
    %vm677 = vcmp.eq.f32.partialorder %v676, 8.507059e+37
    %v678 = vand.u32 %v651, 2147483648
    %v679 = vor.u32 1.1754944e-38, %v678
    %v680 = vsel %vm677, %v679, %v675
    %v681 = vmul.f32 1.0, %v680
    %v682 = vtanh.pop %v642
    %v683 = vtanh.pop %v643
    %v686 = vrot.slane %v476, 7
    %v687 = vrot.slane %v477, 7
    %v690 = vmul.f32 %v666, %v686
    %v691 = vmul.f32 %v681, %v687
    %694 = vrot.lane.b32.xlu0 %v682, 64
    %v695 = vpop.permute.xlu0 %694
    %696 = vrot.lane.b32.xlu0 %v683, 64
    %v697 = vpop.permute.xlu0 %696
    %v700 = vmul.f32 %v666, %v695
    %v701 = vmul.f32 %v681, %v697
    %704 = vrot.lane.b32.xlu0 %v700, 32
    %v705 = vpop.permute.xlu0 %704
    %706 = vrot.lane.b32.xlu0 %v701, 32
    %v707 = vpop.permute.xlu0 %706
    %v710 = vadd.f32 %v690, %v705
    %v711 = vadd.f32 %v691, %v707
    %v712 = vtanh.pop %v710
    %v713 = vtanh.pop %v711
    %716 = vrot.lane.b32.xlu0 %v712, 64
    %v717 = vpop.permute.xlu0 %716
    %718 = vrot.lane.b32.xlu0 %v713, 64
    %v719 = vpop.permute.xlu0 %718
    %v722 = vmul.f32 %v666, %v717
    %v723 = vmul.f32 %v681, %v719
    %v726 = vperm.slane %v606, 2
    %v727 = vperm.slane %v607, 2
    %v728 = vsel %vm378, %v727, %v726
    %729 = vrot.lane.b32.xlu0 %v728, 32
    %v730 = vpop.permute.xlu0 %729
    %v731 = vsel %vm165, %v730, 0
    %733 = vmatpush.msra.mxu0 0.0
    %734 = vmatpush.msra.mxu0 0.0
    %735 = vmatpush.msra.mxu0 0.0
    %736 = vmatpush.msra.mxu0 0.0
    %737 = vmatpush.msra.mxu0 0.0
    %738 = vmatpush.msra.mxu0 0.0
    %739 = vmatpush.msra.mxu0 0.0
    %740 = vmatpush.msra.mxu0 0.0
    %741 = vmatpush.msra.mxu0 0.0
    %742 = vmatpush.msra.mxu0 0.0
    %743 = vmatpush.msra.mxu0 0.0
    %744 = vmatpush.msra.mxu0 0.0
    %745 = vmatpush.msra.mxu0 %v164
    %746 = vmatpush.msra.mxu0 %v163
    %747 = vmatpush.msra.mxu0 %v162
    %748 = vmatpush.msra.mxu0 %v161
    %749 = vmatmul.f32.gmra.mxu0 %v731
    %v750 = vpop.f32.mrf.mxu0
    %v751 = vadd.f32 0.0, %v750
    %752 = vdwg.mxu0
    %v754 = vrot.slane %v751, 7
    %v757 = vadd.f32 %v269, %v754
    %v758 = vadd.f32 %v270, %v751
    %v759 = vxor.u32 %v757, 2147483648
    %v760 = vxor.u32 %v758, 2147483648
    %v761 = vmul.f32 %v759, 1.442695
    %v762 = vpow.pop %v761
    %v763 = vmul.f32 %v760, 1.442695
    %v764 = vpow.pop %v763
    %v765 = vadd.f32 %v762, 1.0
    %v766 = vadd.f32 %v764, 1.0
    %v767 = vrcp.pop %v765
    %v768 = vmul.f32 %v765, %v767
    %v769 = vsub.f32 1.0, %v768
    %v770 = vmul.f32 %v767, %v769
    %v771 = vadd.f32 %v767, %v770
    %vm772 = vweird.f32 %v765
    %vm773 = vweird.f32 %v767
    %vm774 = vmor %vm772, %vm773
    %v775 = vsel %vm774, %v767, %v771
    %v776 = vand.u32 2147483647, %v765
    %vm777 = vcmp.eq.f32.partialorder %v776, 8.507059e+37
    %v778 = vand.u32 %v765, 2147483648
    %v779 = vor.u32 1.1754944e-38, %v778
    %v780 = vsel %vm777, %v779, %v775
    %v781 = vmul.f32 1.0, %v780
    %v782 = vrcp.pop %v766
    %v783 = vmul.f32 %v766, %v782
    %v784 = vsub.f32 1.0, %v783
    %v785 = vmul.f32 %v782, %v784
    %v786 = vadd.f32 %v782, %v785
    %vm787 = vweird.f32 %v766
    %vm788 = vweird.f32 %v782
    %vm789 = vmor %vm787, %vm788
    %v790 = vsel %vm789, %v782, %v786
    %v791 = vand.u32 2147483647, %v766
    %vm792 = vcmp.eq.f32.partialorder %v791, 8.507059e+37
    %v793 = vand.u32 %v766, 2147483648
    %v794 = vor.u32 1.1754944e-38, %v793
    %v795 = vsel %vm792, %v794, %v790
    %v796 = vmul.f32 1.0, %v795
    %v797 = vtanh.pop %v757
    %v798 = vtanh.pop %v758
    %v801 = vrot.slane %v594, 5
    %v802 = vrot.slane %v801, 4
    %v803 = vrot.slane %v595, 5
    %v804 = vrot.slane %v803, 4
    %v807 = vmul.f32 %v781, %v802
    %v808 = vmul.f32 %v796, %v804
    %811 = vrot.lane.b32.xlu0 %v797, 64
    %v812 = vpop.permute.xlu0 %811
    %813 = vrot.lane.b32.xlu0 %v798, 64
    %v814 = vpop.permute.xlu0 %813
    %v817 = vmul.f32 %v781, %v812
    %v818 = vmul.f32 %v796, %v814
    %821 = vrot.lane.b32.xlu0 %v817, 32
    %v822 = vpop.permute.xlu0 %821
    %823 = vrot.lane.b32.xlu0 %v818, 32
    %v824 = vpop.permute.xlu0 %823
    %v827 = vadd.f32 %v807, %v822
    %v828 = vadd.f32 %v808, %v824
    %v829 = vtanh.pop %v827
    %v830 = vtanh.pop %v828
    %833 = vrot.lane.b32.xlu0 %v829, 64
    %v834 = vpop.permute.xlu0 %833
    %835 = vrot.lane.b32.xlu0 %v830, 64
    %v836 = vpop.permute.xlu0 %835
    %v839 = vmul.f32 %v781, %v834
    %v840 = vmul.f32 %v796, %v836
    %v843 = vperm.slane %v722, 2
    %v844 = vperm.slane %v723, 2
    %v845 = vsel %vm378, %v844, %v843
    %846 = vrot.lane.b32.xlu0 %v845, 32
    %v847 = vpop.permute.xlu0 %846
    %v848 = vsel %vm165, %v847, 0
    %850 = vmatpush.msra.mxu0 0.0
    %851 = vmatpush.msra.mxu0 0.0
    %852 = vmatpush.msra.mxu0 0.0
    %853 = vmatpush.msra.mxu0 0.0
    %854 = vmatpush.msra.mxu0 0.0
    %855 = vmatpush.msra.mxu0 0.0
    %856 = vmatpush.msra.mxu0 0.0
    %857 = vmatpush.msra.mxu0 0.0
    %858 = vmatpush.msra.mxu0 0.0
    %859 = vmatpush.msra.mxu0 0.0
    %860 = vmatpush.msra.mxu0 0.0
    %861 = vmatpush.msra.mxu0 0.0
    %862 = vmatpush.msra.mxu0 %v160
    %863 = vmatpush.msra.mxu0 %v159
    %864 = vmatpush.msra.mxu0 %v158
    %865 = vmatpush.msra.mxu0 %v157
    %866 = vmatmul.f32.gmra.mxu0 %v848
    %v867 = vpop.f32.mrf.mxu0
    %v868 = vadd.f32 0.0, %v867
    %869 = vdwg.mxu0
    %v871 = vrot.slane %v868, 5
    %v872 = vrot.slane %v868, 6
    %v875 = vadd.f32 %v142, %v871
    %v876 = vadd.f32 %v147, %v872
    %v877 = vxor.u32 %v875, 2147483648
    %v878 = vxor.u32 %v876, 2147483648
    %v879 = vmul.f32 %v877, 1.442695
    %v880 = vpow.pop %v879
    %v881 = vmul.f32 %v878, 1.442695
    %v882 = vpow.pop %v881
    %v883 = vadd.f32 %v880, 1.0
    %v884 = vadd.f32 %v882, 1.0
    %v885 = vrcp.pop %v883
    %v886 = vmul.f32 %v883, %v885
    %v887 = vsub.f32 1.0, %v886
    %v888 = vmul.f32 %v885, %v887
    %v889 = vadd.f32 %v885, %v888
    %vm890 = vweird.f32 %v883
    %vm891 = vweird.f32 %v885
    %vm892 = vmor %vm890, %vm891
    %v893 = vsel %vm892, %v885, %v889
    %v894 = vand.u32 2147483647, %v883
    %vm895 = vcmp.eq.f32.partialorder %v894, 8.507059e+37
    %v896 = vand.u32 %v883, 2147483648
    %v897 = vor.u32 1.1754944e-38, %v896
    %v898 = vsel %vm895, %v897, %v893
    %v899 = vmul.f32 1.0, %v898
    %v900 = vrcp.pop %v884
    %v901 = vmul.f32 %v884, %v900
    %v902 = vsub.f32 1.0, %v901
    %v903 = vmul.f32 %v900, %v902
    %v904 = vadd.f32 %v900, %v903
    %vm905 = vweird.f32 %v884
    %vm906 = vweird.f32 %v900
    %vm907 = vmor %vm905, %vm906
    %v908 = vsel %vm907, %v900, %v904
    %v909 = vand.u32 2147483647, %v884
    %vm910 = vcmp.eq.f32.partialorder %v909, 8.507059e+37
    %v911 = vand.u32 %v884, 2147483648
    %v912 = vor.u32 1.1754944e-38, %v911
    %v913 = vsel %vm910, %v912, %v908
    %v914 = vmul.f32 1.0, %v913
    %v915 = vtanh.pop %v875
    %v916 = vtanh.pop %v876
    %v919 = vrot.slane %v710, 7
    %v920 = vrot.slane %v711, 7
    %v923 = vmul.f32 %v899, %v919
    %v924 = vmul.f32 %v914, %v920
    %927 = vrot.lane.b32.xlu0 %v915, 64
    %v928 = vpop.permute.xlu0 %927
    %929 = vrot.lane.b32.xlu0 %v916, 64
    %v930 = vpop.permute.xlu0 %929
    %v933 = vmul.f32 %v899, %v928
    %v934 = vmul.f32 %v914, %v930
    %937 = vrot.lane.b32.xlu0 %v933, 32
    %v938 = vpop.permute.xlu0 %937
    %939 = vrot.lane.b32.xlu0 %v934, 32
    %v940 = vpop.permute.xlu0 %939
    %v943 = vadd.f32 %v923, %v938
    %v944 = vadd.f32 %v924, %v940
    %v945 = vtanh.pop %v943
    %v946 = vtanh.pop %v944
    %949 = vrot.lane.b32.xlu0 %v945, 64
    %v950 = vpop.permute.xlu0 %949
    %951 = vrot.lane.b32.xlu0 %v946, 64
    %v952 = vpop.permute.xlu0 %951
    %v955 = vmul.f32 %v899, %v950
    %v956 = vmul.f32 %v914, %v952
    %v959 = vperm.slane %v839, 1
    %v960 = vperm.slane %v840, 1
    %v961 = vsel %vm378, %v960, %v959
    %962 = vrot.lane.b32.xlu0 %v961, 32
    %v963 = vpop.permute.xlu0 %962
    %v964 = vsel %vm165, %v963, 0
    %966 = vmatpush.msra.mxu0 0.0
    %967 = vmatpush.msra.mxu0 0.0
    %968 = vmatpush.msra.mxu0 0.0
    %969 = vmatpush.msra.mxu0 0.0
    %970 = vmatpush.msra.mxu0 0.0
    %971 = vmatpush.msra.mxu0 0.0
    %972 = vmatpush.msra.mxu0 0.0
    %973 = vmatpush.msra.mxu0 0.0
    %974 = vmatpush.msra.mxu0 0.0
    %975 = vmatpush.msra.mxu0 0.0
    %976 = vmatpush.msra.mxu0 0.0
    %977 = vmatpush.msra.mxu0 0.0
    %978 = vmatpush.msra.mxu0 %v164
    %979 = vmatpush.msra.mxu0 %v163
    %980 = vmatpush.msra.mxu0 %v162
    %981 = vmatpush.msra.mxu0 %v161
    %982 = vmatmul.f32.gmra.mxu0 %v964
    %v983 = vpop.f32.mrf.mxu0
    %v984 = vadd.f32 0.0, %v983
    %985 = vdwg.mxu0
    %v987 = vrot.slane %v984, 1
    %v990 = vadd.f32 %v269, %v984
    %v991 = vadd.f32 %v270, %v987
    %v992 = vxor.u32 %v990, 2147483648
    %v993 = vxor.u32 %v991, 2147483648
    %v994 = vmul.f32 %v992, 1.442695
    %v995 = vpow.pop %v994
    %v996 = vmul.f32 %v993, 1.442695
    %v997 = vpow.pop %v996
    %v998 = vadd.f32 %v995, 1.0
    %v999 = vadd.f32 %v997, 1.0
    %v1000 = vrcp.pop %v998
    %v1001 = vmul.f32 %v998, %v1000
    %v1002 = vsub.f32 1.0, %v1001
    %v1003 = vmul.f32 %v1000, %v1002
    %v1004 = vadd.f32 %v1000, %v1003
    %vm1005 = vweird.f32 %v998
    %vm1006 = vweird.f32 %v1000
    %vm1007 = vmor %vm1005, %vm1006
    %v1008 = vsel %vm1007, %v1000, %v1004
    %v1009 = vand.u32 2147483647, %v998
    %vm1010 = vcmp.eq.f32.partialorder %v1009, 8.507059e+37
    %v1011 = vand.u32 %v998, 2147483648
    %v1012 = vor.u32 1.1754944e-38, %v1011
    %v1013 = vsel %vm1010, %v1012, %v1008
    %v1014 = vmul.f32 1.0, %v1013
    %v1015 = vrcp.pop %v999
    %v1016 = vmul.f32 %v999, %v1015
    %v1017 = vsub.f32 1.0, %v1016
    %v1018 = vmul.f32 %v1015, %v1017
    %v1019 = vadd.f32 %v1015, %v1018
    %vm1020 = vweird.f32 %v999
    %vm1021 = vweird.f32 %v1015
    %vm1022 = vmor %vm1020, %vm1021
    %v1023 = vsel %vm1022, %v1015, %v1019
    %v1024 = vand.u32 2147483647, %v999
    %vm1025 = vcmp.eq.f32.partialorder %v1024, 8.507059e+37
    %v1026 = vand.u32 %v999, 2147483648
    %v1027 = vor.u32 1.1754944e-38, %v1026
    %v1028 = vsel %vm1025, %v1027, %v1023
    %v1029 = vmul.f32 1.0, %v1028
    %v1030 = vtanh.pop %v990
    %v1031 = vtanh.pop %v991
    %v1034 = vrot.slane %v827, 5
    %v1035 = vrot.slane %v1034, 4
    %v1036 = vrot.slane %v828, 5
    %v1037 = vrot.slane %v1036, 4
    %v1040 = vmul.f32 %v1014, %v1035
    %v1041 = vmul.f32 %v1029, %v1037
    %1044 = vrot.lane.b32.xlu0 %v1030, 64
    %v1045 = vpop.permute.xlu0 %1044
    %1046 = vrot.lane.b32.xlu0 %v1031, 64
    %v1047 = vpop.permute.xlu0 %1046
    %v1050 = vmul.f32 %v1014, %v1045
    %v1051 = vmul.f32 %v1029, %v1047
    %1054 = vrot.lane.b32.xlu0 %v1050, 32
    %v1055 = vpop.permute.xlu0 %1054
    %1056 = vrot.lane.b32.xlu0 %v1051, 32
    %v1057 = vpop.permute.xlu0 %1056
    %v1060 = vadd.f32 %v1040, %v1055
    %v1061 = vadd.f32 %v1041, %v1057
    %v1062 = vtanh.pop %v1060
    %v1063 = vtanh.pop %v1061
    %1066 = vrot.lane.b32.xlu0 %v1062, 64
    %v1067 = vpop.permute.xlu0 %1066
    %1068 = vrot.lane.b32.xlu0 %v1063, 64
    %v1069 = vpop.permute.xlu0 %1068
    %v1072 = vmul.f32 %v1014, %v1067
    %v1073 = vmul.f32 %v1029, %v1069
    %v1076 = vperm.slane %v955, 3
    %v1077 = vperm.slane %v956, 3
    %v1078 = vsel %vm378, %v1077, %v1076
    %1079 = vrot.lane.b32.xlu0 %v1078, 32
    %v1080 = vpop.permute.xlu0 %1079
    %v1081 = vsel %vm165, %v1080, 0
    %1083 = vmatpush.msra.mxu0 0.0
    %1084 = vmatpush.msra.mxu0 0.0
    %1085 = vmatpush.msra.mxu0 0.0
    %1086 = vmatpush.msra.mxu0 0.0
    %1087 = vmatpush.msra.mxu0 0.0
    %1088 = vmatpush.msra.mxu0 0.0
    %1089 = vmatpush.msra.mxu0 0.0
    %1090 = vmatpush.msra.mxu0 0.0
    %1091 = vmatpush.msra.mxu0 0.0
    %1092 = vmatpush.msra.mxu0 0.0
    %1093 = vmatpush.msra.mxu0 0.0
    %1094 = vmatpush.msra.mxu0 0.0
    %1095 = vmatpush.msra.mxu0 %v160
    %1096 = vmatpush.msra.mxu0 %v159
    %1097 = vmatpush.msra.mxu0 %v158
    %1098 = vmatpush.msra.mxu0 %v157
    %1099 = vmatmul.f32.gmra.mxu0 %v1081
    %v1100 = vpop.f32.mrf.mxu0
    %v1101 = vadd.f32 0.0, %v1100
    %1102 = vdwg.mxu0
    %v1104 = vrot.slane %v1101, 1
    %v1107 = vadd.f32 %v144, %v1101
    %v1108 = vadd.f32 %v148, %v1104
    %v1109 = vxor.u32 %v1107, 2147483648
    %v1110 = vxor.u32 %v1108, 2147483648
    %v1111 = vmul.f32 %v1109, 1.442695
    %v1112 = vpow.pop %v1111
    %v1113 = vmul.f32 %v1110, 1.442695
    %v1114 = vpow.pop %v1113
    %v1115 = vadd.f32 %v1112, 1.0
    %v1116 = vadd.f32 %v1114, 1.0
    %v1117 = vrcp.pop %v1115
    %v1118 = vmul.f32 %v1115, %v1117
    %v1119 = vsub.f32 1.0, %v1118
    %v1120 = vmul.f32 %v1117, %v1119
    %v1121 = vadd.f32 %v1117, %v1120
    %vm1122 = vweird.f32 %v1115
    %vm1123 = vweird.f32 %v1117
    %vm1124 = vmor %vm1122, %vm1123
    %v1125 = vsel %vm1124, %v1117, %v1121
    %v1126 = vand.u32 2147483647, %v1115
    %vm1127 = vcmp.eq.f32.partialorder %v1126, 8.507059e+37
    %v1128 = vand.u32 %v1115, 2147483648
    %v1129 = vor.u32 1.1754944e-38, %v1128
    %v1130 = vsel %vm1127, %v1129, %v1125
    %v1131 = vmul.f32 1.0, %v1130
    %v1132 = vrcp.pop %v1116
    %v1133 = vmul.f32 %v1116, %v1132
    %v1134 = vsub.f32 1.0, %v1133
    %v1135 = vmul.f32 %v1132, %v1134
    %v1136 = vadd.f32 %v1132, %v1135
    %vm1137 = vweird.f32 %v1116
    %vm1138 = vweird.f32 %v1132
    %vm1139 = vmor %vm1137, %vm1138
    %v1140 = vsel %vm1139, %v1132, %v1136
    %v1141 = vand.u32 2147483647, %v1116
    %vm1142 = vcmp.eq.f32.partialorder %v1141, 8.507059e+37
    %v1143 = vand.u32 %v1116, 2147483648
    %v1144 = vor.u32 1.1754944e-38, %v1143
    %v1145 = vsel %vm1142, %v1144, %v1140
    %v1146 = vmul.f32 1.0, %v1145
    %v1147 = vtanh.pop %v1107
    %v1148 = vtanh.pop %v1108
    %v1151 = vrot.slane %v943, 7
    %v1152 = vrot.slane %v1151, 4
    %v1153 = vrot.slane %v944, 7
    %v1154 = vrot.slane %v1153, 4
    %v1157 = vmul.f32 %v1131, %v1152
    %v1158 = vmul.f32 %v1146, %v1154
    %1161 = vrot.lane.b32.xlu0 %v1147, 64
    %v1162 = vpop.permute.xlu0 %1161
    %1163 = vrot.lane.b32.xlu0 %v1148, 64
    %v1164 = vpop.permute.xlu0 %1163
    %v1167 = vmul.f32 %v1131, %v1162
    %v1168 = vmul.f32 %v1146, %v1164
    %1171 = vrot.lane.b32.xlu0 %v1167, 32
    %v1172 = vpop.permute.xlu0 %1171
    %1173 = vrot.lane.b32.xlu0 %v1168, 32
    %v1174 = vpop.permute.xlu0 %1173
    %v1177 = vadd.f32 %v1157, %v1172
    %v1178 = vadd.f32 %v1158, %v1174
    %v1179 = vtanh.pop %v1177
    %v1180 = vtanh.pop %v1178
    %1183 = vrot.lane.b32.xlu0 %v1179, 64
    %v1184 = vpop.permute.xlu0 %1183
    %1185 = vrot.lane.b32.xlu0 %v1180, 64
    %v1186 = vpop.permute.xlu0 %1185
    %v1189 = vmul.f32 %v1131, %v1184
    %v1190 = vmul.f32 %v1146, %v1186
    %v1191 = vrot.slane %v144, 4
    %v1192 = vrot.slane %v148, 4
    %v1197 = vperm.slane %v1072, 0
    %v1198 = vperm.slane %v1073, 0
    %v1199 = vsel %vm378, %v1198, %v1197
    %1200 = vrot.lane.b32.xlu0 %v1199, 32
    %v1201 = vpop.permute.xlu0 %1200
    %v1202 = vsel %vm165, %v1201, 0
    %1204 = vmatpush.msra.mxu0 0.0
    %1205 = vmatpush.msra.mxu0 0.0
    %1206 = vmatpush.msra.mxu0 0.0
    %1207 = vmatpush.msra.mxu0 0.0
    %1208 = vmatpush.msra.mxu0 0.0
    %1209 = vmatpush.msra.mxu0 0.0
    %1210 = vmatpush.msra.mxu0 0.0
    %1211 = vmatpush.msra.mxu0 0.0
    %1212 = vmatpush.msra.mxu0 0.0
    %1213 = vmatpush.msra.mxu0 0.0
    %1214 = vmatpush.msra.mxu0 0.0
    %1215 = vmatpush.msra.mxu0 0.0
    %1216 = vmatpush.msra.mxu0 %v164
    %1217 = vmatpush.msra.mxu0 %v163
    %1218 = vmatpush.msra.mxu0 %v162
    %1219 = vmatpush.msra.mxu0 %v161
    %1220 = vmatmul.f32.gmra.mxu0 %v1202
    %v1221 = vpop.f32.mrf.mxu0
    %v1222 = vadd.f32 0.0, %v1221
    %1223 = vdwg.mxu0
    %v1225 = vrot.slane %v1222, 5
    %v1226 = vrot.slane %v1222, 6
    %v1229 = vadd.f32 %v1191, %v1225
    %v1230 = vadd.f32 %v1192, %v1226
    %v1231 = vxor.u32 %v1229, 2147483648
    %v1232 = vxor.u32 %v1230, 2147483648
    %v1233 = vmul.f32 %v1231, 1.442695
    %v1234 = vpow.pop %v1233
    %v1235 = vmul.f32 %v1232, 1.442695
    %v1236 = vpow.pop %v1235
    %v1237 = vadd.f32 %v1234, 1.0
    %v1238 = vadd.f32 %v1236, 1.0
    %v1239 = vrcp.pop %v1237
    %v1240 = vmul.f32 %v1237, %v1239
    %v1241 = vsub.f32 1.0, %v1240
    %v1242 = vmul.f32 %v1239, %v1241
    %v1243 = vadd.f32 %v1239, %v1242
    %vm1244 = vweird.f32 %v1237
    %vm1245 = vweird.f32 %v1239
    %vm1246 = vmor %vm1244, %vm1245
    %v1247 = vsel %vm1246, %v1239, %v1243
    %v1248 = vand.u32 2147483647, %v1237
    %vm1249 = vcmp.eq.f32.partialorder %v1248, 8.507059e+37
    %v1250 = vand.u32 %v1237, 2147483648
    %v1251 = vor.u32 1.1754944e-38, %v1250
    %v1252 = vsel %vm1249, %v1251, %v1247
    %v1253 = vmul.f32 1.0, %v1252
    %v1254 = vrcp.pop %v1238
    %v1255 = vmul.f32 %v1238, %v1254
    %v1256 = vsub.f32 1.0, %v1255
    %v1257 = vmul.f32 %v1254, %v1256
    %v1258 = vadd.f32 %v1254, %v1257
    %vm1259 = vweird.f32 %v1238
    %vm1260 = vweird.f32 %v1254
    %vm1261 = vmor %vm1259, %vm1260
    %v1262 = vsel %vm1261, %v1254, %v1258
    %v1263 = vand.u32 2147483647, %v1238
    %vm1264 = vcmp.eq.f32.partialorder %v1263, 8.507059e+37
    %v1265 = vand.u32 %v1238, 2147483648
    %v1266 = vor.u32 1.1754944e-38, %v1265
    %v1267 = vsel %vm1264, %v1266, %v1262
    %v1268 = vmul.f32 1.0, %v1267
    %v1269 = vtanh.pop %v1229
    %v1270 = vtanh.pop %v1230
    %v1273 = vrot.slane %v1060, 5
    %v1274 = vrot.slane %v1061, 5
    %v1277 = vmul.f32 %v1253, %v1273
    %v1278 = vmul.f32 %v1268, %v1274
    %1281 = vrot.lane.b32.xlu0 %v1269, 64
    %v1282 = vpop.permute.xlu0 %1281
    %1283 = vrot.lane.b32.xlu0 %v1270, 64
    %v1284 = vpop.permute.xlu0 %1283
    %v1287 = vmul.f32 %v1253, %v1282
    %v1288 = vmul.f32 %v1268, %v1284
    %1291 = vrot.lane.b32.xlu0 %v1287, 32
    %v1292 = vpop.permute.xlu0 %1291
    %1293 = vrot.lane.b32.xlu0 %v1288, 32
    %v1294 = vpop.permute.xlu0 %1293
    %v1297 = vadd.f32 %v1277, %v1292
    %v1298 = vadd.f32 %v1278, %v1294
    %v1299 = vtanh.pop %v1297
    %v1300 = vtanh.pop %v1298
    %1303 = vrot.lane.b32.xlu0 %v1299, 64
    %v1304 = vpop.permute.xlu0 %1303
    %1305 = vrot.lane.b32.xlu0 %v1300, 64
    %v1306 = vpop.permute.xlu0 %1305
    %v1309 = vmul.f32 %v1253, %v1304
    %v1310 = vmul.f32 %v1268, %v1306
    %v1313 = vperm.slane %v1189, 0
    %v1314 = vperm.slane %v1190, 0
    %v1315 = vsel %vm378, %v1314, %v1313
    %1316 = vrot.lane.b32.xlu0 %v1315, 32
    %v1317 = vpop.permute.xlu0 %1316
    %v1318 = vsel %vm165, %v1317, 0
    %1320 = vmatpush.msra.mxu0 0.0
    %1321 = vmatpush.msra.mxu0 0.0
    %1322 = vmatpush.msra.mxu0 0.0
    %1323 = vmatpush.msra.mxu0 0.0
    %1324 = vmatpush.msra.mxu0 0.0
    %1325 = vmatpush.msra.mxu0 0.0
    %1326 = vmatpush.msra.mxu0 0.0
    %1327 = vmatpush.msra.mxu0 0.0
    %1328 = vmatpush.msra.mxu0 0.0
    %1329 = vmatpush.msra.mxu0 0.0
    %1330 = vmatpush.msra.mxu0 0.0
    %1331 = vmatpush.msra.mxu0 0.0
    %1332 = vmatpush.msra.mxu0 %v160
    %1333 = vmatpush.msra.mxu0 %v159
    %1334 = vmatpush.msra.mxu0 %v158
    %1335 = vmatpush.msra.mxu0 %v157
    %1336 = vmatmul.f32.gmra.mxu0 %v1318
    %v1337 = vpop.f32.mrf.mxu0
    %v1338 = vadd.f32 0.0, %v1337
    %1339 = vdwg.mxu0
    %v1341 = vrot.slane %v1338, 7
    %v1344 = vadd.f32 %v144, %v1341
    %v1345 = vadd.f32 %v148, %v1338
    %v1346 = vxor.u32 %v1344, 2147483648
    %v1347 = vxor.u32 %v1345, 2147483648
    %v1348 = vmul.f32 %v1346, 1.442695
    %v1349 = vpow.pop %v1348
    %v1350 = vmul.f32 %v1347, 1.442695
    %v1351 = vpow.pop %v1350
    %v1352 = vadd.f32 %v1349, 1.0
    %v1353 = vadd.f32 %v1351, 1.0
    %v1354 = vrcp.pop %v1352
    %v1355 = vmul.f32 %v1352, %v1354
    %v1356 = vsub.f32 1.0, %v1355
    %v1357 = vmul.f32 %v1354, %v1356
    %v1358 = vadd.f32 %v1354, %v1357
    %vm1359 = vweird.f32 %v1352
    %vm1360 = vweird.f32 %v1354
    %vm1361 = vmor %vm1359, %vm1360
    %v1362 = vsel %vm1361, %v1354, %v1358
    %v1363 = vand.u32 2147483647, %v1352
    %vm1364 = vcmp.eq.f32.partialorder %v1363, 8.507059e+37
    %v1365 = vand.u32 %v1352, 2147483648
    %v1366 = vor.u32 1.1754944e-38, %v1365
    %v1367 = vsel %vm1364, %v1366, %v1362
    %v1368 = vmul.f32 1.0, %v1367
    %v1369 = vrcp.pop %v1353
    %v1370 = vmul.f32 %v1353, %v1369
    %v1371 = vsub.f32 1.0, %v1370
    %v1372 = vmul.f32 %v1369, %v1371
    %v1373 = vadd.f32 %v1369, %v1372
    %vm1374 = vweird.f32 %v1353
    %vm1375 = vweird.f32 %v1369
    %vm1376 = vmor %vm1374, %vm1375
    %v1377 = vsel %vm1376, %v1369, %v1373
    %v1378 = vand.u32 2147483647, %v1353
    %vm1379 = vcmp.eq.f32.partialorder %v1378, 8.507059e+37
    %v1380 = vand.u32 %v1353, 2147483648
    %v1381 = vor.u32 1.1754944e-38, %v1380
    %v1382 = vsel %vm1379, %v1381, %v1377
    %v1383 = vmul.f32 1.0, %v1382
    %v1384 = vtanh.pop %v1344
    %v1385 = vtanh.pop %v1345
    %v1388 = vrot.slane %v1177, 7
    %v1389 = vrot.slane %v1178, 7
    %v1392 = vmul.f32 %v1368, %v1388
    %v1393 = vmul.f32 %v1383, %v1389
    %1396 = vrot.lane.b32.xlu0 %v1384, 64
    %v1397 = vpop.permute.xlu0 %1396
    %1398 = vrot.lane.b32.xlu0 %v1385, 64
    %v1399 = vpop.permute.xlu0 %1398
    %v1402 = vmul.f32 %v1368, %v1397
    %v1403 = vmul.f32 %v1383, %v1399
    %1406 = vrot.lane.b32.xlu0 %v1402, 32
    %v1407 = vpop.permute.xlu0 %1406
    %1408 = vrot.lane.b32.xlu0 %v1403, 32
    %v1409 = vpop.permute.xlu0 %1408
    %v1412 = vadd.f32 %v1392, %v1407
    %v1413 = vadd.f32 %v1393, %v1409
    %v1414 = vtanh.pop %v1412
    %v1415 = vtanh.pop %v1413
    %1418 = vrot.lane.b32.xlu0 %v1414, 64
    %v1419 = vpop.permute.xlu0 %1418
    %1420 = vrot.lane.b32.xlu0 %v1415, 64
    %v1421 = vpop.permute.xlu0 %1420
    %v1424 = vmul.f32 %v1368, %v1419
    %v1425 = vmul.f32 %v1383, %v1421
    %v1428 = vperm.slane %v1309, 3
    %v1429 = vperm.slane %v1310, 3
    %v1430 = vsel %vm378, %v1429, %v1428
    %1431 = vrot.lane.b32.xlu0 %v1430, 32
    %v1432 = vpop.permute.xlu0 %1431
    %v1433 = vsel %vm165, %v1432, 0
    %1435 = vmatpush.msra.mxu0 0.0
    %1436 = vmatpush.msra.mxu0 0.0
    %1437 = vmatpush.msra.mxu0 0.0
    %1438 = vmatpush.msra.mxu0 0.0
    %1439 = vmatpush.msra.mxu0 0.0
    %1440 = vmatpush.msra.mxu0 0.0
    %1441 = vmatpush.msra.mxu0 0.0
    %1442 = vmatpush.msra.mxu0 0.0
    %1443 = vmatpush.msra.mxu0 0.0
    %1444 = vmatpush.msra.mxu0 0.0
    %1445 = vmatpush.msra.mxu0 0.0
    %1446 = vmatpush.msra.mxu0 0.0
    %1447 = vmatpush.msra.mxu0 %v164
    %1448 = vmatpush.msra.mxu0 %v163
    %1449 = vmatpush.msra.mxu0 %v162
    %1450 = vmatpush.msra.mxu0 %v161
    %1451 = vmatmul.f32.gmra.mxu0 %v1433
    %v1452 = vpop.f32.mrf.mxu0
    %v1453 = vadd.f32 0.0, %v1452
    %1454 = vdwg.mxu0
    %v1456 = vrot.slane %v1453, 6
    %v1457 = vrot.slane %v1453, 7
    %v1460 = vadd.f32 %v1191, %v1456
    %v1461 = vadd.f32 %v1192, %v1457
    %v1462 = vxor.u32 %v1460, 2147483648
    %v1463 = vxor.u32 %v1461, 2147483648
    %v1464 = vmul.f32 %v1462, 1.442695
    %v1465 = vpow.pop %v1464
    %v1466 = vmul.f32 %v1463, 1.442695
    %v1467 = vpow.pop %v1466
    %v1468 = vadd.f32 %v1465, 1.0
    %v1469 = vadd.f32 %v1467, 1.0
    %v1470 = vrcp.pop %v1468
    %v1471 = vmul.f32 %v1468, %v1470
    %v1472 = vsub.f32 1.0, %v1471
    %v1473 = vmul.f32 %v1470, %v1472
    %v1474 = vadd.f32 %v1470, %v1473
    %vm1475 = vweird.f32 %v1468
    %vm1476 = vweird.f32 %v1470
    %vm1477 = vmor %vm1475, %vm1476
    %v1478 = vsel %vm1477, %v1470, %v1474
    %v1479 = vand.u32 2147483647, %v1468
    %vm1480 = vcmp.eq.f32.partialorder %v1479, 8.507059e+37
    %v1481 = vand.u32 %v1468, 2147483648
    %v1482 = vor.u32 1.1754944e-38, %v1481
    %v1483 = vsel %vm1480, %v1482, %v1478
    %v1484 = vmul.f32 1.0, %v1483
    %v1485 = vrcp.pop %v1469
    %v1486 = vmul.f32 %v1469, %v1485
    %v1487 = vsub.f32 1.0, %v1486
    %v1488 = vmul.f32 %v1485, %v1487
    %v1489 = vadd.f32 %v1485, %v1488
    %vm1490 = vweird.f32 %v1469
    %vm1491 = vweird.f32 %v1485
    %vm1492 = vmor %vm1490, %vm1491
    %v1493 = vsel %vm1492, %v1485, %v1489
    %v1494 = vand.u32 2147483647, %v1469
    %vm1495 = vcmp.eq.f32.partialorder %v1494, 8.507059e+37
    %v1496 = vand.u32 %v1469, 2147483648
    %v1497 = vor.u32 1.1754944e-38, %v1496
    %v1498 = vsel %vm1495, %v1497, %v1493
    %v1499 = vmul.f32 1.0, %v1498
    %v1500 = vtanh.pop %v1460
    %v1501 = vtanh.pop %v1461
    %v1504 = vrot.slane %v1297, 5
    %v1505 = vrot.slane %v1504, 4
    %v1506 = vrot.slane %v1298, 5
    %v1507 = vrot.slane %v1506, 4
    %v1510 = vmul.f32 %v1484, %v1505
    %v1511 = vmul.f32 %v1499, %v1507
    %1514 = vrot.lane.b32.xlu0 %v1500, 64
    %v1515 = vpop.permute.xlu0 %1514
    %1516 = vrot.lane.b32.xlu0 %v1501, 64
    %v1517 = vpop.permute.xlu0 %1516
    %v1520 = vmul.f32 %v1484, %v1515
    %v1521 = vmul.f32 %v1499, %v1517
    %1524 = vrot.lane.b32.xlu0 %v1520, 32
    %v1525 = vpop.permute.xlu0 %1524
    %1526 = vrot.lane.b32.xlu0 %v1521, 32
    %v1527 = vpop.permute.xlu0 %1526
    %v1530 = vadd.f32 %v1510, %v1525
    %v1531 = vadd.f32 %v1511, %v1527
    %v1532 = vtanh.pop %v1530
    %v1533 = vtanh.pop %v1531
    %1536 = vrot.lane.b32.xlu0 %v1532, 64
    %v1537 = vpop.permute.xlu0 %1536
    %1538 = vrot.lane.b32.xlu0 %v1533, 64
    %v1539 = vpop.permute.xlu0 %1538
    %v1542 = vmul.f32 %v1484, %v1537
    %v1543 = vmul.f32 %v1499, %v1539
    %v1546 = vperm.slane %v1424, 1
    %v1547 = vperm.slane %v1425, 1
    %v1548 = vsel %vm378, %v1547, %v1546
    %1549 = vrot.lane.b32.xlu0 %v1548, 32
    %v1550 = vpop.permute.xlu0 %1549
    %v1551 = vsel %vm165, %v1550, 0
    %1553 = vmatpush.msra.mxu0 0.0
    %1554 = vmatpush.msra.mxu0 0.0
    %1555 = vmatpush.msra.mxu0 0.0
    %1556 = vmatpush.msra.mxu0 0.0
    %1557 = vmatpush.msra.mxu0 0.0
    %1558 = vmatpush.msra.mxu0 0.0
    %1559 = vmatpush.msra.mxu0 0.0
    %1560 = vmatpush.msra.mxu0 0.0
    %1561 = vmatpush.msra.mxu0 0.0
    %1562 = vmatpush.msra.mxu0 0.0
    %1563 = vmatpush.msra.mxu0 0.0
    %1564 = vmatpush.msra.mxu0 0.0
    %1565 = vmatpush.msra.mxu0 %v160
    %1566 = vmatpush.msra.mxu0 %v159
    %1567 = vmatpush.msra.mxu0 %v158
    %1568 = vmatpush.msra.mxu0 %v157
    %1569 = vmatmul.f32.gmra.mxu0 %v1551
    %v1570 = vpop.f32.mrf.mxu0
    %v1571 = vadd.f32 0.0, %v1570
    %1572 = vdwg.mxu0
    %v1574 = vrot.slane %v1571, 6
    %v1575 = vrot.slane %v1571, 7
    %v1578 = vadd.f32 %v144, %v1574
    %v1579 = vadd.f32 %v148, %v1575
    %v1580 = vxor.u32 %v1578, 2147483648
    %v1581 = vxor.u32 %v1579, 2147483648
    %v1582 = vmul.f32 %v1580, 1.442695
    %v1583 = vpow.pop %v1582
    %v1584 = vmul.f32 %v1581, 1.442695
    %v1585 = vpow.pop %v1584
    %v1586 = vadd.f32 %v1583, 1.0
    %v1587 = vadd.f32 %v1585, 1.0
    %v1588 = vrcp.pop %v1586
    %v1589 = vmul.f32 %v1586, %v1588
    %v1590 = vsub.f32 1.0, %v1589
    %v1591 = vmul.f32 %v1588, %v1590
    %v1592 = vadd.f32 %v1588, %v1591
    %vm1593 = vweird.f32 %v1586
    %vm1594 = vweird.f32 %v1588
    %vm1595 = vmor %vm1593, %vm1594
    %v1596 = vsel %vm1595, %v1588, %v1592
    %v1597 = vand.u32 2147483647, %v1586
    %vm1598 = vcmp.eq.f32.partialorder %v1597, 8.507059e+37
    %v1599 = vand.u32 %v1586, 2147483648
    %v1600 = vor.u32 1.1754944e-38, %v1599
    %v1601 = vsel %vm1598, %v1600, %v1596
    %v1602 = vmul.f32 1.0, %v1601
    %v1603 = vrcp.pop %v1587
    %v1604 = vmul.f32 %v1587, %v1603
    %v1605 = vsub.f32 1.0, %v1604
    %v1606 = vmul.f32 %v1603, %v1605
    %v1607 = vadd.f32 %v1603, %v1606
    %vm1608 = vweird.f32 %v1587
    %vm1609 = vweird.f32 %v1603
    %vm1610 = vmor %vm1608, %vm1609
    %v1611 = vsel %vm1610, %v1603, %v1607
    %v1612 = vand.u32 2147483647, %v1587
    %vm1613 = vcmp.eq.f32.partialorder %v1612, 8.507059e+37
    %v1614 = vand.u32 %v1587, 2147483648
    %v1615 = vor.u32 1.1754944e-38, %v1614
    %v1616 = vsel %vm1613, %v1615, %v1611
    %v1617 = vmul.f32 1.0, %v1616
    %v1618 = vtanh.pop %v1578
    %v1619 = vtanh.pop %v1579
    %v1622 = vrot.slane %v1412, 7
    %v1623 = vrot.slane %v1413, 7
    %v1626 = vmul.f32 %v1602, %v1622
    %v1627 = vmul.f32 %v1617, %v1623
    %1630 = vrot.lane.b32.xlu0 %v1618, 64
    %v1631 = vpop.permute.xlu0 %1630
    %1632 = vrot.lane.b32.xlu0 %v1619, 64
    %v1633 = vpop.permute.xlu0 %1632
    %v1636 = vmul.f32 %v1602, %v1631
    %v1637 = vmul.f32 %v1617, %v1633
    %1640 = vrot.lane.b32.xlu0 %v1636, 32
    %v1641 = vpop.permute.xlu0 %1640
    %1642 = vrot.lane.b32.xlu0 %v1637, 32
    %v1643 = vpop.permute.xlu0 %1642
    %v1646 = vadd.f32 %v1626, %v1641
    %v1647 = vadd.f32 %v1627, %v1643
    %v1648 = vtanh.pop %v1646
    %v1649 = vtanh.pop %v1647
    %1652 = vrot.lane.b32.xlu0 %v1648, 64
    %v1653 = vpop.permute.xlu0 %1652
    %1654 = vrot.lane.b32.xlu0 %v1649, 64
    %v1655 = vpop.permute.xlu0 %1654
    %v1658 = vmul.f32 %v1602, %v1653
    %v1659 = vmul.f32 %v1617, %v1655
    %v1662 = vperm.slane %v1542, 2
    %v1663 = vperm.slane %v1543, 2
    %v1664 = vsel %vm378, %v1663, %v1662
    %1665 = vrot.lane.b32.xlu0 %v1664, 32
    %v1666 = vpop.permute.xlu0 %1665
    %v1667 = vsel %vm165, %v1666, 0
    %1669 = vmatpush.msra.mxu0 0.0
    %1670 = vmatpush.msra.mxu0 0.0
    %1671 = vmatpush.msra.mxu0 0.0
    %1672 = vmatpush.msra.mxu0 0.0
    %1673 = vmatpush.msra.mxu0 0.0
    %1674 = vmatpush.msra.mxu0 0.0
    %1675 = vmatpush.msra.mxu0 0.0
    %1676 = vmatpush.msra.mxu0 0.0
    %1677 = vmatpush.msra.mxu0 0.0
    %1678 = vmatpush.msra.mxu0 0.0
    %1679 = vmatpush.msra.mxu0 0.0
    %1680 = vmatpush.msra.mxu0 0.0
    %1681 = vmatpush.msra.mxu0 %v164
    %1682 = vmatpush.msra.mxu0 %v163
    %1683 = vmatpush.msra.mxu0 %v162
    %1684 = vmatpush.msra.mxu0 %v161
    %1685 = vmatmul.f32.gmra.mxu0 %v1667
    %v1686 = vpop.f32.mrf.mxu0
    %v1687 = vadd.f32 0.0, %v1686
    %1688 = vdwg.mxu0
    %v1690 = vrot.slane %v1687, 7
    %v1693 = vadd.f32 %v1191, %v1690
    %v1694 = vadd.f32 %v1192, %v1687
    %v1695 = vxor.u32 %v1693, 2147483648
    %v1696 = vxor.u32 %v1694, 2147483648
    %v1697 = vmul.f32 %v1695, 1.442695
    %v1698 = vpow.pop %v1697
    %v1699 = vmul.f32 %v1696, 1.442695
    %v1700 = vpow.pop %v1699
    %v1701 = vadd.f32 %v1698, 1.0
    %v1702 = vadd.f32 %v1700, 1.0
    %v1703 = vrcp.pop %v1701
    %v1704 = vmul.f32 %v1701, %v1703
    %v1705 = vsub.f32 1.0, %v1704
    %v1706 = vmul.f32 %v1703, %v1705
    %v1707 = vadd.f32 %v1703, %v1706
    %vm1708 = vweird.f32 %v1701
    %vm1709 = vweird.f32 %v1703
    %vm1710 = vmor %vm1708, %vm1709
    %v1711 = vsel %vm1710, %v1703, %v1707
    %v1712 = vand.u32 2147483647, %v1701
    %vm1713 = vcmp.eq.f32.partialorder %v1712, 8.507059e+37
    %v1714 = vand.u32 %v1701, 2147483648
    %v1715 = vor.u32 1.1754944e-38, %v1714
    %v1716 = vsel %vm1713, %v1715, %v1711
    %v1717 = vmul.f32 1.0, %v1716
    %v1718 = vrcp.pop %v1702
    %v1719 = vmul.f32 %v1702, %v1718
    %v1720 = vsub.f32 1.0, %v1719
    %v1721 = vmul.f32 %v1718, %v1720
    %v1722 = vadd.f32 %v1718, %v1721
    %vm1723 = vweird.f32 %v1702
    %vm1724 = vweird.f32 %v1718
    %vm1725 = vmor %vm1723, %vm1724
    %v1726 = vsel %vm1725, %v1718, %v1722
    %v1727 = vand.u32 2147483647, %v1702
    %vm1728 = vcmp.eq.f32.partialorder %v1727, 8.507059e+37
    %v1729 = vand.u32 %v1702, 2147483648
    %v1730 = vor.u32 1.1754944e-38, %v1729
    %v1731 = vsel %vm1728, %v1730, %v1726
    %v1732 = vmul.f32 1.0, %v1731
    %v1733 = vtanh.pop %v1693
    %v1734 = vtanh.pop %v1694
    %v1737 = vrot.slane %v1530, 5
    %v1738 = vrot.slane %v1737, 4
    %v1739 = vrot.slane %v1531, 5
    %v1740 = vrot.slane %v1739, 4
    %v1743 = vmul.f32 %v1717, %v1738
    %v1744 = vmul.f32 %v1732, %v1740
    %1747 = vrot.lane.b32.xlu0 %v1733, 64
    %v1748 = vpop.permute.xlu0 %1747
    %1749 = vrot.lane.b32.xlu0 %v1734, 64
    %v1750 = vpop.permute.xlu0 %1749
    %v1753 = vmul.f32 %v1717, %v1748
    %v1754 = vmul.f32 %v1732, %v1750
    %1757 = vrot.lane.b32.xlu0 %v1753, 32
    %v1758 = vpop.permute.xlu0 %1757
    %1759 = vrot.lane.b32.xlu0 %v1754, 32
    %v1760 = vpop.permute.xlu0 %1759
    %v1763 = vadd.f32 %v1743, %v1758
    %v1764 = vadd.f32 %v1744, %v1760
    %v1765 = vtanh.pop %v1763
    %v1766 = vtanh.pop %v1764
    %1769 = vrot.lane.b32.xlu0 %v1765, 64
    %v1770 = vpop.permute.xlu0 %1769
    %1771 = vrot.lane.b32.xlu0 %v1766, 64
    %v1772 = vpop.permute.xlu0 %1771
    %v1775 = vmul.f32 %v1717, %v1770
    %v1776 = vmul.f32 %v1732, %v1772
    %v1779 = vperm.slane %v1658, 2
    %v1780 = vperm.slane %v1659, 2
    %v1781 = vsel %vm378, %v1780, %v1779
    %1782 = vrot.lane.b32.xlu0 %v1781, 32
    %v1783 = vpop.permute.xlu0 %1782
    %v1784 = vsel %vm165, %v1783, 0
    %1786 = vmatpush.msra.mxu0 0.0
    %1787 = vmatpush.msra.mxu0 0.0
    %1788 = vmatpush.msra.mxu0 0.0
    %1789 = vmatpush.msra.mxu0 0.0
    %1790 = vmatpush.msra.mxu0 0.0
    %1791 = vmatpush.msra.mxu0 0.0
    %1792 = vmatpush.msra.mxu0 0.0
    %1793 = vmatpush.msra.mxu0 0.0
    %1794 = vmatpush.msra.mxu0 0.0
    %1795 = vmatpush.msra.mxu0 0.0
    %1796 = vmatpush.msra.mxu0 0.0
    %1797 = vmatpush.msra.mxu0 0.0
    %1798 = vmatpush.msra.mxu0 %v160
    %1799 = vmatpush.msra.mxu0 %v159
    %1800 = vmatpush.msra.mxu0 %v158
    %1801 = vmatpush.msra.mxu0 %v157
    %1802 = vmatmul.f32.gmra.mxu0 %v1784
    %v1803 = vpop.f32.mrf.mxu0
    %v1804 = vadd.f32 0.0, %v1803
    %1805 = vdwg.mxu0
    %v1807 = vrot.slane %v1804, 5
    %v1808 = vrot.slane %v1804, 6
    %v1811 = vadd.f32 %v144, %v1807
    %v1812 = vadd.f32 %v148, %v1808
    %v1813 = vxor.u32 %v1811, 2147483648
    %v1814 = vxor.u32 %v1812, 2147483648
    %v1815 = vmul.f32 %v1813, 1.442695
    %v1816 = vpow.pop %v1815
    %v1817 = vmul.f32 %v1814, 1.442695
    %v1818 = vpow.pop %v1817
    %v1819 = vadd.f32 %v1816, 1.0
    %v1820 = vadd.f32 %v1818, 1.0
    %v1821 = vrcp.pop %v1819
    %v1822 = vmul.f32 %v1819, %v1821
    %v1823 = vsub.f32 1.0, %v1822
    %v1824 = vmul.f32 %v1821, %v1823
    %v1825 = vadd.f32 %v1821, %v1824
    %vm1826 = vweird.f32 %v1819
    %vm1827 = vweird.f32 %v1821
    %vm1828 = vmor %vm1826, %vm1827
    %v1829 = vsel %vm1828, %v1821, %v1825
    %v1830 = vand.u32 2147483647, %v1819
    %vm1831 = vcmp.eq.f32.partialorder %v1830, 8.507059e+37
    %v1832 = vand.u32 %v1819, 2147483648
    %v1833 = vor.u32 1.1754944e-38, %v1832
    %v1834 = vsel %vm1831, %v1833, %v1829
    %v1835 = vmul.f32 1.0, %v1834
    %v1836 = vrcp.pop %v1820
    %v1837 = vmul.f32 %v1820, %v1836
    %v1838 = vsub.f32 1.0, %v1837
    %v1839 = vmul.f32 %v1836, %v1838
    %v1840 = vadd.f32 %v1836, %v1839
    %vm1841 = vweird.f32 %v1820
    %vm1842 = vweird.f32 %v1836
    %vm1843 = vmor %vm1841, %vm1842
    %v1844 = vsel %vm1843, %v1836, %v1840
    %v1845 = vand.u32 2147483647, %v1820
    %vm1846 = vcmp.eq.f32.partialorder %v1845, 8.507059e+37
    %v1847 = vand.u32 %v1820, 2147483648
    %v1848 = vor.u32 1.1754944e-38, %v1847
    %v1849 = vsel %vm1846, %v1848, %v1844
    %v1850 = vmul.f32 1.0, %v1849
    %v1851 = vtanh.pop %v1811
    %v1852 = vtanh.pop %v1812
    %v1855 = vrot.slane %v1646, 7
    %v1856 = vrot.slane %v1647, 7
    %v1859 = vmul.f32 %v1835, %v1855
    %v1860 = vmul.f32 %v1850, %v1856
    %1863 = vrot.lane.b32.xlu0 %v1851, 64
    %v1864 = vpop.permute.xlu0 %1863
    %1865 = vrot.lane.b32.xlu0 %v1852, 64
    %v1866 = vpop.permute.xlu0 %1865
    %v1869 = vmul.f32 %v1835, %v1864
    %v1870 = vmul.f32 %v1850, %v1866
    %1873 = vrot.lane.b32.xlu0 %v1869, 32
    %v1874 = vpop.permute.xlu0 %1873
    %1875 = vrot.lane.b32.xlu0 %v1870, 32
    %v1876 = vpop.permute.xlu0 %1875
    %v1879 = vadd.f32 %v1859, %v1874
    %v1880 = vadd.f32 %v1860, %v1876
    %v1881 = vtanh.pop %v1879
    %v1882 = vtanh.pop %v1880
    %1885 = vrot.lane.b32.xlu0 %v1881, 64
    %v1886 = vpop.permute.xlu0 %1885
    %1887 = vrot.lane.b32.xlu0 %v1882, 64
    %v1888 = vpop.permute.xlu0 %1887
    %v1891 = vmul.f32 %v1835, %v1886
    %v1892 = vmul.f32 %v1850, %v1888
    %v1895 = vperm.slane %v1775, 1
    %v1896 = vperm.slane %v1776, 1
    %v1897 = vsel %vm378, %v1896, %v1895
    %1898 = vrot.lane.b32.xlu0 %v1897, 32
    %v1899 = vpop.permute.xlu0 %1898
    %v1900 = vsel %vm165, %v1899, 0
    %1902 = vmatpush.msra.mxu0 0.0
    %1903 = vmatpush.msra.mxu0 0.0
    %1904 = vmatpush.msra.mxu0 0.0
    %1905 = vmatpush.msra.mxu0 0.0
    %1906 = vmatpush.msra.mxu0 0.0
    %1907 = vmatpush.msra.mxu0 0.0
    %1908 = vmatpush.msra.mxu0 0.0
    %1909 = vmatpush.msra.mxu0 0.0
    %1910 = vmatpush.msra.mxu0 0.0
    %1911 = vmatpush.msra.mxu0 0.0
    %1912 = vmatpush.msra.mxu0 0.0
    %1913 = vmatpush.msra.mxu0 0.0
    %1914 = vmatpush.msra.mxu0 %v164
    %1915 = vmatpush.msra.mxu0 %v163
    %1916 = vmatpush.msra.mxu0 %v162
    %1917 = vmatpush.msra.mxu0 %v161
    %1918 = vmatmul.f32.gmra.mxu0 %v1900
    %v1919 = vpop.f32.mrf.mxu0
    %v1920 = vadd.f32 0.0, %v1919
    %1921 = vdwg.mxu0
    %v1923 = vrot.slane %v1920, 1
    %v1926 = vadd.f32 %v1191, %v1920
    %v1927 = vadd.f32 %v1192, %v1923
    %v1928 = vxor.u32 %v1926, 2147483648
    %v1929 = vxor.u32 %v1927, 2147483648
    %v1930 = vmul.f32 %v1928, 1.442695
    %v1931 = vpow.pop %v1930
    %v1932 = vmul.f32 %v1929, 1.442695
    %v1933 = vpow.pop %v1932
    %v1934 = vadd.f32 %v1931, 1.0
    %v1935 = vadd.f32 %v1933, 1.0
    %v1936 = vrcp.pop %v1934
    %v1937 = vmul.f32 %v1934, %v1936
    %v1938 = vsub.f32 1.0, %v1937
    %v1939 = vmul.f32 %v1936, %v1938
    %v1940 = vadd.f32 %v1936, %v1939
    %vm1941 = vweird.f32 %v1934
    %vm1942 = vweird.f32 %v1936
    %vm1943 = vmor %vm1941, %vm1942
    %v1944 = vsel %vm1943, %v1936, %v1940
    %v1945 = vand.u32 2147483647, %v1934
    %vm1946 = vcmp.eq.f32.partialorder %v1945, 8.507059e+37
    %v1947 = vand.u32 %v1934, 2147483648
    %v1948 = vor.u32 1.1754944e-38, %v1947
    %v1949 = vsel %vm1946, %v1948, %v1944
    %v1950 = vmul.f32 1.0, %v1949
    %v1951 = vrcp.pop %v1935
    %v1952 = vmul.f32 %v1935, %v1951
    %v1953 = vsub.f32 1.0, %v1952
    %v1954 = vmul.f32 %v1951, %v1953
    %v1955 = vadd.f32 %v1951, %v1954
    %vm1956 = vweird.f32 %v1935
    %vm1957 = vweird.f32 %v1951
    %vm1958 = vmor %vm1956, %vm1957
    %v1959 = vsel %vm1958, %v1951, %v1955
    %v1960 = vand.u32 2147483647, %v1935
    %vm1961 = vcmp.eq.f32.partialorder %v1960, 8.507059e+37
    %v1962 = vand.u32 %v1935, 2147483648
    %v1963 = vor.u32 1.1754944e-38, %v1962
    %v1964 = vsel %vm1961, %v1963, %v1959
    %v1965 = vmul.f32 1.0, %v1964
    %v1966 = vtanh.pop %v1926
    %v1967 = vtanh.pop %v1927
    %v1970 = vrot.slane %v1763, 5
    %v1971 = vrot.slane %v1970, 4
    %v1972 = vrot.slane %v1764, 5
    %v1973 = vrot.slane %v1972, 4
    %v1976 = vmul.f32 %v1950, %v1971
    %v1977 = vmul.f32 %v1965, %v1973
    %1980 = vrot.lane.b32.xlu0 %v1966, 64
    %v1981 = vpop.permute.xlu0 %1980
    %1982 = vrot.lane.b32.xlu0 %v1967, 64
    %v1983 = vpop.permute.xlu0 %1982
    %v1986 = vmul.f32 %v1950, %v1981
    %v1987 = vmul.f32 %v1965, %v1983
    %1990 = vrot.lane.b32.xlu0 %v1986, 32
    %v1991 = vpop.permute.xlu0 %1990
    %1992 = vrot.lane.b32.xlu0 %v1987, 32
    %v1993 = vpop.permute.xlu0 %1992
    %v1996 = vadd.f32 %v1976, %v1991
    %v1997 = vadd.f32 %v1977, %v1993
    %v1998 = vtanh.pop %v1996
    %v1999 = vtanh.pop %v1997
    %2002 = vrot.lane.b32.xlu0 %v1998, 64
    %v2003 = vpop.permute.xlu0 %2002
    %2004 = vrot.lane.b32.xlu0 %v1999, 64
    %v2005 = vpop.permute.xlu0 %2004
    %v2008 = vmul.f32 %v1950, %v2003
    %v2009 = vmul.f32 %v1965, %v2005
    %v2012 = vperm.slane %v1891, 3
    %v2013 = vperm.slane %v1892, 3
    %v2014 = vsel %vm378, %v2013, %v2012
    %2015 = vrot.lane.b32.xlu0 %v2014, 32
    %v2016 = vpop.permute.xlu0 %2015
    %v2017 = vsel %vm165, %v2016, 0
    %2019 = vmatpush.msra.mxu0 0.0
    %2020 = vmatpush.msra.mxu0 0.0
    %2021 = vmatpush.msra.mxu0 0.0
    %2022 = vmatpush.msra.mxu0 0.0
    %2023 = vmatpush.msra.mxu0 0.0
    %2024 = vmatpush.msra.mxu0 0.0
    %2025 = vmatpush.msra.mxu0 0.0
    %2026 = vmatpush.msra.mxu0 0.0
    %2027 = vmatpush.msra.mxu0 0.0
    %2028 = vmatpush.msra.mxu0 0.0
    %2029 = vmatpush.msra.mxu0 0.0
    %2030 = vmatpush.msra.mxu0 0.0
    %2031 = vmatpush.msra.mxu0 %v160
    %2032 = vmatpush.msra.mxu0 %v159
    %2033 = vmatpush.msra.mxu0 %v158
    %2034 = vmatpush.msra.mxu0 %v157
    %2035 = vmatmul.f32.gmra.mxu0 %v2017
    %v2036 = vpop.f32.mrf.mxu0
    %v2037 = vadd.f32 0.0, %v2036
    %2038 = vdwg.mxu0
    %v2040 = vrot.slane %v2037, 1
    %v2043 = vadd.f32 %v145, %v2037
    %v2044 = vadd.f32 %v150, %v2040
    %v2045 = vxor.u32 %v2043, 2147483648
    %v2046 = vxor.u32 %v2044, 2147483648
    %v2047 = vmul.f32 %v2045, 1.442695
    %v2048 = vpow.pop %v2047
    %v2049 = vmul.f32 %v2046, 1.442695
    %v2050 = vpow.pop %v2049
    %v2051 = vadd.f32 %v2048, 1.0
    %v2052 = vadd.f32 %v2050, 1.0
    %v2053 = vrcp.pop %v2051
    %v2054 = vmul.f32 %v2051, %v2053
    %v2055 = vsub.f32 1.0, %v2054
    %v2056 = vmul.f32 %v2053, %v2055
    %v2057 = vadd.f32 %v2053, %v2056
    %vm2058 = vweird.f32 %v2051
    %vm2059 = vweird.f32 %v2053
    %vm2060 = vmor %vm2058, %vm2059
    %v2061 = vsel %vm2060, %v2053, %v2057
    %v2062 = vand.u32 2147483647, %v2051
    %vm2063 = vcmp.eq.f32.partialorder %v2062, 8.507059e+37
    %v2064 = vand.u32 %v2051, 2147483648
    %v2065 = vor.u32 1.1754944e-38, %v2064
    %v2066 = vsel %vm2063, %v2065, %v2061
    %v2067 = vmul.f32 1.0, %v2066
    %v2068 = vrcp.pop %v2052
    %v2069 = vmul.f32 %v2052, %v2068
    %v2070 = vsub.f32 1.0, %v2069
    %v2071 = vmul.f32 %v2068, %v2070
    %v2072 = vadd.f32 %v2068, %v2071
    %vm2073 = vweird.f32 %v2052
    %vm2074 = vweird.f32 %v2068
    %vm2075 = vmor %vm2073, %vm2074
    %v2076 = vsel %vm2075, %v2068, %v2072
    %v2077 = vand.u32 2147483647, %v2052
    %vm2078 = vcmp.eq.f32.partialorder %v2077, 8.507059e+37
    %v2079 = vand.u32 %v2052, 2147483648
    %v2080 = vor.u32 1.1754944e-38, %v2079
    %v2081 = vsel %vm2078, %v2080, %v2076
    %v2082 = vmul.f32 1.0, %v2081
    %v2083 = vtanh.pop %v2043
    %v2084 = vtanh.pop %v2044
    %v2087 = vrot.slane %v1879, 7
    %v2088 = vrot.slane %v2087, 4
    %v2089 = vrot.slane %v1880, 7
    %v2090 = vrot.slane %v2089, 4
    %v2093 = vmul.f32 %v2067, %v2088
    %v2094 = vmul.f32 %v2082, %v2090
    %2097 = vrot.lane.b32.xlu0 %v2083, 64
    %v2098 = vpop.permute.xlu0 %2097
    %2099 = vrot.lane.b32.xlu0 %v2084, 64
    %v2100 = vpop.permute.xlu0 %2099
    %v2103 = vmul.f32 %v2067, %v2098
    %v2104 = vmul.f32 %v2082, %v2100
    %2107 = vrot.lane.b32.xlu0 %v2103, 32
    %v2108 = vpop.permute.xlu0 %2107
    %2109 = vrot.lane.b32.xlu0 %v2104, 32
    %v2110 = vpop.permute.xlu0 %2109
    %v2113 = vadd.f32 %v2093, %v2108
    %v2114 = vadd.f32 %v2094, %v2110
    %v2115 = vtanh.pop %v2113
    %v2116 = vtanh.pop %v2114
    %2119 = vrot.lane.b32.xlu0 %v2115, 64
    %v2120 = vpop.permute.xlu0 %2119
    %2121 = vrot.lane.b32.xlu0 %v2116, 64
    %v2122 = vpop.permute.xlu0 %2121
    %v2125 = vmul.f32 %v2067, %v2120
    %v2126 = vmul.f32 %v2082, %v2122
    %v2127 = vrot.slane %v142, 4
    %v2128 = vrot.slane %v147, 4
    %v2133 = vperm.slane %v2008, 0
    %v2134 = vperm.slane %v2009, 0
    %v2135 = vsel %vm378, %v2134, %v2133
    %2136 = vrot.lane.b32.xlu0 %v2135, 32
    %v2137 = vpop.permute.xlu0 %2136
    %v2138 = vsel %vm165, %v2137, 0
    %2140 = vmatpush.msra.mxu0 0.0
    %2141 = vmatpush.msra.mxu0 0.0
    %2142 = vmatpush.msra.mxu0 0.0
    %2143 = vmatpush.msra.mxu0 0.0
    %2144 = vmatpush.msra.mxu0 0.0
    %2145 = vmatpush.msra.mxu0 0.0
    %2146 = vmatpush.msra.mxu0 0.0
    %2147 = vmatpush.msra.mxu0 0.0
    %2148 = vmatpush.msra.mxu0 0.0
    %2149 = vmatpush.msra.mxu0 0.0
    %2150 = vmatpush.msra.mxu0 0.0
    %2151 = vmatpush.msra.mxu0 0.0
    %2152 = vmatpush.msra.mxu0 %v164
    %2153 = vmatpush.msra.mxu0 %v163
    %2154 = vmatpush.msra.mxu0 %v162
    %2155 = vmatpush.msra.mxu0 %v161
    %2156 = vmatmul.f32.gmra.mxu0 %v2138
    %v2157 = vpop.f32.mrf.mxu0
    %v2158 = vadd.f32 0.0, %v2157
    %2159 = vdwg.mxu0
    %v2161 = vrot.slane %v2158, 5
    %v2162 = vrot.slane %v2158, 6
    %v2165 = vadd.f32 %v2127, %v2161
    %v2166 = vadd.f32 %v2128, %v2162
    %v2167 = vxor.u32 %v2165, 2147483648
    %v2168 = vxor.u32 %v2166, 2147483648
    %v2169 = vmul.f32 %v2167, 1.442695
    %v2170 = vpow.pop %v2169
    %v2171 = vmul.f32 %v2168, 1.442695
    %v2172 = vpow.pop %v2171
    %v2173 = vadd.f32 %v2170, 1.0
    %v2174 = vadd.f32 %v2172, 1.0
    %v2175 = vrcp.pop %v2173
    %v2176 = vmul.f32 %v2173, %v2175
    %v2177 = vsub.f32 1.0, %v2176
    %v2178 = vmul.f32 %v2175, %v2177
    %v2179 = vadd.f32 %v2175, %v2178
    %vm2180 = vweird.f32 %v2173
    %vm2181 = vweird.f32 %v2175
    %vm2182 = vmor %vm2180, %vm2181
    %v2183 = vsel %vm2182, %v2175, %v2179
    %v2184 = vand.u32 2147483647, %v2173
    %vm2185 = vcmp.eq.f32.partialorder %v2184, 8.507059e+37
    %v2186 = vand.u32 %v2173, 2147483648
    %v2187 = vor.u32 1.1754944e-38, %v2186
    %v2188 = vsel %vm2185, %v2187, %v2183
    %v2189 = vmul.f32 1.0, %v2188
    %v2190 = vrcp.pop %v2174
    %v2191 = vmul.f32 %v2174, %v2190
    %v2192 = vsub.f32 1.0, %v2191
    %v2193 = vmul.f32 %v2190, %v2192
    %v2194 = vadd.f32 %v2190, %v2193
    %vm2195 = vweird.f32 %v2174
    %vm2196 = vweird.f32 %v2190
    %vm2197 = vmor %vm2195, %vm2196
    %v2198 = vsel %vm2197, %v2190, %v2194
    %v2199 = vand.u32 2147483647, %v2174
    %vm2200 = vcmp.eq.f32.partialorder %v2199, 8.507059e+37
    %v2201 = vand.u32 %v2174, 2147483648
    %v2202 = vor.u32 1.1754944e-38, %v2201
    %v2203 = vsel %vm2200, %v2202, %v2198
    %v2204 = vmul.f32 1.0, %v2203
    %v2205 = vtanh.pop %v2165
    %v2206 = vtanh.pop %v2166
    %v2209 = vrot.slane %v1996, 5
    %v2210 = vrot.slane %v1997, 5
    %v2213 = vmul.f32 %v2189, %v2209
    %v2214 = vmul.f32 %v2204, %v2210
    %2217 = vrot.lane.b32.xlu0 %v2205, 64
    %v2218 = vpop.permute.xlu0 %2217
    %2219 = vrot.lane.b32.xlu0 %v2206, 64
    %v2220 = vpop.permute.xlu0 %2219
    %v2223 = vmul.f32 %v2189, %v2218
    %v2224 = vmul.f32 %v2204, %v2220
    %2227 = vrot.lane.b32.xlu0 %v2223, 32
    %v2228 = vpop.permute.xlu0 %2227
    %2229 = vrot.lane.b32.xlu0 %v2224, 32
    %v2230 = vpop.permute.xlu0 %2229
    %v2233 = vadd.f32 %v2213, %v2228
    %v2234 = vadd.f32 %v2214, %v2230
    %v2235 = vtanh.pop %v2233
    %v2236 = vtanh.pop %v2234
    %2239 = vrot.lane.b32.xlu0 %v2235, 64
    %v2240 = vpop.permute.xlu0 %2239
    %2241 = vrot.lane.b32.xlu0 %v2236, 64
    %v2242 = vpop.permute.xlu0 %2241
    %v2245 = vmul.f32 %v2189, %v2240
    %v2246 = vmul.f32 %v2204, %v2242
    %v2249 = vperm.slane %v2125, 0
    %v2250 = vperm.slane %v2126, 0
    %v2251 = vsel %vm378, %v2250, %v2249
    %2252 = vrot.lane.b32.xlu0 %v2251, 32
    %v2253 = vpop.permute.xlu0 %2252
    %v2254 = vsel %vm165, %v2253, 0
    %2256 = vmatpush.msra.mxu0 0.0
    %2257 = vmatpush.msra.mxu0 0.0
    %2258 = vmatpush.msra.mxu0 0.0
    %2259 = vmatpush.msra.mxu0 0.0
    %2260 = vmatpush.msra.mxu0 0.0
    %2261 = vmatpush.msra.mxu0 0.0
    %2262 = vmatpush.msra.mxu0 0.0
    %2263 = vmatpush.msra.mxu0 0.0
    %2264 = vmatpush.msra.mxu0 0.0
    %2265 = vmatpush.msra.mxu0 0.0
    %2266 = vmatpush.msra.mxu0 0.0
    %2267 = vmatpush.msra.mxu0 0.0
    %2268 = vmatpush.msra.mxu0 %v160
    %2269 = vmatpush.msra.mxu0 %v159
    %2270 = vmatpush.msra.mxu0 %v158
    %2271 = vmatpush.msra.mxu0 %v157
    %2272 = vmatmul.f32.gmra.mxu0 %v2254
    %v2273 = vpop.f32.mrf.mxu0
    %v2274 = vadd.f32 0.0, %v2273
    %2275 = vdwg.mxu0
    %v2277 = vrot.slane %v2274, 7
    %v2280 = vadd.f32 %v145, %v2277
    %v2281 = vadd.f32 %v150, %v2274
    %v2282 = vxor.u32 %v2280, 2147483648
    %v2283 = vxor.u32 %v2281, 2147483648
    %v2284 = vmul.f32 %v2282, 1.442695
    %v2285 = vpow.pop %v2284
    %v2286 = vmul.f32 %v2283, 1.442695
    %v2287 = vpow.pop %v2286
    %v2288 = vadd.f32 %v2285, 1.0
    %v2289 = vadd.f32 %v2287, 1.0
    %v2290 = vrcp.pop %v2288
    %v2291 = vmul.f32 %v2288, %v2290
    %v2292 = vsub.f32 1.0, %v2291
    %v2293 = vmul.f32 %v2290, %v2292
    %v2294 = vadd.f32 %v2290, %v2293
    %vm2295 = vweird.f32 %v2288
    %vm2296 = vweird.f32 %v2290
    %vm2297 = vmor %vm2295, %vm2296
    %v2298 = vsel %vm2297, %v2290, %v2294
    %v2299 = vand.u32 2147483647, %v2288
    %vm2300 = vcmp.eq.f32.partialorder %v2299, 8.507059e+37
    %v2301 = vand.u32 %v2288, 2147483648
    %v2302 = vor.u32 1.1754944e-38, %v2301
    %v2303 = vsel %vm2300, %v2302, %v2298
    %v2304 = vmul.f32 1.0, %v2303
    %v2305 = vrcp.pop %v2289
    %v2306 = vmul.f32 %v2289, %v2305
    %v2307 = vsub.f32 1.0, %v2306
    %v2308 = vmul.f32 %v2305, %v2307
    %v2309 = vadd.f32 %v2305, %v2308
    %vm2310 = vweird.f32 %v2289
    %vm2311 = vweird.f32 %v2305
    %vm2312 = vmor %vm2310, %vm2311
    %v2313 = vsel %vm2312, %v2305, %v2309
    %v2314 = vand.u32 2147483647, %v2289
    %vm2315 = vcmp.eq.f32.partialorder %v2314, 8.507059e+37
    %v2316 = vand.u32 %v2289, 2147483648
    %v2317 = vor.u32 1.1754944e-38, %v2316
    %v2318 = vsel %vm2315, %v2317, %v2313
    %v2319 = vmul.f32 1.0, %v2318
    %v2320 = vtanh.pop %v2280
    %v2321 = vtanh.pop %v2281
    %v2324 = vrot.slane %v2113, 7
    %v2325 = vrot.slane %v2114, 7
    %v2328 = vmul.f32 %v2304, %v2324
    %v2329 = vmul.f32 %v2319, %v2325
    %2332 = vrot.lane.b32.xlu0 %v2320, 64
    %v2333 = vpop.permute.xlu0 %2332
    %2334 = vrot.lane.b32.xlu0 %v2321, 64
    %v2335 = vpop.permute.xlu0 %2334
    %v2338 = vmul.f32 %v2304, %v2333
    %v2339 = vmul.f32 %v2319, %v2335
    %2342 = vrot.lane.b32.xlu0 %v2338, 32
    %v2343 = vpop.permute.xlu0 %2342
    %2344 = vrot.lane.b32.xlu0 %v2339, 32
    %v2345 = vpop.permute.xlu0 %2344
    %v2348 = vadd.f32 %v2328, %v2343
    %v2349 = vadd.f32 %v2329, %v2345
    %v2350 = vtanh.pop %v2348
    %v2351 = vtanh.pop %v2349
    %2354 = vrot.lane.b32.xlu0 %v2350, 64
    %v2355 = vpop.permute.xlu0 %2354
    %2356 = vrot.lane.b32.xlu0 %v2351, 64
    %v2357 = vpop.permute.xlu0 %2356
    %v2360 = vmul.f32 %v2304, %v2355
    %v2361 = vmul.f32 %v2319, %v2357
    %v2364 = vperm.slane %v2245, 3
    %v2365 = vperm.slane %v2246, 3
    %v2366 = vsel %vm378, %v2365, %v2364
    %2367 = vrot.lane.b32.xlu0 %v2366, 32
    %v2368 = vpop.permute.xlu0 %2367
    %v2369 = vsel %vm165, %v2368, 0
    %2371 = vmatpush.msra.mxu0 0.0
    %2372 = vmatpush.msra.mxu0 0.0
    %2373 = vmatpush.msra.mxu0 0.0
    %2374 = vmatpush.msra.mxu0 0.0
    %2375 = vmatpush.msra.mxu0 0.0
    %2376 = vmatpush.msra.mxu0 0.0
    %2377 = vmatpush.msra.mxu0 0.0
    %2378 = vmatpush.msra.mxu0 0.0
    %2379 = vmatpush.msra.mxu0 0.0
    %2380 = vmatpush.msra.mxu0 0.0
    %2381 = vmatpush.msra.mxu0 0.0
    %2382 = vmatpush.msra.mxu0 0.0
    %2383 = vmatpush.msra.mxu0 %v164
    %2384 = vmatpush.msra.mxu0 %v163
    %2385 = vmatpush.msra.mxu0 %v162
    %2386 = vmatpush.msra.mxu0 %v161
    %2387 = vmatmul.f32.gmra.mxu0 %v2369
    %v2388 = vpop.f32.mrf.mxu0
    %v2389 = vadd.f32 0.0, %v2388
    %2390 = vdwg.mxu0
    %v2392 = vrot.slane %v2389, 6
    %v2393 = vrot.slane %v2389, 7
    %v2396 = vadd.f32 %v2127, %v2392
    %v2397 = vadd.f32 %v2128, %v2393
    %v2398 = vxor.u32 %v2396, 2147483648
    %v2399 = vxor.u32 %v2397, 2147483648
    %v2400 = vmul.f32 %v2398, 1.442695
    %v2401 = vpow.pop %v2400
    %v2402 = vmul.f32 %v2399, 1.442695
    %v2403 = vpow.pop %v2402
    %v2404 = vadd.f32 %v2401, 1.0
    %v2405 = vadd.f32 %v2403, 1.0
    %v2406 = vrcp.pop %v2404
    %v2407 = vmul.f32 %v2404, %v2406
    %v2408 = vsub.f32 1.0, %v2407
    %v2409 = vmul.f32 %v2406, %v2408
    %v2410 = vadd.f32 %v2406, %v2409
    %vm2411 = vweird.f32 %v2404
    %vm2412 = vweird.f32 %v2406
    %vm2413 = vmor %vm2411, %vm2412
    %v2414 = vsel %vm2413, %v2406, %v2410
    %v2415 = vand.u32 2147483647, %v2404
    %vm2416 = vcmp.eq.f32.partialorder %v2415, 8.507059e+37
    %v2417 = vand.u32 %v2404, 2147483648
    %v2418 = vor.u32 1.1754944e-38, %v2417
    %v2419 = vsel %vm2416, %v2418, %v2414
    %v2420 = vmul.f32 1.0, %v2419
    %v2421 = vrcp.pop %v2405
    %v2422 = vmul.f32 %v2405, %v2421
    %v2423 = vsub.f32 1.0, %v2422
    %v2424 = vmul.f32 %v2421, %v2423
    %v2425 = vadd.f32 %v2421, %v2424
    %vm2426 = vweird.f32 %v2405
    %vm2427 = vweird.f32 %v2421
    %vm2428 = vmor %vm2426, %vm2427
    %v2429 = vsel %vm2428, %v2421, %v2425
    %v2430 = vand.u32 2147483647, %v2405
    %vm2431 = vcmp.eq.f32.partialorder %v2430, 8.507059e+37
    %v2432 = vand.u32 %v2405, 2147483648
    %v2433 = vor.u32 1.1754944e-38, %v2432
    %v2434 = vsel %vm2431, %v2433, %v2429
    %v2435 = vmul.f32 1.0, %v2434
    %v2436 = vtanh.pop %v2396
    %v2437 = vtanh.pop %v2397
    %v2440 = vrot.slane %v2233, 5
    %v2441 = vrot.slane %v2440, 4
    %v2442 = vrot.slane %v2234, 5
    %v2443 = vrot.slane %v2442, 4
    %v2446 = vmul.f32 %v2420, %v2441
    %v2447 = vmul.f32 %v2435, %v2443
    %2450 = vrot.lane.b32.xlu0 %v2436, 64
    %v2451 = vpop.permute.xlu0 %2450
    %2452 = vrot.lane.b32.xlu0 %v2437, 64
    %v2453 = vpop.permute.xlu0 %2452
    %v2456 = vmul.f32 %v2420, %v2451
    %v2457 = vmul.f32 %v2435, %v2453
    %2460 = vrot.lane.b32.xlu0 %v2456, 32
    %v2461 = vpop.permute.xlu0 %2460
    %2462 = vrot.lane.b32.xlu0 %v2457, 32
    %v2463 = vpop.permute.xlu0 %2462
    %v2466 = vadd.f32 %v2446, %v2461
    %v2467 = vadd.f32 %v2447, %v2463
    %v2468 = vtanh.pop %v2466
    %v2469 = vtanh.pop %v2467
    %2472 = vrot.lane.b32.xlu0 %v2468, 64
    %v2473 = vpop.permute.xlu0 %2472
    %2474 = vrot.lane.b32.xlu0 %v2469, 64
    %v2475 = vpop.permute.xlu0 %2474
    %v2478 = vmul.f32 %v2420, %v2473
    %v2479 = vmul.f32 %v2435, %v2475
    %v2482 = vperm.slane %v2360, 1
    %v2483 = vperm.slane %v2361, 1
    %v2484 = vsel %vm378, %v2483, %v2482
    %2485 = vrot.lane.b32.xlu0 %v2484, 32
    %v2486 = vpop.permute.xlu0 %2485
    %v2487 = vsel %vm165, %v2486, 0
    %2489 = vmatpush.msra.mxu0 0.0
    %2490 = vmatpush.msra.mxu0 0.0
    %2491 = vmatpush.msra.mxu0 0.0
    %2492 = vmatpush.msra.mxu0 0.0
    %2493 = vmatpush.msra.mxu0 0.0
    %2494 = vmatpush.msra.mxu0 0.0
    %2495 = vmatpush.msra.mxu0 0.0
    %2496 = vmatpush.msra.mxu0 0.0
    %2497 = vmatpush.msra.mxu0 0.0
    %2498 = vmatpush.msra.mxu0 0.0
    %2499 = vmatpush.msra.mxu0 0.0
    %2500 = vmatpush.msra.mxu0 0.0
    %2501 = vmatpush.msra.mxu0 %v160
    %2502 = vmatpush.msra.mxu0 %v159
    %2503 = vmatpush.msra.mxu0 %v158
    %2504 = vmatpush.msra.mxu0 %v157
    %2505 = vmatmul.f32.gmra.mxu0 %v2487
    %v2506 = vpop.f32.mrf.mxu0
    %v2507 = vadd.f32 0.0, %v2506
    %2508 = vdwg.mxu0
    %v2510 = vrot.slane %v2507, 6
    %v2511 = vrot.slane %v2507, 7
    %v2514 = vadd.f32 %v145, %v2510
    %v2515 = vadd.f32 %v150, %v2511
    %v2516 = vxor.u32 %v2514, 2147483648
    %v2517 = vxor.u32 %v2515, 2147483648
    %v2518 = vmul.f32 %v2516, 1.442695
    %v2519 = vpow.pop %v2518
    %v2520 = vmul.f32 %v2517, 1.442695
    %v2521 = vpow.pop %v2520
    %v2522 = vadd.f32 %v2519, 1.0
    %v2523 = vadd.f32 %v2521, 1.0
    %v2524 = vrcp.pop %v2522
    %v2525 = vmul.f32 %v2522, %v2524
    %v2526 = vsub.f32 1.0, %v2525
    %v2527 = vmul.f32 %v2524, %v2526
    %v2528 = vadd.f32 %v2524, %v2527
    %vm2529 = vweird.f32 %v2522
    %vm2530 = vweird.f32 %v2524
    %vm2531 = vmor %vm2529, %vm2530
    %v2532 = vsel %vm2531, %v2524, %v2528
    %v2533 = vand.u32 2147483647, %v2522
    %vm2534 = vcmp.eq.f32.partialorder %v2533, 8.507059e+37
    %v2535 = vand.u32 %v2522, 2147483648
    %v2536 = vor.u32 1.1754944e-38, %v2535
    %v2537 = vsel %vm2534, %v2536, %v2532
    %v2538 = vmul.f32 1.0, %v2537
    %v2539 = vrcp.pop %v2523
    %v2540 = vmul.f32 %v2523, %v2539
    %v2541 = vsub.f32 1.0, %v2540
    %v2542 = vmul.f32 %v2539, %v2541
    %v2543 = vadd.f32 %v2539, %v2542
    %vm2544 = vweird.f32 %v2523
    %vm2545 = vweird.f32 %v2539
    %vm2546 = vmor %vm2544, %vm2545
    %v2547 = vsel %vm2546, %v2539, %v2543
    %v2548 = vand.u32 2147483647, %v2523
    %vm2549 = vcmp.eq.f32.partialorder %v2548, 8.507059e+37
    %v2550 = vand.u32 %v2523, 2147483648
    %v2551 = vor.u32 1.1754944e-38, %v2550
    %v2552 = vsel %vm2549, %v2551, %v2547
    %v2553 = vmul.f32 1.0, %v2552
    %v2554 = vtanh.pop %v2514
    %v2555 = vtanh.pop %v2515
    %v2558 = vrot.slane %v2348, 7
    %v2559 = vrot.slane %v2349, 7
    %v2562 = vmul.f32 %v2538, %v2558
    %v2563 = vmul.f32 %v2553, %v2559
    %2566 = vrot.lane.b32.xlu0 %v2554, 64
    %v2567 = vpop.permute.xlu0 %2566
    %2568 = vrot.lane.b32.xlu0 %v2555, 64
    %v2569 = vpop.permute.xlu0 %2568
    %v2572 = vmul.f32 %v2538, %v2567
    %v2573 = vmul.f32 %v2553, %v2569
    %2576 = vrot.lane.b32.xlu0 %v2572, 32
    %v2577 = vpop.permute.xlu0 %2576
    %2578 = vrot.lane.b32.xlu0 %v2573, 32
    %v2579 = vpop.permute.xlu0 %2578
    %v2582 = vadd.f32 %v2562, %v2577
    %v2583 = vadd.f32 %v2563, %v2579
    %v2584 = vtanh.pop %v2582
    %v2585 = vtanh.pop %v2583
    %2588 = vrot.lane.b32.xlu0 %v2584, 64
    %v2589 = vpop.permute.xlu0 %2588
    %2590 = vrot.lane.b32.xlu0 %v2585, 64
    %v2591 = vpop.permute.xlu0 %2590
    %v2594 = vmul.f32 %v2538, %v2589
    %v2595 = vmul.f32 %v2553, %v2591
    %v2598 = vperm.slane %v2478, 2
    %v2599 = vperm.slane %v2479, 2
    %v2600 = vsel %vm378, %v2599, %v2598
    %2601 = vrot.lane.b32.xlu0 %v2600, 32
    %v2602 = vpop.permute.xlu0 %2601
    %v2603 = vsel %vm165, %v2602, 0
    %2605 = vmatpush.msra.mxu0 0.0
    %2606 = vmatpush.msra.mxu0 0.0
    %2607 = vmatpush.msra.mxu0 0.0
    %2608 = vmatpush.msra.mxu0 0.0
    %2609 = vmatpush.msra.mxu0 0.0
    %2610 = vmatpush.msra.mxu0 0.0
    %2611 = vmatpush.msra.mxu0 0.0
    %2612 = vmatpush.msra.mxu0 0.0
    %2613 = vmatpush.msra.mxu0 0.0
    %2614 = vmatpush.msra.mxu0 0.0
    %2615 = vmatpush.msra.mxu0 0.0
    %2616 = vmatpush.msra.mxu0 0.0
    %2617 = vmatpush.msra.mxu0 %v164
    %2618 = vmatpush.msra.mxu0 %v163
    %2619 = vmatpush.msra.mxu0 %v162
    %2620 = vmatpush.msra.mxu0 %v161
    %2621 = vmatmul.f32.gmra.mxu0 %v2603
    %v2622 = vpop.f32.mrf.mxu0
    %v2623 = vadd.f32 0.0, %v2622
    %2624 = vdwg.mxu0
    %v2626 = vrot.slane %v2623, 7
    %v2629 = vadd.f32 %v2127, %v2626
    %v2630 = vadd.f32 %v2128, %v2623
    %v2631 = vxor.u32 %v2629, 2147483648
    %v2632 = vxor.u32 %v2630, 2147483648
    %v2633 = vmul.f32 %v2631, 1.442695
    %v2634 = vpow.pop %v2633
    %v2635 = vmul.f32 %v2632, 1.442695
    %v2636 = vpow.pop %v2635
    %v2637 = vadd.f32 %v2634, 1.0
    %v2638 = vadd.f32 %v2636, 1.0
    %v2639 = vrcp.pop %v2637
    %v2640 = vmul.f32 %v2637, %v2639
    %v2641 = vsub.f32 1.0, %v2640
    %v2642 = vmul.f32 %v2639, %v2641
    %v2643 = vadd.f32 %v2639, %v2642
    %vm2644 = vweird.f32 %v2637
    %vm2645 = vweird.f32 %v2639
    %vm2646 = vmor %vm2644, %vm2645
    %v2647 = vsel %vm2646, %v2639, %v2643
    %v2648 = vand.u32 2147483647, %v2637
    %vm2649 = vcmp.eq.f32.partialorder %v2648, 8.507059e+37
    %v2650 = vand.u32 %v2637, 2147483648
    %v2651 = vor.u32 1.1754944e-38, %v2650
    %v2652 = vsel %vm2649, %v2651, %v2647
    %v2653 = vmul.f32 1.0, %v2652
    %v2654 = vrcp.pop %v2638
    %v2655 = vmul.f32 %v2638, %v2654
    %v2656 = vsub.f32 1.0, %v2655
    %v2657 = vmul.f32 %v2654, %v2656
    %v2658 = vadd.f32 %v2654, %v2657
    %vm2659 = vweird.f32 %v2638
    %vm2660 = vweird.f32 %v2654
    %vm2661 = vmor %vm2659, %vm2660
    %v2662 = vsel %vm2661, %v2654, %v2658
    %v2663 = vand.u32 2147483647, %v2638
    %vm2664 = vcmp.eq.f32.partialorder %v2663, 8.507059e+37
    %v2665 = vand.u32 %v2638, 2147483648
    %v2666 = vor.u32 1.1754944e-38, %v2665
    %v2667 = vsel %vm2664, %v2666, %v2662
    %v2668 = vmul.f32 1.0, %v2667
    %v2669 = vtanh.pop %v2629
    %v2670 = vtanh.pop %v2630
    %v2673 = vrot.slane %v2466, 5
    %v2674 = vrot.slane %v2673, 4
    %v2675 = vrot.slane %v2467, 5
    %v2676 = vrot.slane %v2675, 4
    %v2679 = vmul.f32 %v2653, %v2674
    %v2680 = vmul.f32 %v2668, %v2676
    %2683 = vrot.lane.b32.xlu0 %v2669, 64
    %v2684 = vpop.permute.xlu0 %2683
    %2685 = vrot.lane.b32.xlu0 %v2670, 64
    %v2686 = vpop.permute.xlu0 %2685
    %v2689 = vmul.f32 %v2653, %v2684
    %v2690 = vmul.f32 %v2668, %v2686
    %2693 = vrot.lane.b32.xlu0 %v2689, 32
    %v2694 = vpop.permute.xlu0 %2693
    %2695 = vrot.lane.b32.xlu0 %v2690, 32
    %v2696 = vpop.permute.xlu0 %2695
    %v2699 = vadd.f32 %v2679, %v2694
    %v2700 = vadd.f32 %v2680, %v2696
    %v2701 = vtanh.pop %v2699
    %v2702 = vtanh.pop %v2700
    %2705 = vrot.lane.b32.xlu0 %v2701, 64
    %v2706 = vpop.permute.xlu0 %2705
    %2707 = vrot.lane.b32.xlu0 %v2702, 64
    %v2708 = vpop.permute.xlu0 %2707
    %v2711 = vmul.f32 %v2653, %v2706
    %v2712 = vmul.f32 %v2668, %v2708
    %v2715 = vperm.slane %v2594, 2
    %v2716 = vperm.slane %v2595, 2
    %v2717 = vsel %vm378, %v2716, %v2715
    %2718 = vrot.lane.b32.xlu0 %v2717, 32
    %v2719 = vpop.permute.xlu0 %2718
    %v2720 = vsel %vm165, %v2719, 0
    %2722 = vmatpush.msra.mxu0 0.0
    %2723 = vmatpush.msra.mxu0 0.0
    %2724 = vmatpush.msra.mxu0 0.0
    %2725 = vmatpush.msra.mxu0 0.0
    %2726 = vmatpush.msra.mxu0 0.0
    %2727 = vmatpush.msra.mxu0 0.0
    %2728 = vmatpush.msra.mxu0 0.0
    %2729 = vmatpush.msra.mxu0 0.0
    %2730 = vmatpush.msra.mxu0 0.0
    %2731 = vmatpush.msra.mxu0 0.0
    %2732 = vmatpush.msra.mxu0 0.0
    %2733 = vmatpush.msra.mxu0 0.0
    %2734 = vmatpush.msra.mxu0 %v160
    %2735 = vmatpush.msra.mxu0 %v159
    %2736 = vmatpush.msra.mxu0 %v158
    %2737 = vmatpush.msra.mxu0 %v157
    %2738 = vmatmul.f32.gmra.mxu0 %v2720
    %v2739 = vpop.f32.mrf.mxu0
    %v2740 = vadd.f32 0.0, %v2739
    %2741 = vdwg.mxu0
    %v2743 = vrot.slane %v2740, 5
    %v2744 = vrot.slane %v2740, 6
    %v2747 = vadd.f32 %v145, %v2743
    %v2748 = vadd.f32 %v150, %v2744
    %v2749 = vxor.u32 %v2747, 2147483648
    %v2750 = vxor.u32 %v2748, 2147483648
    %v2751 = vmul.f32 %v2749, 1.442695
    %v2752 = vpow.pop %v2751
    %v2753 = vmul.f32 %v2750, 1.442695
    %v2754 = vpow.pop %v2753
    %v2755 = vadd.f32 %v2752, 1.0
    %v2756 = vadd.f32 %v2754, 1.0
    %v2757 = vrcp.pop %v2755
    %v2758 = vmul.f32 %v2755, %v2757
    %v2759 = vsub.f32 1.0, %v2758
    %v2760 = vmul.f32 %v2757, %v2759
    %v2761 = vadd.f32 %v2757, %v2760
    %vm2762 = vweird.f32 %v2755
    %vm2763 = vweird.f32 %v2757
    %vm2764 = vmor %vm2762, %vm2763
    %v2765 = vsel %vm2764, %v2757, %v2761
    %v2766 = vand.u32 2147483647, %v2755
    %vm2767 = vcmp.eq.f32.partialorder %v2766, 8.507059e+37
    %v2768 = vand.u32 %v2755, 2147483648
    %v2769 = vor.u32 1.1754944e-38, %v2768
    %v2770 = vsel %vm2767, %v2769, %v2765
    %v2771 = vmul.f32 1.0, %v2770
    %v2772 = vrcp.pop %v2756
    %v2773 = vmul.f32 %v2756, %v2772
    %v2774 = vsub.f32 1.0, %v2773
    %v2775 = vmul.f32 %v2772, %v2774
    %v2776 = vadd.f32 %v2772, %v2775
    %vm2777 = vweird.f32 %v2756
    %vm2778 = vweird.f32 %v2772
    %vm2779 = vmor %vm2777, %vm2778
    %v2780 = vsel %vm2779, %v2772, %v2776
    %v2781 = vand.u32 2147483647, %v2756
    %vm2782 = vcmp.eq.f32.partialorder %v2781, 8.507059e+37
    %v2783 = vand.u32 %v2756, 2147483648
    %v2784 = vor.u32 1.1754944e-38, %v2783
    %v2785 = vsel %vm2782, %v2784, %v2780
    %v2786 = vmul.f32 1.0, %v2785
    %v2787 = vtanh.pop %v2747
    %v2788 = vtanh.pop %v2748
    %v2791 = vrot.slane %v2582, 7
    %v2792 = vrot.slane %v2583, 7
    %v2795 = vmul.f32 %v2771, %v2791
    %v2796 = vmul.f32 %v2786, %v2792
    %2799 = vrot.lane.b32.xlu0 %v2787, 64
    %v2800 = vpop.permute.xlu0 %2799
    %2801 = vrot.lane.b32.xlu0 %v2788, 64
    %v2802 = vpop.permute.xlu0 %2801
    %v2805 = vmul.f32 %v2771, %v2800
    %v2806 = vmul.f32 %v2786, %v2802
    %2809 = vrot.lane.b32.xlu0 %v2805, 32
    %v2810 = vpop.permute.xlu0 %2809
    %2811 = vrot.lane.b32.xlu0 %v2806, 32
    %v2812 = vpop.permute.xlu0 %2811
    %v2815 = vadd.f32 %v2795, %v2810
    %v2816 = vadd.f32 %v2796, %v2812
    %v2817 = vtanh.pop %v2815
    %v2818 = vtanh.pop %v2816
    %2821 = vrot.lane.b32.xlu0 %v2817, 64
    %v2822 = vpop.permute.xlu0 %2821
    %2823 = vrot.lane.b32.xlu0 %v2818, 64
    %v2824 = vpop.permute.xlu0 %2823
    %v2827 = vmul.f32 %v2771, %v2822
    %v2828 = vmul.f32 %v2786, %v2824
    %v2831 = vperm.slane %v2711, 1
    %v2832 = vperm.slane %v2712, 1
    %v2833 = vsel %vm378, %v2832, %v2831
    %2834 = vrot.lane.b32.xlu0 %v2833, 32
    %v2835 = vpop.permute.xlu0 %2834
    %v2836 = vsel %vm165, %v2835, 0
    %2838 = vmatpush.msra.mxu0 0.0
    %2839 = vmatpush.msra.mxu0 0.0
    %2840 = vmatpush.msra.mxu0 0.0
    %2841 = vmatpush.msra.mxu0 0.0
    %2842 = vmatpush.msra.mxu0 0.0
    %2843 = vmatpush.msra.mxu0 0.0
    %2844 = vmatpush.msra.mxu0 0.0
    %2845 = vmatpush.msra.mxu0 0.0
    %2846 = vmatpush.msra.mxu0 0.0
    %2847 = vmatpush.msra.mxu0 0.0
    %2848 = vmatpush.msra.mxu0 0.0
    %2849 = vmatpush.msra.mxu0 0.0
    %2850 = vmatpush.msra.mxu0 %v164
    %2851 = vmatpush.msra.mxu0 %v163
    %2852 = vmatpush.msra.mxu0 %v162
    %2853 = vmatpush.msra.mxu0 %v161
    %2854 = vmatmul.f32.gmra.mxu0 %v2836
    %v2855 = vpop.f32.mrf.mxu0
    %v2856 = vadd.f32 0.0, %v2855
    %2857 = vdwg.mxu0
    %v2859 = vrot.slane %v2856, 1
    %v2862 = vadd.f32 %v2127, %v2856
    %v2863 = vadd.f32 %v2128, %v2859
    %v2864 = vxor.u32 %v2862, 2147483648
    %v2865 = vxor.u32 %v2863, 2147483648
    %v2866 = vmul.f32 %v2864, 1.442695
    %v2867 = vpow.pop %v2866
    %v2868 = vmul.f32 %v2865, 1.442695
    %v2869 = vpow.pop %v2868
    %v2870 = vadd.f32 %v2867, 1.0
    %v2871 = vadd.f32 %v2869, 1.0
    %v2872 = vrcp.pop %v2870
    %v2873 = vmul.f32 %v2870, %v2872
    %v2874 = vsub.f32 1.0, %v2873
    %v2875 = vmul.f32 %v2872, %v2874
    %v2876 = vadd.f32 %v2872, %v2875
    %vm2877 = vweird.f32 %v2870
    %vm2878 = vweird.f32 %v2872
    %vm2879 = vmor %vm2877, %vm2878
    %v2880 = vsel %vm2879, %v2872, %v2876
    %v2881 = vand.u32 2147483647, %v2870
    %vm2882 = vcmp.eq.f32.partialorder %v2881, 8.507059e+37
    %v2883 = vand.u32 %v2870, 2147483648
    %v2884 = vor.u32 1.1754944e-38, %v2883
    %v2885 = vsel %vm2882, %v2884, %v2880
    %v2886 = vmul.f32 1.0, %v2885
    %v2887 = vrcp.pop %v2871
    %v2888 = vmul.f32 %v2871, %v2887
    %v2889 = vsub.f32 1.0, %v2888
    %v2890 = vmul.f32 %v2887, %v2889
    %v2891 = vadd.f32 %v2887, %v2890
    %vm2892 = vweird.f32 %v2871
    %vm2893 = vweird.f32 %v2887
    %vm2894 = vmor %vm2892, %vm2893
    %v2895 = vsel %vm2894, %v2887, %v2891
    %v2896 = vand.u32 2147483647, %v2871
    %vm2897 = vcmp.eq.f32.partialorder %v2896, 8.507059e+37
    %v2898 = vand.u32 %v2871, 2147483648
    %v2899 = vor.u32 1.1754944e-38, %v2898
    %v2900 = vsel %vm2897, %v2899, %v2895
    %v2901 = vmul.f32 1.0, %v2900
    %v2902 = vtanh.pop %v2862
    %v2903 = vtanh.pop %v2863
    %v2906 = vrot.slane %v2699, 5
    %v2907 = vrot.slane %v2906, 4
    %v2908 = vrot.slane %v2700, 5
    %v2909 = vrot.slane %v2908, 4
    %v2912 = vmul.f32 %v2886, %v2907
    %v2913 = vmul.f32 %v2901, %v2909
    %2916 = vrot.lane.b32.xlu0 %v2902, 64
    %v2917 = vpop.permute.xlu0 %2916
    %2918 = vrot.lane.b32.xlu0 %v2903, 64
    %v2919 = vpop.permute.xlu0 %2918
    %v2922 = vmul.f32 %v2886, %v2917
    %v2923 = vmul.f32 %v2901, %v2919
    %2926 = vrot.lane.b32.xlu0 %v2922, 32
    %v2927 = vpop.permute.xlu0 %2926
    %2928 = vrot.lane.b32.xlu0 %v2923, 32
    %v2929 = vpop.permute.xlu0 %2928
    %v2932 = vadd.f32 %v2912, %v2927
    %v2933 = vadd.f32 %v2913, %v2929
    %v2934 = vtanh.pop %v2932
    %v2935 = vtanh.pop %v2933
    %2938 = vrot.lane.b32.xlu0 %v2934, 64
    %v2939 = vpop.permute.xlu0 %2938
    %2940 = vrot.lane.b32.xlu0 %v2935, 64
    %v2941 = vpop.permute.xlu0 %2940
    %v2944 = vmul.f32 %v2886, %v2939
    %v2945 = vmul.f32 %v2901, %v2941
    %vm2954 = vcmask 1040384
    %v2955 = vsel %vm2954, %v267, %v488
    %v2956 = vsel %vm2954, %v268, %v489
    %vm2957 = vcmask 1041408
    %v2958 = vsel %vm2957, %v2955, %v722
    %v2959 = vsel %vm2957, %v2956, %v723
    %vm2960 = vcmask 1042432
    %v2961 = vsel %vm2960, %v2958, %v955
    %v2962 = vsel %vm2960, %v2959, %v956
    %v2963 = vsel %vm141, %v2961, %v1313
    %v2964 = vsel %vm141, %v2962, %v1314
    %vm2965 = vcmask 1044480
    %v2966 = vsel %vm2965, %v2963, %v1546
    %v2967 = vsel %vm2965, %v2964, %v1547
    %vm2968 = vcmask 1045504
    %v2969 = vsel %vm2968, %v2966, %v1779
    %v2970 = vsel %vm2968, %v2967, %v1780
    %vm2971 = vcmask 1046528
    %v2972 = vsel %vm2971, %v2969, %v2012
    %v2973 = vsel %vm2971, %v2970, %v2013
    %v2974 = vsel %vm2954, %v2125, %v2360
    %v2975 = vsel %vm2954, %v2126, %v2361
    %v2976 = vsel %vm2957, %v2974, %v2594
    %v2977 = vsel %vm2957, %v2975, %v2595
    %v2978 = vsel %vm2960, %v2976, %v2827
    %v2979 = vsel %vm2960, %v2977, %v2828
    %v2988 = vsel %vm2954, %v2944, %v2711
    %v2989 = vsel %vm2954, %v2945, %v2712
    %v2990 = vsel %vm2957, %v2988, %v2478
    %v2991 = vsel %vm2957, %v2989, %v2479
    %v2992 = vsel %vm2960, %v2990, %v2245
    %v2993 = vsel %vm2960, %v2991, %v2246
    %v2994 = vsel %vm141, %v2992, %v2133
    %v2995 = vsel %vm141, %v2993, %v2134
    %v2996 = vsel %vm2965, %v2994, %v1895
    %v2997 = vsel %vm2965, %v2995, %v1896
    %v2998 = vsel %vm2968, %v2996, %v1662
    %v2999 = vsel %vm2968, %v2997, %v1663
    %v3000 = vsel %vm2971, %v2998, %v1428
    %v3001 = vsel %vm2971, %v2999, %v1429
    %v3002 = vsel %vm2954, %v1072, %v839
    %v3003 = vsel %vm2954, %v1073, %v840
    %v3004 = vsel %vm2957, %v3002, %v606
    %v3005 = vsel %vm2957, %v3003, %v607
    %v3006 = vsel %vm2960, %v3004, %v372
    %v3007 = vsel %vm2960, %v3005, %v373
    %v3008 = vld [vmem:[%s1] sm:$0xff]
    %v3009 = vld [vmem:[%s1 + $0x8] sm:$0xf]
    %v3010 = vld [vmem:[%s1 + $0x10] sm:$0xff]
    %v3011 = vld [vmem:[%s1 + $0x18] sm:$0xf]
    %3016 = vrot.lane.b32.xlu0 %v2972, 32
    %v3017 = vpop.permute.xlu0 %3016
    %3018 = vrot.lane.b32.xlu0 %v2978, 32
    %v3019 = vpop.permute.xlu0 %3018
    %3020 = vrot.lane.b32.xlu0 %v2973, 32
    %v3021 = vpop.permute.xlu0 %3020
    %3022 = vrot.lane.b32.xlu0 %v2979, 32
    %v3023 = vpop.permute.xlu0 %3022
    %3032 = vrot.lane.b32.xlu0 %v3000, 64
    %v3033 = vpop.permute.xlu0 %3032
    %3034 = vrot.lane.b32.xlu0 %v3006, 64
    %v3035 = vpop.permute.xlu0 %3034
    %3036 = vrot.lane.b32.xlu0 %v3001, 64
    %v3037 = vpop.permute.xlu0 %3036
    %3038 = vrot.lane.b32.xlu0 %v3007, 64
    %v3039 = vpop.permute.xlu0 %3038
    %3048 = vrot.lane.b32.xlu0 %v3008, 64
    %v3049 = vpop.permute.xlu0 %3048
    %3050 = vrot.lane.b32.xlu0 %v3009, 64
    %v3051 = vpop.permute.xlu0 %3050
    %3052 = vrot.lane.b32.xlu0 %v3010, 64
    %v3053 = vpop.permute.xlu0 %3052
    %3054 = vrot.lane.b32.xlu0 %v3011, 64
    %v3055 = vpop.permute.xlu0 %3054
    %v3060 = vsel %vm165, %v3017, %v3033
    %v3061 = vsel %vm165, %v3019, %v3035
    %v3062 = vsel %vm165, %v3021, %v3037
    %v3063 = vsel %vm165, %v3023, %v3039
    %vm3064 = vcmask 523264
    %v3065 = vsel %vm3064, %v3060, %v3049
    %v3066 = vsel %vm3064, %v3061, %v3051
    %v3067 = vsel %vm3064, %v3062, %v3053
    %v3068 = vsel %vm3064, %v3063, %v3055
    %vm3069 = vcmask 654336
    %v3070 = vsel %vm3069, %v3065, 0.0
    %v3071 = vsel %vm3069, %v3066, 0.0
    %v3072 = vsel %vm3069, %v3067, 0.0
    %v3073 = vsel %vm3069, %v3068, 0.0
    %3074 = vst [vmem:[%s6] sm:$0xff] %v3070
    %3075 = vst [vmem:[%s6 + $0x8] sm:$0xf] %v3071
    %3076 = vst [vmem:[%s6 + $0x10] sm:$0xff] %v3072
    %3077 = vst [vmem:[%s6 + $0x18] sm:$0xf] %v3073
    // Predicated region
    $region30: #{tpu_custom_call.1} parent=1 // pred_check
      _
    $region31: #{tpu_custom_call.1} parent=1 // pred_check_branch
      %3079 = sbr.rel (0) target = $region33
    $region32: #{tpu_custom_call.1} parent=1 // pred_region
      _
    $region33: #{tpu_custom_call.1} parent=1 // pred_fallthru
      _
    // Predicated region
    $region34: #{tpu_custom_call.1} parent=1 // pred_check
      _
    $region35: #{tpu_custom_call.1} parent=1 // pred_check_branch
      %3081 = sbr.rel (0) target = $region37
    $region36: #{tpu_custom_call.1} parent=1 // pred_region
      _
    $region37: #{tpu_custom_call.1} parent=1 // pred_fallthru
      _
    %3082 = vsyncpa [#allocation3], 1

</llo_original>
